<compile_context>
chip_gen: v7x
topology: tpu7x:2x2x1
jax: 0.10.0
libtpu: 0.0.40
codegen_flags: <defaults>
</compile_context>

<pallas_src>
import functools

import jax
import jax.numpy as jnp
from jax.experimental import pallas as pl
from jax.experimental.pallas import tpu as pltpu


# --------------------------------------------------------------------------- #
# Kernel
# --------------------------------------------------------------------------- #

def _residual_mha_kernel(q_ref, k_ref, v_ref,
                         wq_ref, bq_ref, wk_ref, bk_ref, wv_ref, bv_ref,
                         wo_ref, bo_ref, gamma_ref, beta_ref,
                         out_ref, *rest, n_head, eps, has_weights):
    """One (batch b, query-tile i) grid step.

    Layout: channels on the sublane axis, sequence on the lane axis, i.e. the
    module's native (B, C, 1, S) NCHW convention flattened to (C, S) tiles.
    """
    if has_weights:
        attnw_ref, kp_ref, vp_ref = rest
    else:
        attnw_ref = None
        kp_ref, vp_ref = rest

    f32 = jnp.float32
    cdt = wq_ref.dtype                     # MXU compute dtype (bf16 by default)

    # ---- K / V projections: hoisted out of the query-tile loop -------------
    # Computed once per batch (first query tile only) into persistent VMEM
    # scratch.  The query grid axis is "arbitrary" so this init/reuse pattern
    # is well defined even when the (parallel) batch axis is megacore-split.
    @pl.when(pl.program_id(1) == 0)
    def _project_kv():
        kp = jnp.dot(wk_ref[...], k_ref[0], preferred_element_type=f32) + bk_ref[...]
        vp = jnp.dot(wv_ref[...], v_ref[0], preferred_element_type=f32) + bv_ref[...]
        kp_ref[...] = kp.astype(kp_ref.dtype)
        vp_ref[...] = vp.astype(vp_ref.dtype)

    # ---- Q projection (query scale pre-folded into Wq / bq by the wrapper) -
    xq = q_ref[0]                                                   # (E, TQ) f32
    qp = jnp.dot(wq_ref[...], xq.astype(cdt),
                 preferred_element_type=f32) + bq_ref[...]          # (d_qk, TQ)

    d_qk, tq = qp.shape
    d_v, s_src = vp_ref.shape
    dh = d_qk // n_head
    dhv = d_v // n_head

    # Head split along the channel (sublane) axis -- a free regrouping when
    # dh is a multiple of the sublane tile (8 for f32 / 16 for bf16).
    qh = qp.reshape(n_head, dh, tq).astype(cdt)                     # (H, dh,  TQ)
    kh = kp_ref[...].reshape(n_head, dh, s_src)                     # (H, dh,  S)
    vh = vp_ref[...].reshape(n_head, dhv, s_src)                    # (H, dhv, S)

    # scores[h, k, q] = sum_c kh[h, c, k] * qh[h, c, q]
    scores = jax.lax.dot_general(kh, qh, (((1,), (1,)), ((0,), (0,))),
                                 preferred_element_type=f32)        # (H, S, TQ)

    # Softmax over the key axis.  Exact normalization (one divide per
    # (head, query) column): the weights are a module output and must sum to 1.
    m = jnp.max(scores, axis=1, keepdims=True)
    e = jnp.exp(scores - m)
    w = e / jnp.sum(e, axis=1, keepdims=True)                       # (H, S, TQ) f32

    # Cast once; the same tensor feeds the PV matmul and (when weights_dtype
    # equals the MXU dtype) the attention-weights output.
    wc = w.astype(cdt)
    if attnw_ref is not None:
        if attnw_ref.dtype == cdt:
            attnw_ref[...] = wc[:, None]                            # [head,1,src,tgt]
        else:
            attnw_ref[...] = w[:, None].astype(attnw_ref.dtype)

    # attn[h, c, q] = sum_k vh[h, c, k] * w[h, k, q]
    attn = jax.lax.dot_general(vh, wc, (((2,), (1,)), ((0,), (0,))),
                               preferred_element_type=f32)          # (H, dhv, TQ)
    attn = attn.reshape(d_v, tq)                                    # head concat

    # Output projection (1x1 conv) + residual with the original float32 q.
    out = jnp.dot(wo_ref[...], attn.astype(cdt),
                  preferred_element_type=f32) + bo_ref[...]         # (d_out, TQ)
    res = out + xq

    # LayerNormANE over the channel axis: (x_norm + bias) * weight.
    mean = jnp.mean(res, axis=0, keepdims=True)
    zm = res - mean
    var = jnp.mean(zm * zm, axis=0, keepdims=True)
    out_ref[0] = ((zm * jax.lax.rsqrt(var + eps) + beta_ref[...])
                  * gamma_ref[...]).astype(out_ref.dtype)


# --------------------------------------------------------------------------- #
# Wrapper helpers
# --------------------------------------------------------------------------- #

def _const_spec(shape, single_buffer):
    """BlockSpec for a grid-invariant operand (weights / biases / LN affine)."""
    index_map = lambda b, i: (0,) * len(shape)
    if single_buffer and hasattr(pl, "Buffered"):
        try:
            # One VMEM copy instead of the default double-buffer: the block
            # index never changes, so double-buffering only wastes VMEM
            # (matters most on v7x's 64 MiB/TC).
            return pl.BlockSpec(shape, index_map, pipeline_mode=pl.Buffered(1))
        except Exception:
            pass
    return pl.BlockSpec(shape, index_map)


def _estimate_vmem_bytes(*, E, d_qk, d_v, d_out, n_head, s_s, q_tile,
                         mxu_itemsize, weights_itemsize, return_weights,
                         const_buffers):
    """Approximate per-grid-step VMEM footprint (buffers + f32 temporaries)."""
    dbuf = 2                                               # pipelined operands
    total = dbuf * E * q_tile * 4                          # q block (f32)
    total += dbuf * 2 * E * s_s * mxu_itemsize             # k, v blocks
    total += const_buffers * (((2 * d_qk + d_v) * E + d_out * d_v) * mxu_itemsize
                              + (2 * d_qk + d_v + 3 * d_out) * 4)
    total += (d_qk + d_v) * s_s * mxu_itemsize             # projected K/V scratch
    total += dbuf * d_out * q_tile * 4                     # out block (f32)
    if return_weights:
        total += dbuf * n_head * s_s * q_tile * weights_itemsize
    # in-kernel f32 temporaries: qp / attn / out / res + scores + exp
    total += (d_qk + d_v + 2 * d_out) * q_tile * 4 + 2 * n_head * s_s * q_tile * 4
    return int(total)


def _physical_vmem_bytes():
    try:
        return int(pltpu.get_tpu_info().vmem_capacity_bytes)
    except Exception:
        return 128 * 1024 * 1024     # v5e/v6e default; v7x reports 64 MiB per TC


# --------------------------------------------------------------------------- #
# Forward wrapper
# --------------------------------------------------------------------------- #

def residual_mha_forward(q, k, v, params, *, n_head, q_tile=None,
                         return_weights=True, weights_dtype=jnp.bfloat16,
                         mxu_dtype=jnp.bfloat16, eps=1e-5,
                         vmem_limit_bytes=None):
    """ResidualMultiHeadAttention forward.

    q: (B, embed_dim, Ht, Wt) float32; k, v: (B, embed_dim, Hs, Ws) float32
    (the module's NCHW convention; spatial dims are flattened to a sequence).

    Returns (LayerNormANE(out_proj(attention) + q), attention_weights) where
    attention_weights has the PyTorch layout (n_head, B, src, 1, tgt) — or
    None when return_weights=False.  `weights_dtype` defaults to bfloat16 for
    HBM/VMEM economy (the PyTorch module returns float32).
    """
    B, E, hq_sp, wq_sp = q.shape
    _, _, hs_sp, ws_sp = k.shape
    s_t = hq_sp * wq_sp
    s_s = hs_sp * ws_sp

    wq, bq = params["wq"], params["bq"]          # (d_qk, E) conv-1x1 weight
    wk, bk = params["wk"], params["bk"]
    wv, bv = params["wv"], params["bv"]
    wo, bo = params["wo"], params["bo"]          # (d_out, d_v)
    gamma, beta = params["ln_weight"], params["ln_bias"]

    d_qk, d_v, d_out = wq.shape[0], wv.shape[0], wo.shape[0]
    assert d_qk % n_head == 0 and d_v % n_head == 0
    assert d_out == E, "residual + LayerNormANE require d_out == embed_dim"
    scale = float(d_qk // n_head) ** (-0.5)

    mxu_itemsize = jnp.dtype(mxu_dtype).itemsize
    weights_itemsize = jnp.dtype(weights_dtype).itemsize

    phys_vmem = _physical_vmem_bytes()
    soft_budget = int(phys_vmem * 0.6)   # headroom for compiler scratch/pipeline

    def est(tile):
        return _estimate_vmem_bytes(
            E=E, d_qk=d_qk, d_v=d_v, d_out=d_out, n_head=n_head, s_s=s_s,
            q_tile=tile, mxu_itemsize=mxu_itemsize,
            weights_itemsize=weights_itemsize, return_weights=return_weights,
            const_buffers=1)

    if q_tile is None:
        if s_t % 128 == 0:
            # Lane-dense query tiles.  Prefer 256/512 to fill the v6e/v7x
            # 256-wide MXU result tile when the VMEM budget allows; 128 is
            # already optimal on v5e's 128-wide MXU.
            q_tile = 128
            for cand in (512, 256):
                if s_t % cand == 0 and est(cand) <= soft_budget:
                    q_tile = cand
                    break
        else:
            # TODO(synk): pad s_t to a multiple of 128 and slice the output
            # instead of this single-tile fallback.
            q_tile = s_t
    assert s_t % q_tile == 0
    n_qt = s_t // q_tile

    if vmem_limit_bytes is None:
        vmem_limit_bytes = min(phys_vmem - 12 * 1024 * 1024,
                               max(32 * 1024 * 1024, 2 * est(q_tile)))

    # NCHW (B, C, H, W) -> (B, C, S); pure reshapes + casts, no transposes.
    qx = q.reshape(B, E, s_t)                        # f32 (exact residual path)
    kx = k.reshape(B, E, s_s).astype(mxu_dtype)
    vx = v.reshape(B, E, s_s).astype(mxu_dtype)

    # Fold the query scale into Wq / bq; cast matmul weights to the MXU dtype.
    wq_c = (wq * scale).astype(mxu_dtype)
    wk_c = wk.astype(mxu_dtype)
    wv_c = wv.astype(mxu_dtype)
    wo_c = wo.astype(mxu_dtype)
    bq_c = ((bq * scale)[:, None]).astype(jnp.float32)
    bk_c = bk[:, None].astype(jnp.float32)
    bv_c = bv[:, None].astype(jnp.float32)
    bo_c = bo[:, None].astype(jnp.float32)
    gamma_c = gamma[:, None].astype(jnp.float32)
    beta_c = beta[:, None].astype(jnp.float32)

    # Advisory cost model (K/V projections counted once per batch — matching
    # the hoisted kernel).
    flops = 2 * B * (d_qk * E * s_t                 # Q projection
                     + (d_qk + d_v) * E * s_s       # K / V projections
                     + (d_qk + d_v) * s_s * s_t     # QK^T and PV (all heads)
                     + d_out * d_v * s_t)           # output projection
    bytes_accessed = (qx.size * 4 + (kx.size + vx.size) * mxu_itemsize
                      + (wq_c.size + wk_c.size + wv_c.size + wo_c.size) * mxu_itemsize
                      + B * d_out * s_t * 4)
    if return_weights:
        bytes_accessed += n_head * B * s_s * s_t * weights_itemsize
    cost = pl.CostEstimate(flops=int(flops),
                           transcendentals=int(B * n_head * s_s * s_t),
                           bytes_accessed=int(bytes_accessed))

    kernel = functools.partial(_residual_mha_kernel, n_head=n_head, eps=eps,
                               has_weights=return_weights)

    out_shape = [jax.ShapeDtypeStruct((B, d_out, s_t), jnp.float32)]
    out_specs = [pl.BlockSpec((1, d_out, q_tile), lambda b, i: (b, 0, i))]
    if return_weights:
        # Written directly in the PyTorch [head, batch, src, tgt] layout.
        out_shape.append(jax.ShapeDtypeStruct((n_head, B, s_s, s_t), weights_dtype))
        out_specs.append(pl.BlockSpec((n_head, 1, s_s, q_tile),
                                      lambda b, i: (0, b, 0, i)))

    scratch_shapes = [pltpu.VMEM((d_qk, s_s), mxu_dtype),   # projected K (per batch)
                      pltpu.VMEM((d_v, s_s), mxu_dtype)]    # projected V (per batch)

    def _call(single_buffer_consts):
        const = lambda shape: _const_spec(shape, single_buffer_consts)
        in_specs = [
            pl.BlockSpec((1, E, q_tile), lambda b, i: (b, 0, i)),   # q (tiled)
            pl.BlockSpec((1, E, s_s), lambda b, i: (b, 0, 0)),      # k (per batch)
            pl.BlockSpec((1, E, s_s), lambda b, i: (b, 0, 0)),      # v (per batch)
            const((d_qk, E)), const((d_qk, 1)),                     # Wq, bq (scaled)
            const((d_qk, E)), const((d_qk, 1)),                     # Wk, bk
            const((d_v, E)),  const((d_v, 1)),                      # Wv, bv
            const((d_out, d_v)), const((d_out, 1)),                 # Wo, bo
            const((d_out, 1)), const((d_out, 1)),                   # gamma, beta
        ]
        return pl.pallas_call(
            kernel,
            out_shape=tuple(out_shape),
            grid_spec=pltpu.PrefetchScalarGridSpec(
                num_scalar_prefetch=0,
                grid=(B, n_qt),
                in_specs=in_specs,
                out_specs=tuple(out_specs),
                scratch_shapes=scratch_shapes),
            compiler_params=pltpu.CompilerParams(
                # Query-tile axis is "arbitrary": the K/V scratch is filled at
                # its first iteration and reused by the rest.
                dimension_semantics=("parallel", "arbitrary"),
                vmem_limit_bytes=int(vmem_limit_bytes)),
            cost_estimate=cost,
        )(qx, kx, vx, wq_c, bq_c, wk_c, bk_c, wv_c, bv_c, wo_c, bo_c,
          gamma_c, beta_c)

    try:
        results = _call(True)           # single-buffered grid-invariant operands
    except Exception:
        results = _call(False)          # pl.Buffered(1) unsupported -> default

    out = results[0].reshape(B, d_out, hq_sp, wq_sp)     # NCHW, no transpose
    if return_weights:
        # Stacked per-head weights, PyTorch convention (n_head, B, src, 1, tgt).
        return out, results[1][:, :, :, None, :]
    return out, None


# --------------------------------------------------------------------------- #
# Parameter init (xavier weights like the module; biases / LN affine are
# randomized here -- instead of the module's zeros/ones fresh-init defaults --
# so the bias and (x + bias) * weight LayerNormANE paths are actually tested).
# --------------------------------------------------------------------------- #

def _xavier_uniform(key, out_c, in_c):
    bound = (6.0 / (in_c + out_c)) ** 0.5
    return jax.random.uniform(key, (out_c, in_c), jnp.float32, -bound, bound)


def init_params(key, embed_dim, d_qk, d_v, d_out):
    ks = jax.random.split(key, 10)
    return {
        "wq": _xavier_uniform(ks[0], d_qk, embed_dim),
        "bq": 0.1 * jax.random.normal(ks[1], (d_qk,), jnp.float32),
        "wk": _xavier_uniform(ks[2], d_qk, embed_dim),
        "bk": 0.1 * jax.random.normal(ks[3], (d_qk,), jnp.float32),
        "wv": _xavier_uniform(ks[4], d_v, embed_dim),
        "bv": 0.1 * jax.random.normal(ks[5], (d_v,), jnp.float32),
        "wo": _xavier_uniform(ks[6], d_out, d_v),
        "bo": 0.1 * jax.random.normal(ks[7], (d_out,), jnp.float32),
        "ln_weight": 1.0 + 0.2 * jax.random.normal(ks[8], (d_out,), jnp.float32),
        "ln_bias": 0.1 * jax.random.normal(ks[9], (d_out,), jnp.float32),
    }


# --------------------------------------------------------------------------- #
# Pure-JAX float32 reference (mirrors the PyTorch SPLIT_EINSUM math exactly).
# --------------------------------------------------------------------------- #

def ref_forward(q, k, v, params, *, n_head, eps=1e-5):
    P = jax.lax.Precision.HIGHEST
    B, E, hq_sp, wq_sp = q.shape
    s_t = hq_sp * wq_sp
    s_s = k.shape[2] * k.shape[3]
    d_qk, d_v = params["wq"].shape[0], params["wv"].shape[0]
    dh, dhv = d_qk // n_head, d_v // n_head
    scale = float(dh) ** (-0.5)

    xq = q.reshape(B, E, s_t)
    xk = k.reshape(B, E, s_s)
    xv = v.reshape(B, E, s_s)

    qp = jnp.einsum("oe,bet->bot", params["wq"], xq, precision=P) + params["bq"][:, None]
    kp = jnp.einsum("oe,bet->bot", params["wk"], xk, precision=P) + params["bk"][:, None]
    vp = jnp.einsum("oe,bet->bot", params["wv"], xv, precision=P) + params["bv"][:, None]

    qp = qp * scale                       # module scales the projected query
    qh = qp.reshape(B, n_head, dh, s_t)
    kh = kp.reshape(B, n_head, dh, s_s)
    vh = vp.reshape(B, n_head, dhv, s_s)

    scores = jnp.einsum("bhck,bhcq->bhkq", kh, qh, precision=P)
    w = jax.nn.softmax(scores, axis=2)                   # softmax over key axis
    attn = jnp.einsum("bhck,bhkq->bhcq", vh, w, precision=P).reshape(B, d_v, s_t)

    out = jnp.einsum("oc,bct->bot", params["wo"], attn, precision=P) + params["bo"][:, None]
    res = out + xq
    mean = jnp.mean(res, axis=1, keepdims=True)
    zm = res - mean
    var = jnp.mean(zm * zm, axis=1, keepdims=True)
    ln = (zm * jax.lax.rsqrt(var + eps) + params["ln_bias"][:, None]) \
         * params["ln_weight"][:, None]
    w_pt = jnp.transpose(w, (1, 0, 2, 3))[:, :, :, None, :]
    return ln.reshape(B, -1, hq_sp, wq_sp), w_pt


# --------------------------------------------------------------------------- #
# Self-test
# --------------------------------------------------------------------------- #

if __name__ == "__main__":
    B, embed_dim, n_head = 2, 64, 4
    d_qk = d_v = d_out = embed_dim
    hq_sp, wq_sp = 16, 16            # q is a 16x16 feature map  -> tgt_seq = 256
    hs_sp, ws_sp = 1, 128            # k/v are 1x128 sequences   -> src_seq = 128

    key = jax.random.PRNGKey(0)
    kq, kk, kv, kp = jax.random.split(key, 4)
    q = jax.random.normal(kq, (B, embed_dim, hq_sp, wq_sp), jnp.float32)
    k = jax.random.normal(kk, (B, embed_dim, hs_sp, ws_sp), jnp.float32)
    v = jax.random.normal(kv, (B, embed_dim, hs_sp, ws_sp), jnp.float32)
    params = init_params(kp, embed_dim, d_qk, d_v, d_out)

    ref_out, ref_w = ref_forward(q, k, v, params, n_head=n_head)

    # 1) Default path: bf16 MXU operands, bf16 attention weights. q_tile=128
    #    gives two query tiles per batch, exercising the hoisted K/V scratch.
    out, attn_w = residual_mha_forward(q, k, v, params, n_head=n_head, q_tile=128)
    out, attn_w = jax.block_until_ready((out, attn_w))
    assert out.shape == (B, d_out, hq_sp, wq_sp)
    assert attn_w.shape == (n_head, B, hs_sp * ws_sp, 1, hq_sp * wq_sp)
    assert jnp.allclose(out, ref_out, rtol=5e-2, atol=5e-2), \
        "bf16 kernel output vs f32 reference"
    assert jnp.allclose(attn_w.astype(jnp.float32), ref_w, rtol=5e-2, atol=5e-2), \
        "bf16 attention weights vs f32 reference"

    # 2) f32 MXU path (tight check); auto q_tile (-> single 256-wide tile).
    out32, attn_w32 = residual_mha_forward(q, k, v, params, n_head=n_head,
                                           mxu_dtype=jnp.float32,
                                           weights_dtype=jnp.float32)
    out32, attn_w32 = jax.block_until_ready((out32, attn_w32))
    assert jnp.allclose(out32, ref_out, rtol=2e-2, atol=2e-2), \
        "f32 kernel output vs f32 reference"
    assert jnp.allclose(attn_w32, ref_w, rtol=2e-2, atol=2e-2), \
        "f32 attention weights vs f32 reference"

    # 3) No-attention-weights fast path (smaller HBM writeback): same math.
    out_nw, none_w = residual_mha_forward(q, k, v, params, n_head=n_head,
                                          q_tile=128, return_weights=False)
    out_nw = jax.block_until_ready(out_nw)
    assert none_w is None
    assert jnp.allclose(out_nw, out, rtol=1e-4, atol=1e-4)

    print("KERNEL_OK")
</pallas_src>

<mosaic_0001>
module attributes {stable_mosaic.version = 11 : i64} {
  func.func @_residual_mha_kernel(%arg0: i32, %arg1: i32, %arg2: memref<1x64x128xf32, #tpu.memory_space<vmem>>, %arg3: memref<1x64x128xbf16, #tpu.memory_space<vmem>>, %arg4: memref<1x64x128xbf16, #tpu.memory_space<vmem>>, %arg5: memref<64x64xbf16, #tpu.memory_space<vmem>>, %arg6: memref<64x1xf32, #tpu.memory_space<vmem>>, %arg7: memref<64x64xbf16, #tpu.memory_space<vmem>>, %arg8: memref<64x1xf32, #tpu.memory_space<vmem>>, %arg9: memref<64x64xbf16, #tpu.memory_space<vmem>>, %arg10: memref<64x1xf32, #tpu.memory_space<vmem>>, %arg11: memref<64x64xbf16, #tpu.memory_space<vmem>>, %arg12: memref<64x1xf32, #tpu.memory_space<vmem>>, %arg13: memref<64x1xf32, #tpu.memory_space<vmem>>, %arg14: memref<64x1xf32, #tpu.memory_space<vmem>>, %arg15: memref<1x64x128xf32, #tpu.memory_space<vmem>>, %arg16: memref<4x1x128x128xbf16, #tpu.memory_space<vmem>>, %arg17: memref<64x128xbf16, #tpu.memory_space<vmem>>, %arg18: memref<64x128xbf16, #tpu.memory_space<vmem>>) attributes {dimension_semantics = [#tpu.dimension_semantics<parallel>, #tpu.dimension_semantics<arbitrary>], iteration_bounds = array<i64: 2, 2>, scalar_prefetch = 0 : i64, scratch_operands = 2 : i64, tpu.core_type = #tpu.core_type<tc>, window_params = [{transform_indices = @transform_0, window_bounds = array<i64: 1, 64, 128>}, {transform_indices = @transform_1, window_bounds = array<i64: 1, 64, 128>}, {transform_indices = @transform_2, window_bounds = array<i64: 1, 64, 128>}, {pipeline_mode = #tpu.pipeline_mode<synchronous>, transform_indices = @transform_3, window_bounds = array<i64: 64, 64>}, {pipeline_mode = #tpu.pipeline_mode<synchronous>, transform_indices = @transform_4, window_bounds = array<i64: 64, 1>}, {pipeline_mode = #tpu.pipeline_mode<synchronous>, transform_indices = @transform_5, window_bounds = array<i64: 64, 64>}, {pipeline_mode = #tpu.pipeline_mode<synchronous>, transform_indices = @transform_6, window_bounds = array<i64: 64, 1>}, {pipeline_mode = #tpu.pipeline_mode<synchronous>, transform_indices = @transform_7, window_bounds = array<i64: 64, 64>}, {pipeline_mode = #tpu.pipeline_mode<synchronous>, transform_indices = @transform_8, window_bounds = array<i64: 64, 1>}, {pipeline_mode = #tpu.pipeline_mode<synchronous>, transform_indices = @transform_9, window_bounds = array<i64: 64, 64>}, {pipeline_mode = #tpu.pipeline_mode<synchronous>, transform_indices = @transform_10, window_bounds = array<i64: 64, 1>}, {pipeline_mode = #tpu.pipeline_mode<synchronous>, transform_indices = @transform_11, window_bounds = array<i64: 64, 1>}, {pipeline_mode = #tpu.pipeline_mode<synchronous>, transform_indices = @transform_12, window_bounds = array<i64: 64, 1>}, {transform_indices = @transform_13, window_bounds = array<i64: 1, 64, 128>}, {transform_indices = @transform_14, window_bounds = array<i64: 4, 1, 128, 128>}]} {
    %c0_i32 = arith.constant 0 : i32
    %0 = arith.cmpi eq, %arg1, %c0_i32 : i32
    %1 = arith.extui %0 : i1 to i32
    %c0_i32_0 = arith.constant 0 : i32
    %2 = arith.cmpi ne, %1, %c0_i32_0 : i32
    scf.if %2 {
      %c0_36 = arith.constant 0 : index
      %c0_37 = arith.constant 0 : index
      %64 = vector.load %arg7[%c0_36, %c0_37] : memref<64x64xbf16, #tpu.memory_space<vmem>>, vector<64x64xbf16>
      %c0_38 = arith.constant 0 : index
      %c0_39 = arith.constant 0 : index
      %c0_40 = arith.constant 0 : index
      %65 = vector.load %arg3[%c0_38, %c0_39, %c0_40] : memref<1x64x128xbf16, #tpu.memory_space<vmem>>, vector<1x64x128xbf16>
      %66 = vector.shape_cast %65 : vector<1x64x128xbf16> to vector<64x128xbf16>
      %cst_41 = arith.constant dense<0.000000e+00> : vector<64x128xf32>
      %67 = tpu.matmul %64, %66, %cst_41 {dimension_numbers = #tpu.dot_dimension_numbers<[1], [0], [0], [1], [0, 0, 1, 1], [], []>} : vector<64x64xbf16>, vector<64x128xbf16>, vector<64x128xf32> -> vector<64x128xf32>
      %c0_42 = arith.constant 0 : index
      %c0_43 = arith.constant 0 : index
      %68 = vector.load %arg8[%c0_42, %c0_43] : memref<64x1xf32, #tpu.memory_space<vmem>>, vector<64x1xf32>
      %69 = vector.broadcast %68 : vector<64x1xf32> to vector<64x128xf32>
      %70 = arith.addf %67, %69 : vector<64x128xf32>
      %c0_44 = arith.constant 0 : index
      %c0_45 = arith.constant 0 : index
      %71 = vector.load %arg9[%c0_44, %c0_45] : memref<64x64xbf16, #tpu.memory_space<vmem>>, vector<64x64xbf16>
      %c0_46 = arith.constant 0 : index
      %c0_47 = arith.constant 0 : index
      %c0_48 = arith.constant 0 : index
      %72 = vector.load %arg4[%c0_46, %c0_47, %c0_48] : memref<1x64x128xbf16, #tpu.memory_space<vmem>>, vector<1x64x128xbf16>
      %73 = vector.shape_cast %72 : vector<1x64x128xbf16> to vector<64x128xbf16>
      %cst_49 = arith.constant dense<0.000000e+00> : vector<64x128xf32>
      %74 = tpu.matmul %71, %73, %cst_49 {dimension_numbers = #tpu.dot_dimension_numbers<[1], [0], [0], [1], [0, 0, 1, 1], [], []>} : vector<64x64xbf16>, vector<64x128xbf16>, vector<64x128xf32> -> vector<64x128xf32>
      %c0_50 = arith.constant 0 : index
      %c0_51 = arith.constant 0 : index
      %75 = vector.load %arg10[%c0_50, %c0_51] : memref<64x1xf32, #tpu.memory_space<vmem>>, vector<64x1xf32>
      %76 = vector.broadcast %75 : vector<64x1xf32> to vector<64x128xf32>
      %77 = arith.addf %74, %76 : vector<64x128xf32>
      %78 = arith.truncf %70 : vector<64x128xf32> to vector<64x128xbf16>
      %c0_52 = arith.constant 0 : index
      %c0_53 = arith.constant 0 : index
      %79 = vector.load %arg17[%c0_52, %c0_53] : memref<64x128xbf16, #tpu.memory_space<vmem>>, vector<64x128xbf16>
      tpu.vector_store %arg17[%c0_52, %c0_53], %78 {strides = array<i32>} : memref<64x128xbf16, #tpu.memory_space<vmem>>, vector<64x128xbf16>,
      %80 = arith.truncf %77 : vector<64x128xf32> to vector<64x128xbf16>
      %c0_54 = arith.constant 0 : index
      %c0_55 = arith.constant 0 : index
      %81 = vector.load %arg18[%c0_54, %c0_55] : memref<64x128xbf16, #tpu.memory_space<vmem>>, vector<64x128xbf16>
      tpu.vector_store %arg18[%c0_54, %c0_55], %80 {strides = array<i32>} : memref<64x128xbf16, #tpu.memory_space<vmem>>, vector<64x128xbf16>,
    } else {
    }
    %c0 = arith.constant 0 : index
    %c0_1 = arith.constant 0 : index
    %c0_2 = arith.constant 0 : index
    %3 = vector.load %arg2[%c0, %c0_1, %c0_2] : memref<1x64x128xf32, #tpu.memory_space<vmem>>, vector<1x64x128xf32>
    %4 = vector.shape_cast %3 : vector<1x64x128xf32> to vector<64x128xf32>
    %c0_3 = arith.constant 0 : index
    %c0_4 = arith.constant 0 : index
    %5 = vector.load %arg5[%c0_3, %c0_4] : memref<64x64xbf16, #tpu.memory_space<vmem>>, vector<64x64xbf16>
    %6 = arith.truncf %4 : vector<64x128xf32> to vector<64x128xbf16>
    %cst = arith.constant dense<0.000000e+00> : vector<64x128xf32>
    %7 = tpu.matmul %5, %6, %cst {dimension_numbers = #tpu.dot_dimension_numbers<[1], [0], [0], [1], [0, 0, 1, 1], [], []>} : vector<64x64xbf16>, vector<64x128xbf16>, vector<64x128xf32> -> vector<64x128xf32>
    %c0_5 = arith.constant 0 : index
    %c0_6 = arith.constant 0 : index
    %8 = vector.load %arg6[%c0_5, %c0_6] : memref<64x1xf32, #tpu.memory_space<vmem>>, vector<64x1xf32>
    %9 = vector.broadcast %8 : vector<64x1xf32> to vector<64x128xf32>
    %10 = arith.addf %7, %9 : vector<64x128xf32>
    %11 = vector.shape_cast %10 : vector<64x128xf32> to vector<4x16x128xf32>
    %12 = arith.truncf %11 : vector<4x16x128xf32> to vector<4x16x128xbf16>
    %c0_7 = arith.constant 0 : index
    %c0_8 = arith.constant 0 : index
    %13 = vector.load %arg17[%c0_7, %c0_8] : memref<64x128xbf16, #tpu.memory_space<vmem>>, vector<64x128xbf16>
    %14 = vector.shape_cast %13 : vector<64x128xbf16> to vector<4x16x128xbf16>
    %c0_9 = arith.constant 0 : index
    %c0_10 = arith.constant 0 : index
    %15 = vector.load %arg18[%c0_9, %c0_10] : memref<64x128xbf16, #tpu.memory_space<vmem>>, vector<64x128xbf16>
    %16 = vector.shape_cast %15 : vector<64x128xbf16> to vector<4x16x128xbf16>
    %cst_11 = arith.constant dense<0.000000e+00> : vector<4x128x128xf32>
    %17 = tpu.matmul %14, %12, %cst_11 {dimension_numbers = #tpu.dot_dimension_numbers<[1], [1], [2], [2], [0, 0, 0, 2, 1, 2], [0], [0]>} : vector<4x16x128xbf16>, vector<4x16x128xbf16>, vector<4x128x128xf32> -> vector<4x128x128xf32>
    %cst_12 = arith.constant dense<0xFF800000> : vector<4x128xf32>
    %18 = vector.multi_reduction <maximumf>, %17, %cst_12 [1] : vector<4x128x128xf32> to vector<4x128xf32>
    %19 = vector.shape_cast %18 : vector<4x128xf32> to vector<4x1x128xf32>
    %20 = vector.broadcast %19 : vector<4x1x128xf32> to vector<4x128x128xf32>
    %21 = arith.subf %17, %20 : vector<4x128x128xf32>
    %22 = math.exp %21 : vector<4x128x128xf32>
    %cst_13 = arith.constant dense<0.000000e+00> : vector<4x128xf32>
    %23 = vector.multi_reduction <add>, %22, %cst_13 [1] : vector<4x128x128xf32> to vector<4x128xf32>
    %24 = vector.shape_cast %23 : vector<4x128xf32> to vector<4x1x128xf32>
    %25 = vector.broadcast %24 : vector<4x1x128xf32> to vector<4x128x128xf32>
    %26 = arith.divf %22, %25 : vector<4x128x128xf32>
    %27 = arith.truncf %26 : vector<4x128x128xf32> to vector<4x128x128xbf16>
    %28 = vector.shape_cast %27 : vector<4x128x128xbf16> to vector<4x1x128x128xbf16>
    %c0_14 = arith.constant 0 : index
    %c0_15 = arith.constant 0 : index
    %c0_16 = arith.constant 0 : index
    %c0_17 = arith.constant 0 : index
    %29 = vector.load %arg16[%c0_14, %c0_15, %c0_16, %c0_17] : memref<4x1x128x128xbf16, #tpu.memory_space<vmem>>, vector<4x1x128x128xbf16>
    tpu.vector_store %arg16[%c0_14, %c0_15, %c0_16, %c0_17], %28 {strides = array<i32>} : memref<4x1x128x128xbf16, #tpu.memory_space<vmem>>, vector<4x1x128x128xbf16>,
    %cst_18 = arith.constant dense<0.000000e+00> : vector<4x16x128xf32>
    %30 = tpu.matmul %16, %27, %cst_18 {dimension_numbers = #tpu.dot_dimension_numbers<[2], [1], [1], [2], [0, 0, 0, 1, 1, 2], [0], [0]>} : vector<4x16x128xbf16>, vector<4x128x128xbf16>, vector<4x16x128xf32> -> vector<4x16x128xf32>
    %31 = vector.shape_cast %30 : vector<4x16x128xf32> to vector<64x128xf32>
    %c0_19 = arith.constant 0 : index
    %c0_20 = arith.constant 0 : index
    %32 = vector.load %arg11[%c0_19, %c0_20] : memref<64x64xbf16, #tpu.memory_space<vmem>>, vector<64x64xbf16>
    %33 = arith.truncf %31 : vector<64x128xf32> to vector<64x128xbf16>
    %cst_21 = arith.constant dense<0.000000e+00> : vector<64x128xf32>
    %34 = tpu.matmul %32, %33, %cst_21 {dimension_numbers = #tpu.dot_dimension_numbers<[1], [0], [0], [1], [0, 0, 1, 1], [], []>} : vector<64x64xbf16>, vector<64x128xbf16>, vector<64x128xf32> -> vector<64x128xf32>
    %c0_22 = arith.constant 0 : index
    %c0_23 = arith.constant 0 : index
    %35 = vector.load %arg12[%c0_22, %c0_23] : memref<64x1xf32, #tpu.memory_space<vmem>>, vector<64x1xf32>
    %36 = vector.broadcast %35 : vector<64x1xf32> to vector<64x128xf32>
    %37 = arith.addf %34, %36 : vector<64x128xf32>
    %38 = arith.addf %37, %4 : vector<64x128xf32>
    %cst_24 = arith.constant dense<0.000000e+00> : vector<128xf32>
    %39 = vector.multi_reduction <add>, %38, %cst_24 [0] : vector<64x128xf32> to vector<128xf32>
    %40 = vector.shape_cast %39 : vector<128xf32> to vector<1x128xf32>
    %cst_25 = arith.constant 6.400000e+01 : f32
    %41 = vector.broadcast %cst_25 : f32 to vector<1x128xf32>
    %42 = arith.divf %40, %41 : vector<1x128xf32>
    %43 = vector.broadcast %42 : vector<1x128xf32> to vector<64x128xf32>
    %44 = arith.subf %38, %43 : vector<64x128xf32>
    %45 = arith.mulf %44, %44 : vector<64x128xf32>
    %cst_26 = arith.constant dense<0.000000e+00> : vector<128xf32>
    %46 = vector.multi_reduction <add>, %45, %cst_26 [0] : vector<64x128xf32> to vector<128xf32>
    %47 = vector.shape_cast %46 : vector<128xf32> to vector<1x128xf32>
    %cst_27 = arith.constant 6.400000e+01 : f32
    %48 = vector.broadcast %cst_27 : f32 to vector<1x128xf32>
    %49 = arith.divf %47, %48 : vector<1x128xf32>
    %cst_28 = arith.constant 9.99999974E-6 : f32
    %50 = vector.broadcast %cst_28 : f32 to vector<1x128xf32>
    %51 = arith.addf %49, %50 : vector<1x128xf32>
    %52 = math.rsqrt %51 : vector<1x128xf32>
    %53 = vector.broadcast %52 : vector<1x128xf32> to vector<64x128xf32>
    %54 = arith.mulf %44, %53 : vector<64x128xf32>
    %c0_29 = arith.constant 0 : index
    %c0_30 = arith.constant 0 : index
    %55 = vector.load %arg14[%c0_29, %c0_30] : memref<64x1xf32, #tpu.memory_space<vmem>>, vector<64x1xf32>
    %56 = vector.broadcast %55 : vector<64x1xf32> to vector<64x128xf32>
    %57 = arith.addf %54, %56 : vector<64x128xf32>
    %c0_31 = arith.constant 0 : index
    %c0_32 = arith.constant 0 : index
    %58 = vector.load %arg13[%c0_31, %c0_32] : memref<64x1xf32, #tpu.memory_space<vmem>>, vector<64x1xf32>
    %59 = vector.broadcast %58 : vector<64x1xf32> to vector<64x128xf32>
    %60 = arith.mulf %57, %59 : vector<64x128xf32>
    %c0_33 = arith.constant 0 : index
    %c0_34 = arith.constant 0 : index
    %c0_35 = arith.constant 0 : index
    %61 = vector.load %arg15[%c0_33, %c0_34, %c0_35] : memref<1x64x128xf32, #tpu.memory_space<vmem>>, vector<1x64x128xf32>
    %62 = vector.shape_cast %61 : vector<1x64x128xf32> to vector<64x128xf32>
    %63 = vector.shape_cast %60 : vector<64x128xf32> to vector<1x64x128xf32>
    tpu.vector_store %arg15[%c0_33, %c0_34, %c0_35], %63 {strides = array<i32>} : memref<1x64x128xf32, #tpu.memory_space<vmem>>, vector<1x64x128xf32>,
    return
  }
  func.func @transform_0(%arg0: i32, %arg1: i32) -> (i32, i32, i32) {
    %c0_i32 = arith.constant 0 : i32
    %c0_i32_0 = arith.constant 0 : i32
    return %arg0, %c0_i32, %arg1 : i32, i32, i32
  }
  func.func @transform_1(%arg0: i32, %arg1: i32) -> (i32, i32, i32) {
    %c0_i32 = arith.constant 0 : i32
    %c0_i32_0 = arith.constant 0 : i32
    %c0_i32_1 = arith.constant 0 : i32
    return %arg0, %c0_i32, %c0_i32_0 : i32, i32, i32
  }
  func.func @transform_2(%arg0: i32, %arg1: i32) -> (i32, i32, i32) {
    %c0_i32 = arith.constant 0 : i32
    %c0_i32_0 = arith.constant 0 : i32
    %c0_i32_1 = arith.constant 0 : i32
    return %arg0, %c0_i32, %c0_i32_0 : i32, i32, i32
  }
  func.func @transform_3(%arg0: i32, %arg1: i32) -> (i32, i32) {
    %c0_i32 = arith.constant 0 : i32
    %c0_i32_0 = arith.constant 0 : i32
    %c0_i32_1 = arith.constant 0 : i32
    return %c0_i32, %c0_i32_0 : i32, i32
  }
  func.func @transform_4(%arg0: i32, %arg1: i32) -> (i32, i32) {
    %c0_i32 = arith.constant 0 : i32
    %c0_i32_0 = arith.constant 0 : i32
    %c0_i32_1 = arith.constant 0 : i32
    return %c0_i32, %c0_i32_0 : i32, i32
  }
  func.func @transform_5(%arg0: i32, %arg1: i32) -> (i32, i32) {
    %c0_i32 = arith.constant 0 : i32
    %c0_i32_0 = arith.constant 0 : i32
    %c0_i32_1 = arith.constant 0 : i32
    return %c0_i32, %c0_i32_0 : i32, i32
  }
  func.func @transform_6(%arg0: i32, %arg1: i32) -> (i32, i32) {
    %c0_i32 = arith.constant 0 : i32
    %c0_i32_0 = arith.constant 0 : i32
    %c0_i32_1 = arith.constant 0 : i32
    return %c0_i32, %c0_i32_0 : i32, i32
  }
  func.func @transform_7(%arg0: i32, %arg1: i32) -> (i32, i32) {
    %c0_i32 = arith.constant 0 : i32
    %c0_i32_0 = arith.constant 0 : i32
    %c0_i32_1 = arith.constant 0 : i32
    return %c0_i32, %c0_i32_0 : i32, i32
  }
  func.func @transform_8(%arg0: i32, %arg1: i32) -> (i32, i32) {
    %c0_i32 = arith.constant 0 : i32
    %c0_i32_0 = arith.constant 0 : i32
    %c0_i32_1 = arith.constant 0 : i32
    return %c0_i32, %c0_i32_0 : i32, i32
  }
  func.func @transform_9(%arg0: i32, %arg1: i32) -> (i32, i32) {
    %c0_i32 = arith.constant 0 : i32
    %c0_i32_0 = arith.constant 0 : i32
    %c0_i32_1 = arith.constant 0 : i32
    return %c0_i32, %c0_i32_0 : i32, i32
  }
  func.func @transform_10(%arg0: i32, %arg1: i32) -> (i32, i32) {
    %c0_i32 = arith.constant 0 : i32
    %c0_i32_0 = arith.constant 0 : i32
    %c0_i32_1 = arith.constant 0 : i32
    return %c0_i32, %c0_i32_0 : i32, i32
  }
  func.func @transform_11(%arg0: i32, %arg1: i32) -> (i32, i32) {
    %c0_i32 = arith.constant 0 : i32
    %c0_i32_0 = arith.constant 0 : i32
    %c0_i32_1 = arith.constant 0 : i32
    return %c0_i32, %c0_i32_0 : i32, i32
  }
  func.func @transform_12(%arg0: i32, %arg1: i32) -> (i32, i32) {
    %c0_i32 = arith.constant 0 : i32
    %c0_i32_0 = arith.constant 0 : i32
    %c0_i32_1 = arith.constant 0 : i32
    return %c0_i32, %c0_i32_0 : i32, i32
  }
  func.func @transform_13(%arg0: i32, %arg1: i32) -> (i32, i32, i32) {
    %c0_i32 = arith.constant 0 : i32
    %c0_i32_0 = arith.constant 0 : i32
    return %arg0, %c0_i32, %arg1 : i32, i32, i32
  }
  func.func @transform_14(%arg0: i32, %arg1: i32) -> (i32, i32, i32, i32) {
    %c0_i32 = arith.constant 0 : i32
    %c0_i32_0 = arith.constant 0 : i32
    %c0_i32_1 = arith.constant 0 : i32
    return %c0_i32, %arg0, %c0_i32_0, %arg1 : i32, i32, i32, i32
  }
}

module attributes {stable_mosaic.version = 11 : i64} {
  func.func @_residual_mha_kernel(%arg0: i32, %arg1: i32, %arg2: memref<1x64x128xf32, #tpu.memory_space<vmem>>, %arg3: memref<1x64x128xbf16, #tpu.memory_space<vmem>>, %arg4: memref<1x64x128xbf16, #tpu.memory_space<vmem>>, %arg5: memref<64x64xbf16, #tpu.memory_space<vmem>>, %arg6: memref<64x1xf32, #tpu.memory_space<vmem>>, %arg7: memref<64x64xbf16, #tpu.memory_space<vmem>>, %arg8: memref<64x1xf32, #tpu.memory_space<vmem>>, %arg9: memref<64x64xbf16, #tpu.memory_space<vmem>>, %arg10: memref<64x1xf32, #tpu.memory_space<vmem>>, %arg11: memref<64x64xbf16, #tpu.memory_space<vmem>>, %arg12: memref<64x1xf32, #tpu.memory_space<vmem>>, %arg13: memref<64x1xf32, #tpu.memory_space<vmem>>, %arg14: memref<64x1xf32, #tpu.memory_space<vmem>>, %arg15: memref<1x64x128xf32, #tpu.memory_space<vmem>>, %arg16: memref<4x1x128x128xbf16, #tpu.memory_space<vmem>>, %arg17: memref<64x128xbf16, #tpu.memory_space<vmem>>, %arg18: memref<64x128xbf16, #tpu.memory_space<vmem>>) attributes {dimension_semantics = [#tpu.dimension_semantics<parallel>, #tpu.dimension_semantics<arbitrary>], iteration_bounds = array<i64: 2, 2>, scalar_prefetch = 0 : i64, scratch_operands = 2 : i64, tpu.core_type = #tpu.core_type<tc>, window_params = [{transform_indices = @transform_0, window_bounds = array<i64: 1, 64, 128>}, {transform_indices = @transform_1, window_bounds = array<i64: 1, 64, 128>}, {transform_indices = @transform_2, window_bounds = array<i64: 1, 64, 128>}, {pipeline_mode = #tpu.pipeline_mode<synchronous>, transform_indices = @transform_3, window_bounds = array<i64: 64, 64>}, {pipeline_mode = #tpu.pipeline_mode<synchronous>, transform_indices = @transform_4, window_bounds = array<i64: 64, 1>}, {pipeline_mode = #tpu.pipeline_mode<synchronous>, transform_indices = @transform_5, window_bounds = array<i64: 64, 64>}, {pipeline_mode = #tpu.pipeline_mode<synchronous>, transform_indices = @transform_6, window_bounds = array<i64: 64, 1>}, {pipeline_mode = #tpu.pipeline_mode<synchronous>, transform_indices = @transform_7, window_bounds = array<i64: 64, 64>}, {pipeline_mode = #tpu.pipeline_mode<synchronous>, transform_indices = @transform_8, window_bounds = array<i64: 64, 1>}, {pipeline_mode = #tpu.pipeline_mode<synchronous>, transform_indices = @transform_9, window_bounds = array<i64: 64, 64>}, {pipeline_mode = #tpu.pipeline_mode<synchronous>, transform_indices = @transform_10, window_bounds = array<i64: 64, 1>}, {pipeline_mode = #tpu.pipeline_mode<synchronous>, transform_indices = @transform_11, window_bounds = array<i64: 64, 1>}, {pipeline_mode = #tpu.pipeline_mode<synchronous>, transform_indices = @transform_12, window_bounds = array<i64: 64, 1>}, {transform_indices = @transform_13, window_bounds = array<i64: 1, 64, 128>}, {transform_indices = @transform_14, window_bounds = array<i64: 4, 1, 128, 128>}]} {
    %c0_i32 = arith.constant 0 : i32
    %0 = arith.cmpi eq, %arg1, %c0_i32 : i32
    %1 = arith.extui %0 : i1 to i32
    %c0_i32_0 = arith.constant 0 : i32
    %2 = arith.cmpi ne, %1, %c0_i32_0 : i32
    scf.if %2 {
      %c0_36 = arith.constant 0 : index
      %c0_37 = arith.constant 0 : index
      %64 = vector.load %arg7[%c0_36, %c0_37] : memref<64x64xbf16, #tpu.memory_space<vmem>>, vector<64x64xbf16>
      %c0_38 = arith.constant 0 : index
      %c0_39 = arith.constant 0 : index
      %c0_40 = arith.constant 0 : index
      %65 = vector.load %arg3[%c0_38, %c0_39, %c0_40] : memref<1x64x128xbf16, #tpu.memory_space<vmem>>, vector<1x64x128xbf16>
      %66 = vector.shape_cast %65 : vector<1x64x128xbf16> to vector<64x128xbf16>
      %cst_41 = arith.constant dense<0.000000e+00> : vector<64x128xf32>
      %67 = tpu.matmul %64, %66, %cst_41 {dimension_numbers = #tpu.dot_dimension_numbers<[1], [0], [0], [1], [0, 0, 1, 1], [], []>} : vector<64x64xbf16>, vector<64x128xbf16>, vector<64x128xf32> -> vector<64x128xf32>
      %c0_42 = arith.constant 0 : index
      %c0_43 = arith.constant 0 : index
      %68 = vector.load %arg8[%c0_42, %c0_43] : memref<64x1xf32, #tpu.memory_space<vmem>>, vector<64x1xf32>
      %69 = vector.broadcast %68 : vector<64x1xf32> to vector<64x128xf32>
      %70 = arith.addf %67, %69 : vector<64x128xf32>
      %c0_44 = arith.constant 0 : index
      %c0_45 = arith.constant 0 : index
      %71 = vector.load %arg9[%c0_44, %c0_45] : memref<64x64xbf16, #tpu.memory_space<vmem>>, vector<64x64xbf16>
      %c0_46 = arith.constant 0 : index
      %c0_47 = arith.constant 0 : index
      %c0_48 = arith.constant 0 : index
      %72 = vector.load %arg4[%c0_46, %c0_47, %c0_48] : memref<1x64x128xbf16, #tpu.memory_space<vmem>>, vector<1x64x128xbf16>
      %73 = vector.shape_cast %72 : vector<1x64x128xbf16> to vector<64x128xbf16>
      %cst_49 = arith.constant dense<0.000000e+00> : vector<64x128xf32>
      %74 = tpu.matmul %71, %73, %cst_49 {dimension_numbers = #tpu.dot_dimension_numbers<[1], [0], [0], [1], [0, 0, 1, 1], [], []>} : vector<64x64xbf16>, vector<64x128xbf16>, vector<64x128xf32> -> vector<64x128xf32>
      %c0_50 = arith.constant 0 : index
      %c0_51 = arith.constant 0 : index
      %75 = vector.load %arg10[%c0_50, %c0_51] : memref<64x1xf32, #tpu.memory_space<vmem>>, vector<64x1xf32>
      %76 = vector.broadcast %75 : vector<64x1xf32> to vector<64x128xf32>
      %77 = arith.addf %74, %76 : vector<64x128xf32>
      %78 = arith.truncf %70 : vector<64x128xf32> to vector<64x128xbf16>
      %c0_52 = arith.constant 0 : index
      %c0_53 = arith.constant 0 : index
      %79 = vector.load %arg17[%c0_52, %c0_53] : memref<64x128xbf16, #tpu.memory_space<vmem>>, vector<64x128xbf16>
      tpu.vector_store %arg17[%c0_52, %c0_53], %78 {strides = array<i32>} : memref<64x128xbf16, #tpu.memory_space<vmem>>, vector<64x128xbf16>,
      %80 = arith.truncf %77 : vector<64x128xf32> to vector<64x128xbf16>
      %c0_54 = arith.constant 0 : index
      %c0_55 = arith.constant 0 : index
      %81 = vector.load %arg18[%c0_54, %c0_55] : memref<64x128xbf16, #tpu.memory_space<vmem>>, vector<64x128xbf16>
      tpu.vector_store %arg18[%c0_54, %c0_55], %80 {strides = array<i32>} : memref<64x128xbf16, #tpu.memory_space<vmem>>, vector<64x128xbf16>,
    } else {
    }
    %c0 = arith.constant 0 : index
    %c0_1 = arith.constant 0 : index
    %c0_2 = arith.constant 0 : index
    %3 = vector.load %arg2[%c0, %c0_1, %c0_2] : memref<1x64x128xf32, #tpu.memory_space<vmem>>, vector<1x64x128xf32>
    %4 = vector.shape_cast %3 : vector<1x64x128xf32> to vector<64x128xf32>
    %c0_3 = arith.constant 0 : index
    %c0_4 = arith.constant 0 : index
    %5 = vector.load %arg5[%c0_3, %c0_4] : memref<64x64xbf16, #tpu.memory_space<vmem>>, vector<64x64xbf16>
    %6 = arith.truncf %4 : vector<64x128xf32> to vector<64x128xbf16>
    %cst = arith.constant dense<0.000000e+00> : vector<64x128xf32>
    %7 = tpu.matmul %5, %6, %cst {dimension_numbers = #tpu.dot_dimension_numbers<[1], [0], [0], [1], [0, 0, 1, 1], [], []>} : vector<64x64xbf16>, vector<64x128xbf16>, vector<64x128xf32> -> vector<64x128xf32>
    %c0_5 = arith.constant 0 : index
    %c0_6 = arith.constant 0 : index
    %8 = vector.load %arg6[%c0_5, %c0_6] : memref<64x1xf32, #tpu.memory_space<vmem>>, vector<64x1xf32>
    %9 = vector.broadcast %8 : vector<64x1xf32> to vector<64x128xf32>
    %10 = arith.addf %7, %9 : vector<64x128xf32>
    %11 = vector.shape_cast %10 : vector<64x128xf32> to vector<4x16x128xf32>
    %12 = arith.truncf %11 : vector<4x16x128xf32> to vector<4x16x128xbf16>
    %c0_7 = arith.constant 0 : index
    %c0_8 = arith.constant 0 : index
    %13 = vector.load %arg17[%c0_7, %c0_8] : memref<64x128xbf16, #tpu.memory_space<vmem>>, vector<64x128xbf16>
    %14 = vector.shape_cast %13 : vector<64x128xbf16> to vector<4x16x128xbf16>
    %c0_9 = arith.constant 0 : index
    %c0_10 = arith.constant 0 : index
    %15 = vector.load %arg18[%c0_9, %c0_10] : memref<64x128xbf16, #tpu.memory_space<vmem>>, vector<64x128xbf16>
    %16 = vector.shape_cast %15 : vector<64x128xbf16> to vector<4x16x128xbf16>
    %cst_11 = arith.constant dense<0.000000e+00> : vector<4x128x128xf32>
    %17 = tpu.matmul %14, %12, %cst_11 {dimension_numbers = #tpu.dot_dimension_numbers<[1], [1], [2], [2], [0, 0, 0, 2, 1, 2], [0], [0]>} : vector<4x16x128xbf16>, vector<4x16x128xbf16>, vector<4x128x128xf32> -> vector<4x128x128xf32>
    %cst_12 = arith.constant dense<0xFF800000> : vector<4x128xf32>
    %18 = vector.multi_reduction <maximumf>, %17, %cst_12 [1] : vector<4x128x128xf32> to vector<4x128xf32>
    %19 = vector.shape_cast %18 : vector<4x128xf32> to vector<4x1x128xf32>
    %20 = vector.broadcast %19 : vector<4x1x128xf32> to vector<4x128x128xf32>
    %21 = arith.subf %17, %20 : vector<4x128x128xf32>
    %22 = math.exp %21 : vector<4x128x128xf32>
    %cst_13 = arith.constant dense<0.000000e+00> : vector<4x128xf32>
    %23 = vector.multi_reduction <add>, %22, %cst_13 [1] : vector<4x128x128xf32> to vector<4x128xf32>
    %24 = vector.shape_cast %23 : vector<4x128xf32> to vector<4x1x128xf32>
    %25 = vector.broadcast %24 : vector<4x1x128xf32> to vector<4x128x128xf32>
    %26 = arith.divf %22, %25 : vector<4x128x128xf32>
    %27 = arith.truncf %26 : vector<4x128x128xf32> to vector<4x128x128xbf16>
    %28 = vector.shape_cast %27 : vector<4x128x128xbf16> to vector<4x1x128x128xbf16>
    %c0_14 = arith.constant 0 : index
    %c0_15 = arith.constant 0 : index
    %c0_16 = arith.constant 0 : index
    %c0_17 = arith.constant 0 : index
    %29 = vector.load %arg16[%c0_14, %c0_15, %c0_16, %c0_17] : memref<4x1x128x128xbf16, #tpu.memory_space<vmem>>, vector<4x1x128x128xbf16>
    tpu.vector_store %arg16[%c0_14, %c0_15, %c0_16, %c0_17], %28 {strides = array<i32>} : memref<4x1x128x128xbf16, #tpu.memory_space<vmem>>, vector<4x1x128x128xbf16>,
    %cst_18 = arith.constant dense<0.000000e+00> : vector<4x16x128xf32>
    %30 = tpu.matmul %16, %27, %cst_18 {dimension_numbers = #tpu.dot_dimension_numbers<[2], [1], [1], [2], [0, 0, 0, 1, 1, 2], [0], [0]>} : vector<4x16x128xbf16>, vector<4x128x128xbf16>, vector<4x16x128xf32> -> vector<4x16x128xf32>
    %31 = vector.shape_cast %30 : vector<4x16x128xf32> to vector<64x128xf32>
    %c0_19 = arith.constant 0 : index
    %c0_20 = arith.constant 0 : index
    %32 = vector.load %arg11[%c0_19, %c0_20] : memref<64x64xbf16, #tpu.memory_space<vmem>>, vector<64x64xbf16>
    %33 = arith.truncf %31 : vector<64x128xf32> to vector<64x128xbf16>
    %cst_21 = arith.constant dense<0.000000e+00> : vector<64x128xf32>
    %34 = tpu.matmul %32, %33, %cst_21 {dimension_numbers = #tpu.dot_dimension_numbers<[1], [0], [0], [1], [0, 0, 1, 1], [], []>} : vector<64x64xbf16>, vector<64x128xbf16>, vector<64x128xf32> -> vector<64x128xf32>
    %c0_22 = arith.constant 0 : index
    %c0_23 = arith.constant 0 : index
    %35 = vector.load %arg12[%c0_22, %c0_23] : memref<64x1xf32, #tpu.memory_space<vmem>>, vector<64x1xf32>
    %36 = vector.broadcast %35 : vector<64x1xf32> to vector<64x128xf32>
    %37 = arith.addf %34, %36 : vector<64x128xf32>
    %38 = arith.addf %37, %4 : vector<64x128xf32>
    %cst_24 = arith.constant dense<0.000000e+00> : vector<128xf32>
    %39 = vector.multi_reduction <add>, %38, %cst_24 [0] : vector<64x128xf32> to vector<128xf32>
    %40 = vector.shape_cast %39 : vector<128xf32> to vector<1x128xf32>
    %cst_25 = arith.constant 6.400000e+01 : f32
    %41 = vector.broadcast %cst_25 : f32 to vector<1x128xf32>
    %42 = arith.divf %40, %41 : vector<1x128xf32>
    %43 = vector.broadcast %42 : vector<1x128xf32> to vector<64x128xf32>
    %44 = arith.subf %38, %43 : vector<64x128xf32>
    %45 = arith.mulf %44, %44 : vector<64x128xf32>
    %cst_26 = arith.constant dense<0.000000e+00> : vector<128xf32>
    %46 = vector.multi_reduction <add>, %45, %cst_26 [0] : vector<64x128xf32> to vector<128xf32>
    %47 = vector.shape_cast %46 : vector<128xf32> to vector<1x128xf32>
    %cst_27 = arith.constant 6.400000e+01 : f32
    %48 = vector.broadcast %cst_27 : f32 to vector<1x128xf32>
    %49 = arith.divf %47, %48 : vector<1x128xf32>
    %cst_28 = arith.constant 9.99999974E-6 : f32
    %50 = vector.broadcast %cst_28 : f32 to vector<1x128xf32>
    %51 = arith.addf %49, %50 : vector<1x128xf32>
    %52 = math.rsqrt %51 : vector<1x128xf32>
    %53 = vector.broadcast %52 : vector<1x128xf32> to vector<64x128xf32>
    %54 = arith.mulf %44, %53 : vector<64x128xf32>
    %c0_29 = arith.constant 0 : index
    %c0_30 = arith.constant 0 : index
    %55 = vector.load %arg14[%c0_29, %c0_30] : memref<64x1xf32, #tpu.memory_space<vmem>>, vector<64x1xf32>
    %56 = vector.broadcast %55 : vector<64x1xf32> to vector<64x128xf32>
    %57 = arith.addf %54, %56 : vector<64x128xf32>
    %c0_31 = arith.constant 0 : index
    %c0_32 = arith.constant 0 : index
    %58 = vector.load %arg13[%c0_31, %c0_32] : memref<64x1xf32, #tpu.memory_space<vmem>>, vector<64x1xf32>
    %59 = vector.broadcast %58 : vector<64x1xf32> to vector<64x128xf32>
    %60 = arith.mulf %57, %59 : vector<64x128xf32>
    %c0_33 = arith.constant 0 : index
    %c0_34 = arith.constant 0 : index
    %c0_35 = arith.constant 0 : index
    %61 = vector.load %arg15[%c0_33, %c0_34, %c0_35] : memref<1x64x128xf32, #tpu.memory_space<vmem>>, vector<1x64x128xf32>
    %62 = vector.shape_cast %61 : vector<1x64x128xf32> to vector<64x128xf32>
    %63 = vector.shape_cast %60 : vector<64x128xf32> to vector<1x64x128xf32>
    tpu.vector_store %arg15[%c0_33, %c0_34, %c0_35], %63 {strides = array<i32>} : memref<1x64x128xf32, #tpu.memory_space<vmem>>, vector<1x64x128xf32>,
    return
  }
  func.func @transform_0(%arg0: i32, %arg1: i32) -> (i32, i32, i32) {
    %c0_i32 = arith.constant 0 : i32
    %c0_i32_0 = arith.constant 0 : i32
    return %arg0, %c0_i32, %arg1 : i32, i32, i32
  }
  func.func @transform_1(%arg0: i32, %arg1: i32) -> (i32, i32, i32) {
    %c0_i32 = arith.constant 0 : i32
    %c0_i32_0 = arith.constant 0 : i32
    %c0_i32_1 = arith.constant 0 : i32
    return %arg0, %c0_i32, %c0_i32_0 : i32, i32, i32
  }
  func.func @transform_2(%arg0: i32, %arg1: i32) -> (i32, i32, i32) {
    %c0_i32 = arith.constant 0 : i32
    %c0_i32_0 = arith.constant 0 : i32
    %c0_i32_1 = arith.constant 0 : i32
    return %arg0, %c0_i32, %c0_i32_0 : i32, i32, i32
  }
  func.func @transform_3(%arg0: i32, %arg1: i32) -> (i32, i32) {
    %c0_i32 = arith.constant 0 : i32
    %c0_i32_0 = arith.constant 0 : i32
    %c0_i32_1 = arith.constant 0 : i32
    return %c0_i32, %c0_i32_0 : i32, i32
  }
  func.func @transform_4(%arg0: i32, %arg1: i32) -> (i32, i32) {
    %c0_i32 = arith.constant 0 : i32
    %c0_i32_0 = arith.constant 0 : i32
    %c0_i32_1 = arith.constant 0 : i32
    return %c0_i32, %c0_i32_0 : i32, i32
  }
  func.func @transform_5(%arg0: i32, %arg1: i32) -> (i32, i32) {
    %c0_i32 = arith.constant 0 : i32
    %c0_i32_0 = arith.constant 0 : i32
    %c0_i32_1 = arith.constant 0 : i32
    return %c0_i32, %c0_i32_0 : i32, i32
  }
  func.func @transform_6(%arg0: i32, %arg1: i32) -> (i32, i32) {
    %c0_i32 = arith.constant 0 : i32
    %c0_i32_0 = arith.constant 0 : i32
    %c0_i32_1 = arith.constant 0 : i32
    return %c0_i32, %c0_i32_0 : i32, i32
  }
  func.func @transform_7(%arg0: i32, %arg1: i32) -> (i32, i32) {
    %c0_i32 = arith.constant 0 : i32
    %c0_i32_0 = arith.constant 0 : i32
    %c0_i32_1 = arith.constant 0 : i32
    return %c0_i32, %c0_i32_0 : i32, i32
  }
  func.func @transform_8(%arg0: i32, %arg1: i32) -> (i32, i32) {
    %c0_i32 = arith.constant 0 : i32
    %c0_i32_0 = arith.constant 0 : i32
    %c0_i32_1 = arith.constant 0 : i32
    return %c0_i32, %c0_i32_0 : i32, i32
  }
  func.func @transform_9(%arg0: i32, %arg1: i32) -> (i32, i32) {
    %c0_i32 = arith.constant 0 : i32
    %c0_i32_0 = arith.constant 0 : i32
    %c0_i32_1 = arith.constant 0 : i32
    return %c0_i32, %c0_i32_0 : i32, i32
  }
  func.func @transform_10(%arg0: i32, %arg1: i32) -> (i32, i32) {
    %c0_i32 = arith.constant 0 : i32
    %c0_i32_0 = arith.constant 0 : i32
    %c0_i32_1 = arith.constant 0 : i32
    return %c0_i32, %c0_i32_0 : i32, i32
  }
  func.func @transform_11(%arg0: i32, %arg1: i32) -> (i32, i32) {
    %c0_i32 = arith.constant 0 : i32
    %c0_i32_0 = arith.constant 0 : i32
    %c0_i32_1 = arith.constant 0 : i32
    return %c0_i32, %c0_i32_0 : i32, i32
  }
  func.func @transform_12(%arg0: i32, %arg1: i32) -> (i32, i32) {
    %c0_i32 = arith.constant 0 : i32
    %c0_i32_0 = arith.constant 0 : i32
    %c0_i32_1 = arith.constant 0 : i32
    return %c0_i32, %c0_i32_0 : i32, i32
  }
  func.func @transform_13(%arg0: i32, %arg1: i32) -> (i32, i32, i32) {
    %c0_i32 = arith.constant 0 : i32
    %c0_i32_0 = arith.constant 0 : i32
    return %arg0, %c0_i32, %arg1 : i32, i32, i32
  }
  func.func @transform_14(%arg0: i32, %arg1: i32) -> (i32, i32, i32, i32) {
    %c0_i32 = arith.constant 0 : i32
    %c0_i32_0 = arith.constant 0 : i32
    %c0_i32_1 = arith.constant 0 : i32
    return %c0_i32, %arg0, %c0_i32_0, %arg1 : i32, i32, i32, i32
  }
}

</mosaic_0001>

<llo_original>
// kernel: tpu_custom_call.1
$region0: #{tpu_custom_call.1}
  #allocation0 [shape = 'u32[]', space=smem, size = 0x4, offset = 0x4, fixed_abs, tag = 'smem constant byte address 0x4 - core index']
  #allocation1 [shape = 'u32[144,128]{1,0:T(1,128)}', space=vmem, size = 0x12000, scoped, tag = 'internal scratch']
  #allocation2 [shape = 'bf16[64,128]{1,0:T(16,128)(2,1)}', space=vmem, size = 0x4000, scoped, tag = 'scratch operand']
  #allocation3 [shape = 'bf16[64,128]{1,0:T(16,128)(2,1)}', space=vmem, size = 0x4000, scoped, tag = 'scratch operand']
  #allocation10 [shape = 's32[]', space=sflag, size = 0x4, offset = 0, fixed_abs, tag = 'sflag constant byte address 0x0 - dummy sync flag']
  %s0 = inlined_call_operand.hbm [shape: f32[2,64,256], index: 0, kind: input, shape index: {}]
  %s1 = inlined_call_operand.vmem [shape: bf16[2,64,128], index: 1, kind: input, shape index: {}]
  %s2 = inlined_call_operand.vmem [shape: bf16[2,64,128], index: 2, kind: input, shape index: {}]
  %s3 = inlined_call_operand.vmem [shape: bf16[64,64], index: 3, kind: input, shape index: {}]
  %s4 = inlined_call_operand.vmem [shape: f32[64,1], index: 4, kind: input, shape index: {}]
  %s5 = inlined_call_operand.vmem [shape: bf16[64,64], index: 5, kind: input, shape index: {}]
  %s6 = inlined_call_operand.vmem [shape: f32[64,1], index: 6, kind: input, shape index: {}]
  %s7 = inlined_call_operand.vmem [shape: bf16[64,64], index: 7, kind: input, shape index: {}]
  %s8 = inlined_call_operand.vmem [shape: f32[64,1], index: 8, kind: input, shape index: {}]
  %s9 = inlined_call_operand.vmem [shape: bf16[64,64], index: 9, kind: input, shape index: {}]
  %s10 = inlined_call_operand.vmem [shape: f32[64,1], index: 10, kind: input, shape index: {}]
  %s11 = inlined_call_operand.vmem [shape: f32[64,1], index: 11, kind: input, shape index: {}]
  %s12 = inlined_call_operand.vmem [shape: f32[64,1], index: 12, kind: input, shape index: {}]
  %s13 = inlined_call_operand.hbm [shape: f32[2,64,256], index: 13, kind: output, shape index: {0}]
  %s14 = inlined_call_operand.hbm [shape: bf16[4,2,128,256], index: 14, kind: output, shape index: {1}]
  %15 = xla_tuple %s13, %s14
  %s16 = sld [smem:[#allocation0]]
  $region101: #{tpu_custom_call.1} parent=0
    _
  %s18 = ssub.s32 1, %s16
  %s19 = scalar_select 0, %s18, %s16
  $region1: #{tpu_custom_call.1} parent=0
    #allocation4 [shape = 'u8[65536]{0}', space=vmem, size = 0x10000, scoped, tag = 'input window, operand 0']
    #allocation5 [shape = 's32[2]{0}', space=sflag, size = 0x8, scoped, tag = 'scoped memory for tpu_custom_call.1']
    #allocation6 [shape = 's32[2]{0}', space=sflag, size = 0x8, scoped, tag = 'scoped memory for tpu_custom_call.1']
    #allocation7 [shape = 'u8[65536]{0}', space=vmem, size = 0x10000, scoped, tag = 'output window, operand 0']
    #allocation8 [shape = 'u8[262144]{0}', space=vmem, size = 0x40000, scoped, tag = 'output window, operand 1']
    #allocation9 [shape = 's32[2]{0}', space=sflag, size = 0x8, scoped, tag = 'scoped memory for tpu_custom_call.1']
    %20 = vsyncpa [#allocation5], 0
    %s21 = scalar_lea.sflag [#allocation5], 1
    %22 = vsyncpa %s21, 0
    %23 = vsyncpa [#allocation6], 0
    %s24 = scalar_lea.sflag [#allocation6], 1
    %25 = vsyncpa %s24, 0
    %26 = vsyncpa [#allocation9], 0
    %s27 = scalar_lea.sflag [#allocation9], 1
    %28 = vsyncpa %s27, 0
    loop: start=0, step=1, limit=6
    $region2: #{tpu_custom_call.1} parent=1 // loop_pre_header
      _
    $region3: #{tpu_custom_call.1} parent=1 // loop_header
      %s30 = sphi 0, %s34
      %p31 = scmp.ge.s32.totalorder %s30, 6
      %s37 = sphi 0, %s49
      %s38 = sphi 0, %s45
      %s39 = sphi 0, %s37
      %s40 = sphi 0, %s38
      %s41 = sphi 0, %s39
      %s42 = sphi 0, %s40
      %s54 = sphi 0, %s56
      %s57 = sphi 0, %s54
      %s58 = sphi 0, %s57
      %s74 = sphi 0, %s58
      %s80 = sphi 0, %s82
      %s83 = sphi 0, %s80
      %s84 = sphi 0, %s83
      %s100 = sphi 0, %s84
      %s106 = sphi 0, %s108
      %s109 = sphi 0, %s106
      %s110 = sphi 0, %s109
      %s126 = sphi 0, %s110
      %s130 = sphi 0, %s130
      %s132 = sphi 0, %s130
      %s133 = sphi 0, %s132
      %s147 = sphi 0, %s133
      %s151 = sphi 0, %s151
      %s153 = sphi 0, %s151
      %s154 = sphi 0, %s153
      %s168 = sphi 0, %s154
      %s172 = sphi 0, %s172
      %s174 = sphi 0, %s172
      %s175 = sphi 0, %s174
      %s189 = sphi 0, %s175
      %s193 = sphi 0, %s193
      %s195 = sphi 0, %s193
      %s196 = sphi 0, %s195
      %s210 = sphi 0, %s196
      %s214 = sphi 0, %s214
      %s216 = sphi 0, %s214
      %s217 = sphi 0, %s216
      %s231 = sphi 0, %s217
      %s235 = sphi 0, %s235
      %s237 = sphi 0, %s235
      %s238 = sphi 0, %s237
      %s252 = sphi 0, %s238
      %s256 = sphi 0, %s256
      %s258 = sphi 0, %s256
      %s259 = sphi 0, %s258
      %s273 = sphi 0, %s259
      %s277 = sphi 0, %s277
      %s279 = sphi 0, %s277
      %s280 = sphi 0, %s279
      %s294 = sphi 0, %s280
      %s298 = sphi 0, %s298
      %s300 = sphi 0, %s298
      %s301 = sphi 0, %s300
      %s315 = sphi 0, %s301
      %s319 = sphi 0, %s319
      %s321 = sphi 0, %s319
      %s322 = sphi 0, %s321
      %s336 = sphi 0, %s322
      %s344 = sphi 0, %s346
      %s347 = sphi 0, %s344
      %s348 = sphi 0, %s347
      %s364 = sphi 0, %s348
      %s372 = sphi 0, %s374
      %s375 = sphi 0, %s372
      %s376 = sphi 0, %s375
      %s392 = sphi 0, %s376
    $region4: #{tpu_custom_call.1} parent=1 // loop_header_branch
      %33 = sbr.rel (%p31) target = $region8
    $region5: #{tpu_custom_call.1} parent=1 // loop_body
      %s35 = ssub.s32 %s30, 1
      %s36 = ssub.s32 %s30, 2
      %s43 = sadd.s32 1, %s38
      %p44 = scmp.ge.s32.totalorder %s43, 2
      %s45 = scalar_select %p44, 0, %s43
      %s46 = sadd.s32 1, %s37
      %s47 = scalar_select %p44, %s46, %s37
      %p48 = scmp.ge.s32.totalorder %s47, 2
      %s49 = scalar_select %p48, 0, %s47
      %s50 = ssub.s32 %s37, %s49
      %s51 = ssub.s32 %s38, %s45
      %s52 = sor.u32 %s50, %s51
      %p53 = scmp.eq.s32.totalorder %s52, 0
      %s55 = sadd.s32 %s54, 1
      %s56 = scalar_select %p53, %s54, %s55
      %p59 = pneg %p53
      %p60 = scmp.eq.s32.totalorder %s30, 3
      %p61 = por %p59, %p60
      %p62 = scmp.ne.s32.totalorder %s54, %s57
      %p63 = scmp.eq.s32.totalorder %s30, 0
      %p64 = por %p62, %p63
      %p65 = scmp.ne.s32.totalorder %s54, %s57
      %p66 = scmp.eq.s32.totalorder %s35, 3
      %p67 = por %p65, %p66
      %p68 = scmp.ne.s32.totalorder %s57, %s58
      %p69 = scmp.eq.s32.totalorder %s35, 0
      %p70 = por %p68, %p69
      %p71 = scmp.ne.s32.totalorder %s57, %s58
      %p72 = scmp.eq.s32.totalorder %s36, 3
      %p73 = por %p71, %p72
      %p75 = scmp.ne.s32.totalorder %s58, %s74
      %p76 = scmp.eq.s32.totalorder %s36, 0
      %p77 = por %p75, %p76
      %s78 = ssub.s32 %s37, %s49
      %p79 = scmp.eq.s32.totalorder %s78, 0
      %s81 = sadd.s32 %s80, 1
      %s82 = scalar_select %p79, %s80, %s81
      %p85 = pneg %p79
      %p86 = scmp.eq.s32.totalorder %s30, 3
      %p87 = por %p85, %p86
      %p88 = scmp.ne.s32.totalorder %s80, %s83
      %p89 = scmp.eq.s32.totalorder %s30, 0
      %p90 = por %p88, %p89
      %p91 = scmp.ne.s32.totalorder %s80, %s83
      %p92 = scmp.eq.s32.totalorder %s35, 3
      %p93 = por %p91, %p92
      %p94 = scmp.ne.s32.totalorder %s83, %s84
      %p95 = scmp.eq.s32.totalorder %s35, 0
      %p96 = por %p94, %p95
      %p97 = scmp.ne.s32.totalorder %s83, %s84
      %p98 = scmp.eq.s32.totalorder %s36, 3
      %p99 = por %p97, %p98
      %p101 = scmp.ne.s32.totalorder %s84, %s100
      %p102 = scmp.eq.s32.totalorder %s36, 0
      %p103 = por %p101, %p102
      %s104 = ssub.s32 %s37, %s49
      %p105 = scmp.eq.s32.totalorder %s104, 0
      %s107 = sadd.s32 %s106, 1
      %s108 = scalar_select %p105, %s106, %s107
      %p111 = pneg %p105
      %p112 = scmp.eq.s32.totalorder %s30, 3
      %p113 = por %p111, %p112
      %p114 = scmp.ne.s32.totalorder %s106, %s109
      %p115 = scmp.eq.s32.totalorder %s30, 0
      %p116 = por %p114, %p115
      %p117 = scmp.ne.s32.totalorder %s106, %s109
      %p118 = scmp.eq.s32.totalorder %s35, 3
      %p119 = por %p117, %p118
      %p120 = scmp.ne.s32.totalorder %s109, %s110
      %p121 = scmp.eq.s32.totalorder %s35, 0
      %p122 = por %p120, %p121
      %p123 = scmp.ne.s32.totalorder %s109, %s110
      %p124 = scmp.eq.s32.totalorder %s36, 3
      %p125 = por %p123, %p124
      %p127 = scmp.ne.s32.totalorder %s110, %s126
      %p128 = scmp.eq.s32.totalorder %s36, 0
      %p129 = por %p127, %p128
      %s131 = sadd.s32 %s130, 1
      %p134 = scmp.eq.s32.totalorder %s30, 3
      %p135 = scmp.ne.s32.totalorder %s130, %s132
      %p136 = scmp.eq.s32.totalorder %s30, 0
      %p137 = por %p135, %p136
      %p138 = scmp.ne.s32.totalorder %s130, %s132
      %p139 = scmp.eq.s32.totalorder %s35, 3
      %p140 = por %p138, %p139
      %p141 = scmp.ne.s32.totalorder %s132, %s133
      %p142 = scmp.eq.s32.totalorder %s35, 0
      %p143 = por %p141, %p142
      %p144 = scmp.ne.s32.totalorder %s132, %s133
      %p145 = scmp.eq.s32.totalorder %s36, 3
      %p146 = por %p144, %p145
      %p148 = scmp.ne.s32.totalorder %s133, %s147
      %p149 = scmp.eq.s32.totalorder %s36, 0
      %p150 = por %p148, %p149
      %s152 = sadd.s32 %s151, 1
      %p155 = scmp.eq.s32.totalorder %s30, 3
      %p156 = scmp.ne.s32.totalorder %s151, %s153
      %p157 = scmp.eq.s32.totalorder %s30, 0
      %p158 = por %p156, %p157
      %p159 = scmp.ne.s32.totalorder %s151, %s153
      %p160 = scmp.eq.s32.totalorder %s35, 3
      %p161 = por %p159, %p160
      %p162 = scmp.ne.s32.totalorder %s153, %s154
      %p163 = scmp.eq.s32.totalorder %s35, 0
      %p164 = por %p162, %p163
      %p165 = scmp.ne.s32.totalorder %s153, %s154
      %p166 = scmp.eq.s32.totalorder %s36, 3
      %p167 = por %p165, %p166
      %p169 = scmp.ne.s32.totalorder %s154, %s168
      %p170 = scmp.eq.s32.totalorder %s36, 0
      %p171 = por %p169, %p170
      %s173 = sadd.s32 %s172, 1
      %p176 = scmp.eq.s32.totalorder %s30, 3
      %p177 = scmp.ne.s32.totalorder %s172, %s174
      %p178 = scmp.eq.s32.totalorder %s30, 0
      %p179 = por %p177, %p178
      %p180 = scmp.ne.s32.totalorder %s172, %s174
      %p181 = scmp.eq.s32.totalorder %s35, 3
      %p182 = por %p180, %p181
      %p183 = scmp.ne.s32.totalorder %s174, %s175
      %p184 = scmp.eq.s32.totalorder %s35, 0
      %p185 = por %p183, %p184
      %p186 = scmp.ne.s32.totalorder %s174, %s175
      %p187 = scmp.eq.s32.totalorder %s36, 3
      %p188 = por %p186, %p187
      %p190 = scmp.ne.s32.totalorder %s175, %s189
      %p191 = scmp.eq.s32.totalorder %s36, 0
      %p192 = por %p190, %p191
      %s194 = sadd.s32 %s193, 1
      %p197 = scmp.eq.s32.totalorder %s30, 3
      %p198 = scmp.ne.s32.totalorder %s193, %s195
      %p199 = scmp.eq.s32.totalorder %s30, 0
      %p200 = por %p198, %p199
      %p201 = scmp.ne.s32.totalorder %s193, %s195
      %p202 = scmp.eq.s32.totalorder %s35, 3
      %p203 = por %p201, %p202
      %p204 = scmp.ne.s32.totalorder %s195, %s196
      %p205 = scmp.eq.s32.totalorder %s35, 0
      %p206 = por %p204, %p205
      %p207 = scmp.ne.s32.totalorder %s195, %s196
      %p208 = scmp.eq.s32.totalorder %s36, 3
      %p209 = por %p207, %p208
      %p211 = scmp.ne.s32.totalorder %s196, %s210
      %p212 = scmp.eq.s32.totalorder %s36, 0
      %p213 = por %p211, %p212
      %s215 = sadd.s32 %s214, 1
      %p218 = scmp.eq.s32.totalorder %s30, 3
      %p219 = scmp.ne.s32.totalorder %s214, %s216
      %p220 = scmp.eq.s32.totalorder %s30, 0
      %p221 = por %p219, %p220
      %p222 = scmp.ne.s32.totalorder %s214, %s216
      %p223 = scmp.eq.s32.totalorder %s35, 3
      %p224 = por %p222, %p223
      %p225 = scmp.ne.s32.totalorder %s216, %s217
      %p226 = scmp.eq.s32.totalorder %s35, 0
      %p227 = por %p225, %p226
      %p228 = scmp.ne.s32.totalorder %s216, %s217
      %p229 = scmp.eq.s32.totalorder %s36, 3
      %p230 = por %p228, %p229
      %p232 = scmp.ne.s32.totalorder %s217, %s231
      %p233 = scmp.eq.s32.totalorder %s36, 0
      %p234 = por %p232, %p233
      %s236 = sadd.s32 %s235, 1
      %p239 = scmp.eq.s32.totalorder %s30, 3
      %p240 = scmp.ne.s32.totalorder %s235, %s237
      %p241 = scmp.eq.s32.totalorder %s30, 0
      %p242 = por %p240, %p241
      %p243 = scmp.ne.s32.totalorder %s235, %s237
      %p244 = scmp.eq.s32.totalorder %s35, 3
      %p245 = por %p243, %p244
      %p246 = scmp.ne.s32.totalorder %s237, %s238
      %p247 = scmp.eq.s32.totalorder %s35, 0
      %p248 = por %p246, %p247
      %p249 = scmp.ne.s32.totalorder %s237, %s238
      %p250 = scmp.eq.s32.totalorder %s36, 3
      %p251 = por %p249, %p250
      %p253 = scmp.ne.s32.totalorder %s238, %s252
      %p254 = scmp.eq.s32.totalorder %s36, 0
      %p255 = por %p253, %p254
      %s257 = sadd.s32 %s256, 1
      %p260 = scmp.eq.s32.totalorder %s30, 3
      %p261 = scmp.ne.s32.totalorder %s256, %s258
      %p262 = scmp.eq.s32.totalorder %s30, 0
      %p263 = por %p261, %p262
      %p264 = scmp.ne.s32.totalorder %s256, %s258
      %p265 = scmp.eq.s32.totalorder %s35, 3
      %p266 = por %p264, %p265
      %p267 = scmp.ne.s32.totalorder %s258, %s259
      %p268 = scmp.eq.s32.totalorder %s35, 0
      %p269 = por %p267, %p268
      %p270 = scmp.ne.s32.totalorder %s258, %s259
      %p271 = scmp.eq.s32.totalorder %s36, 3
      %p272 = por %p270, %p271
      %p274 = scmp.ne.s32.totalorder %s259, %s273
      %p275 = scmp.eq.s32.totalorder %s36, 0
      %p276 = por %p274, %p275
      %s278 = sadd.s32 %s277, 1
      %p281 = scmp.eq.s32.totalorder %s30, 3
      %p282 = scmp.ne.s32.totalorder %s277, %s279
      %p283 = scmp.eq.s32.totalorder %s30, 0
      %p284 = por %p282, %p283
      %p285 = scmp.ne.s32.totalorder %s277, %s279
      %p286 = scmp.eq.s32.totalorder %s35, 3
      %p287 = por %p285, %p286
      %p288 = scmp.ne.s32.totalorder %s279, %s280
      %p289 = scmp.eq.s32.totalorder %s35, 0
      %p290 = por %p288, %p289
      %p291 = scmp.ne.s32.totalorder %s279, %s280
      %p292 = scmp.eq.s32.totalorder %s36, 3
      %p293 = por %p291, %p292
      %p295 = scmp.ne.s32.totalorder %s280, %s294
      %p296 = scmp.eq.s32.totalorder %s36, 0
      %p297 = por %p295, %p296
      %s299 = sadd.s32 %s298, 1
      %p302 = scmp.eq.s32.totalorder %s30, 3
      %p303 = scmp.ne.s32.totalorder %s298, %s300
      %p304 = scmp.eq.s32.totalorder %s30, 0
      %p305 = por %p303, %p304
      %p306 = scmp.ne.s32.totalorder %s298, %s300
      %p307 = scmp.eq.s32.totalorder %s35, 3
      %p308 = por %p306, %p307
      %p309 = scmp.ne.s32.totalorder %s300, %s301
      %p310 = scmp.eq.s32.totalorder %s35, 0
      %p311 = por %p309, %p310
      %p312 = scmp.ne.s32.totalorder %s300, %s301
      %p313 = scmp.eq.s32.totalorder %s36, 3
      %p314 = por %p312, %p313
      %p316 = scmp.ne.s32.totalorder %s301, %s315
      %p317 = scmp.eq.s32.totalorder %s36, 0
      %p318 = por %p316, %p317
      %s320 = sadd.s32 %s319, 1
      %p323 = scmp.eq.s32.totalorder %s30, 3
      %p324 = scmp.ne.s32.totalorder %s319, %s321
      %p325 = scmp.eq.s32.totalorder %s30, 0
      %p326 = por %p324, %p325
      %p327 = scmp.ne.s32.totalorder %s319, %s321
      %p328 = scmp.eq.s32.totalorder %s35, 3
      %p329 = por %p327, %p328
      %p330 = scmp.ne.s32.totalorder %s321, %s322
      %p331 = scmp.eq.s32.totalorder %s35, 0
      %p332 = por %p330, %p331
      %p333 = scmp.ne.s32.totalorder %s321, %s322
      %p334 = scmp.eq.s32.totalorder %s36, 3
      %p335 = por %p333, %p334
      %p337 = scmp.ne.s32.totalorder %s322, %s336
      %p338 = scmp.eq.s32.totalorder %s36, 0
      %p339 = por %p337, %p338
      %s340 = ssub.s32 %s37, %s49
      %s341 = ssub.s32 %s38, %s45
      %s342 = sor.u32 %s340, %s341
      %p343 = scmp.eq.s32.totalorder %s342, 0
      %s345 = sadd.s32 %s344, 1
      %s346 = scalar_select %p343, %s344, %s345
      %p349 = pneg %p343
      %p350 = scmp.eq.s32.totalorder %s30, 3
      %p351 = por %p349, %p350
      %p352 = scmp.ne.s32.totalorder %s344, %s347
      %p353 = scmp.eq.s32.totalorder %s30, 0
      %p354 = por %p352, %p353
      %p355 = scmp.ne.s32.totalorder %s344, %s347
      %p356 = scmp.eq.s32.totalorder %s35, 3
      %p357 = por %p355, %p356
      %p358 = scmp.ne.s32.totalorder %s347, %s348
      %p359 = scmp.eq.s32.totalorder %s35, 0
      %p360 = por %p358, %p359
      %p361 = scmp.ne.s32.totalorder %s347, %s348
      %p362 = scmp.eq.s32.totalorder %s36, 3
      %p363 = por %p361, %p362
      %p365 = scmp.ne.s32.totalorder %s348, %s364
      %p366 = scmp.eq.s32.totalorder %s36, 0
      %p367 = por %p365, %p366
      %s368 = ssub.s32 %s37, %s49
      %s369 = ssub.s32 %s38, %s45
      %s370 = sor.u32 %s368, %s369
      %p371 = scmp.eq.s32.totalorder %s370, 0
      %s373 = sadd.s32 %s372, 1
      %s374 = scalar_select %p371, %s372, %s373
      %p377 = pneg %p371
      %p378 = scmp.eq.s32.totalorder %s30, 3
      %p379 = por %p377, %p378
      %p380 = scmp.ne.s32.totalorder %s372, %s375
      %p381 = scmp.eq.s32.totalorder %s30, 0
      %p382 = por %p380, %p381
      %p383 = scmp.ne.s32.totalorder %s372, %s375
      %p384 = scmp.eq.s32.totalorder %s35, 3
      %p385 = por %p383, %p384
      %p386 = scmp.ne.s32.totalorder %s375, %s376
      %p387 = scmp.eq.s32.totalorder %s35, 0
      %p388 = por %p386, %p387
      %p389 = scmp.ne.s32.totalorder %s375, %s376
      %p390 = scmp.eq.s32.totalorder %s36, 3
      %p391 = por %p389, %p390
      %p393 = scmp.ne.s32.totalorder %s376, %s392
      %p394 = scmp.eq.s32.totalorder %s36, 0
      %p395 = por %p393, %p394
      %p396 = scmp.le.s32.totalorder 1, %s30
      %p397 = scmp.lt.s32.totalorder %s30, 5
      %p398 = pnand %p396, %p397
      %p399 = pneg %p398
      // Predicated region
      $region9: #{tpu_custom_call.1} parent=5 // pred_check
        _
      $region10: #{tpu_custom_call.1} parent=5 // pred_check_branch
        %401 = sbr.rel (%p398) target = $region12
      $region11: #{tpu_custom_call.1} parent=5 // pred_region
        %s402 = ssub.s32 %s30, 1
        // Predicated region
        $region13: #{tpu_custom_call.1} parent=11 // pred_check
          %p403 = pneg %p143
        $region14: #{tpu_custom_call.1} parent=11 // pred_check_branch
          %405 = sbr.rel (%p403) target = $region16
        $region15: #{tpu_custom_call.1} parent=11 // pred_region
          _
        $region16: #{tpu_custom_call.1} parent=11 // pred_fallthru
          _
        // Predicated region
        $region17: #{tpu_custom_call.1} parent=11 // pred_check
          %p406 = pneg %p164
        $region18: #{tpu_custom_call.1} parent=11 // pred_check_branch
          %408 = sbr.rel (%p406) target = $region20
        $region19: #{tpu_custom_call.1} parent=11 // pred_region
          _
        $region20: #{tpu_custom_call.1} parent=11 // pred_fallthru
          _
        // Predicated region
        $region21: #{tpu_custom_call.1} parent=11 // pred_check
          %p409 = pneg %p185
        $region22: #{tpu_custom_call.1} parent=11 // pred_check_branch
          %411 = sbr.rel (%p409) target = $region24
        $region23: #{tpu_custom_call.1} parent=11 // pred_region
          _
        $region24: #{tpu_custom_call.1} parent=11 // pred_fallthru
          _
        // Predicated region
        $region25: #{tpu_custom_call.1} parent=11 // pred_check
          %p412 = pneg %p206
        $region26: #{tpu_custom_call.1} parent=11 // pred_check_branch
          %414 = sbr.rel (%p412) target = $region28
        $region27: #{tpu_custom_call.1} parent=11 // pred_region
          _
        $region28: #{tpu_custom_call.1} parent=11 // pred_fallthru
          _
        // Predicated region
        $region29: #{tpu_custom_call.1} parent=11 // pred_check
          %p415 = pneg %p227
        $region30: #{tpu_custom_call.1} parent=11 // pred_check_branch
          %417 = sbr.rel (%p415) target = $region32
        $region31: #{tpu_custom_call.1} parent=11 // pred_region
          _
        $region32: #{tpu_custom_call.1} parent=11 // pred_fallthru
          _
        // Predicated region
        $region33: #{tpu_custom_call.1} parent=11 // pred_check
          %p418 = pneg %p248
        $region34: #{tpu_custom_call.1} parent=11 // pred_check_branch
          %420 = sbr.rel (%p418) target = $region36
        $region35: #{tpu_custom_call.1} parent=11 // pred_region
          _
        $region36: #{tpu_custom_call.1} parent=11 // pred_fallthru
          _
        // Predicated region
        $region37: #{tpu_custom_call.1} parent=11 // pred_check
          %p421 = pneg %p269
        $region38: #{tpu_custom_call.1} parent=11 // pred_check_branch
          %423 = sbr.rel (%p421) target = $region40
        $region39: #{tpu_custom_call.1} parent=11 // pred_region
          _
        $region40: #{tpu_custom_call.1} parent=11 // pred_fallthru
          _
        // Predicated region
        $region41: #{tpu_custom_call.1} parent=11 // pred_check
          %p424 = pneg %p290
        $region42: #{tpu_custom_call.1} parent=11 // pred_check_branch
          %426 = sbr.rel (%p424) target = $region44
        $region43: #{tpu_custom_call.1} parent=11 // pred_region
          _
        $region44: #{tpu_custom_call.1} parent=11 // pred_fallthru
          _
        // Predicated region
        $region45: #{tpu_custom_call.1} parent=11 // pred_check
          %p427 = pneg %p311
        $region46: #{tpu_custom_call.1} parent=11 // pred_check_branch
          %429 = sbr.rel (%p427) target = $region48
        $region47: #{tpu_custom_call.1} parent=11 // pred_region
          _
        $region48: #{tpu_custom_call.1} parent=11 // pred_fallthru
          _
        // Predicated region
        $region49: #{tpu_custom_call.1} parent=11 // pred_check
          %p430 = pneg %p332
        $region50: #{tpu_custom_call.1} parent=11 // pred_check_branch
          %432 = sbr.rel (%p430) target = $region52
        $region51: #{tpu_custom_call.1} parent=11 // pred_region
          _
        $region52: #{tpu_custom_call.1} parent=11 // pred_fallthru
          _
      $region12: #{tpu_custom_call.1} parent=5 // pred_fallthru
        _
      %p433 = scmp.lt.s32.totalorder %s30, 4
      // Predicated region
      $region53: #{tpu_custom_call.1} parent=5 // pred_check
        %p434 = pneg %p433
      $region54: #{tpu_custom_call.1} parent=5 // pred_check_branch
        %436 = sbr.rel (%p434) target = $region56
      $region55: #{tpu_custom_call.1} parent=5 // pred_region
        // Predicated region
        $region57: #{tpu_custom_call.1} parent=55 // pred_check
          %p437 = pneg %p64
        $region58: #{tpu_custom_call.1} parent=55 // pred_check_branch
          %439 = sbr.rel (%p437) target = $region60
        $region59: #{tpu_custom_call.1} parent=55 // pred_region
          %s440 = sand.u32 %s54, 1
          %s441 = scalar_lea.sflag [#allocation5], %s440
          %s442 = sand.u32 %s54, 1
          %s443 = smul.addr %s442, 64
          %s444 = scalar_lea.vmem [#allocation4], %s443
          %s446 = ssub.s32 1024, 1024
          %447 = vsyncadd %s441, %s446
          %s448 = smul.addr %s37, 16
          %s449 = sadd.s32 %s38, %s448
          %s450 = smul.addr %s449, 128
          %s451 = scalar_lea.hbm %s0, %s450
          %s452 = sshll.u32 %s444, 4
          %s453 = int_to_ptr.vmem [resolvable:$true] %s452
          %458 = dma.hbm_to_vmem [thread:$0]  %s451, 1024, %s453, %s441, 256, 128, 8
        $region60: #{tpu_custom_call.1} parent=55 // pred_fallthru
          _
        // Predicated region
        $region61: #{tpu_custom_call.1} parent=55 // pred_check
          %p459 = pneg %p90
        $region62: #{tpu_custom_call.1} parent=55 // pred_check_branch
          %461 = sbr.rel (%p459) target = $region64
        $region63: #{tpu_custom_call.1} parent=55 // pred_region
          %p462 = scmp.lt.s32.totalorder %s37, 1
          %s463 = scalar_select %p462, %s37, 1
          %s464 = smul.addr %s463, 8
          %s465 = smul.addr %s464, 4
          %s466 = scalar_lea.vmem %s1, %s465
        $region64: #{tpu_custom_call.1} parent=55 // pred_fallthru
          _
        // Predicated region
        $region65: #{tpu_custom_call.1} parent=55 // pred_check
          %p467 = pneg %p116
        $region66: #{tpu_custom_call.1} parent=55 // pred_check_branch
          %469 = sbr.rel (%p467) target = $region68
        $region67: #{tpu_custom_call.1} parent=55 // pred_region
          %p470 = scmp.lt.s32.totalorder %s37, 1
          %s471 = scalar_select %p470, %s37, 1
          %s472 = smul.addr %s471, 8
          %s473 = smul.addr %s472, 4
          %s474 = scalar_lea.vmem %s2, %s473
        $region68: #{tpu_custom_call.1} parent=55 // pred_fallthru
          _
      $region56: #{tpu_custom_call.1} parent=5 // pred_fallthru
        _
      %p475 = scmp.le.s32.totalorder 1, %s30
      %p476 = scmp.lt.s32.totalorder %s30, 5
      %p477 = pnand %p475, %p476
      %p478 = pneg %p477
      // Predicated region
      $region69: #{tpu_custom_call.1} parent=5 // pred_check
        _
      $region70: #{tpu_custom_call.1} parent=5 // pred_check_branch
        %480 = sbr.rel (%p477) target = $region72
      $region71: #{tpu_custom_call.1} parent=5 // pred_region
        %s481 = ssub.s32 %s30, 1
        %s482 = sand.u32 %s57, 1
        %s483 = scalar_lea.sflag [#allocation5], %s482
        %s484 = sand.u32 %s57, 1
        %s485 = smul.addr %s484, 64
        %s486 = scalar_lea.vmem [#allocation4], %s485
        // Predicated region
        $region73: #{tpu_custom_call.1} parent=71 // pred_check
          %p487 = pneg %p70
        $region74: #{tpu_custom_call.1} parent=71 // pred_check_branch
          %489 = sbr.rel (%p487) target = $region76
        $region75: #{tpu_custom_call.1} parent=71 // pred_region
          %490 = dma.done %s483, 1024
        $region76: #{tpu_custom_call.1} parent=71 // pred_fallthru
          _
        %s491 = sand.u32 %s57, 1
        %s492 = scalar_lea.sflag [#allocation5], %s491
        %s493 = sand.u32 %s57, 1
        %s494 = smul.addr %s493, 64
        %s495 = scalar_lea.vmem [#allocation4], %s494
        %p496 = pneg %p70
        %p497 = pneg %p67
        %p498 = scmp.lt.s32.totalorder %s39, 1
        %s499 = scalar_select %p498, %s39, 1
        %s500 = smul.addr %s499, 8
        %s501 = smul.addr %s500, 4
        %s502 = scalar_lea.vmem %s1, %s501
        %p503 = pneg %p96
        %p504 = pneg %p93
        %p505 = scmp.lt.s32.totalorder %s39, 1
        %s506 = scalar_select %p505, %s39, 1
        %s507 = smul.addr %s506, 8
        %s508 = smul.addr %s507, 4
        %s509 = scalar_lea.vmem %s2, %s508
        %p510 = pneg %p122
        %p511 = pneg %p119
        %p512 = pneg %p143
        %p513 = pneg %p140
        %p514 = pneg %p164
        %p515 = pneg %p161
        %p516 = pneg %p185
        %p517 = pneg %p182
        %p518 = pneg %p206
        %p519 = pneg %p203
        %p520 = pneg %p227
        %p521 = pneg %p224
        %p522 = pneg %p248
        %p523 = pneg %p245
        %p524 = pneg %p269
        %p525 = pneg %p266
        %p526 = pneg %p290
        %p527 = pneg %p287
        %p528 = pneg %p311
        %p529 = pneg %p308
        %p530 = pneg %p332
        %p531 = pneg %p329
        %p532 = pneg %p360
        %p533 = pneg %p357
        %s534 = sand.u32 %s347, 1
        %s535 = scalar_lea.sflag [#allocation6], %s534
        %s536 = sand.u32 %s347, 1
        %s537 = smul.addr %s536, 64
        %s538 = scalar_lea.vmem [#allocation7], %s537
        %p539 = pneg %p388
        %p540 = pneg %p385
        %s541 = sand.u32 %s375, 1
        %s542 = scalar_lea.sflag [#allocation9], %s541
        %s543 = sand.u32 %s375, 1
        %s544 = smul.addr %s543, 256
        %s545 = scalar_lea.vmem [#allocation8], %s544
        %p546 = scmp.lt.s32.totalorder %s39, 1
        %s547 = scalar_select %p546, %s39, 1
        %s548 = smul.addr %s547, 8
        %s549 = smul.addr %s548, 4
        %s550 = scalar_lea.vmem %s1, %s549
        %p551 = scmp.lt.s32.totalorder %s39, 1
        %s552 = scalar_select %p551, %s39, 1
        %s553 = smul.addr %s552, 8
        %s554 = smul.addr %s553, 4
        %s555 = scalar_lea.vmem %s2, %s554
        %p557 = scmp.eq.s32.totalorder %s40, 0
        // Predicated region
        $region77: #{tpu_custom_call.1} parent=71 // pred_check
          %p558 = pneg %p557
        $region78: #{tpu_custom_call.1} parent=71 // pred_check_branch
          %560 = sbr.rel (%p558) target = $region80
        $region79: #{tpu_custom_call.1} parent=71 // pred_region
          %v561 = vld [vmem:[%s5] sm:$0xf]
          %v562 = vld [vmem:[%s5 + $0x4] sm:$0xf]
          %v563 = vld [vmem:[%s5 + $0x8] sm:$0xf]
          %v564 = vld [vmem:[%s5 + $0xc] sm:$0xf]
          %v565 = vld [vmem:[%s5 + $0x10] sm:$0xf]
          %v566 = vld [vmem:[%s5 + $0x14] sm:$0xf]
          %v567 = vld [vmem:[%s5 + $0x18] sm:$0xf]
          %v568 = vld [vmem:[%s5 + $0x1c] sm:$0xf]
          %v569 = vld [vmem:[%s550] sm:$0xf]
          %v570 = vld [vmem:[%s550 + $0x4] sm:$0xf]
          %v571 = vld [vmem:[%s550 + $0x8] sm:$0xf]
          %v572 = vld [vmem:[%s550 + $0xc] sm:$0xf]
          %v573 = vld [vmem:[%s550 + $0x10] sm:$0xf]
          %v574 = vld [vmem:[%s550 + $0x14] sm:$0xf]
          %v575 = vld [vmem:[%s550 + $0x18] sm:$0xf]
          %v576 = vld [vmem:[%s550 + $0x1c] sm:$0xf]
          %v577 = vld [vmem:[%s6] sm:$0xff]
          %v578 = vld [vmem:[%s6 + $0x8] sm:$0xff]
          %v579 = vld [vmem:[%s6 + $0x10] sm:$0xff]
          %v580 = vld [vmem:[%s6 + $0x18] sm:$0xff]
          %v581 = vld [vmem:[%s6 + $0x20] sm:$0xff]
          %v582 = vld [vmem:[%s6 + $0x28] sm:$0xff]
          %v583 = vld [vmem:[%s6 + $0x30] sm:$0xff]
          %v584 = vld [vmem:[%s6 + $0x38] sm:$0xff]
          %586 = vset.pattern.permute.xlu0 0
          %587 = vperm.xlu0 %586, %v577
          %v588 = vpop.permute.xlu0 %587
          %591 = vset.pattern.permute.xlu0 0
          %592 = vperm.xlu0 %591, %v578
          %v593 = vpop.permute.xlu0 %592
          %596 = vset.pattern.permute.xlu0 0
          %597 = vperm.xlu0 %596, %v579
          %v598 = vpop.permute.xlu0 %597
          %601 = vset.pattern.permute.xlu0 0
          %602 = vperm.xlu0 %601, %v580
          %v603 = vpop.permute.xlu0 %602
          %606 = vset.pattern.permute.xlu0 0
          %607 = vperm.xlu0 %606, %v581
          %v608 = vpop.permute.xlu0 %607
          %611 = vset.pattern.permute.xlu0 0
          %612 = vperm.xlu0 %611, %v582
          %v613 = vpop.permute.xlu0 %612
          %616 = vset.pattern.permute.xlu0 0
          %617 = vperm.xlu0 %616, %v583
          %v618 = vpop.permute.xlu0 %617
          %621 = vset.pattern.permute.xlu0 0
          %622 = vperm.xlu0 %621, %v584
          %v623 = vpop.permute.xlu0 %622
          %v633 = vunpack.c.l.b16 %v561
          %v634 = vunpack.c.l.b16 %v562
          %v635 = vunpack.c.l.b16 %v563
          %v636 = vunpack.c.l.b16 %v564
          %v637 = vunpack.c.l.b16 %v565
          %v638 = vunpack.c.l.b16 %v566
          %v639 = vunpack.c.l.b16 %v567
          %v640 = vunpack.c.l.b16 %v568
          %v641 = vpack.c.b16 %v634, %v633
          %v642 = vpack.c.b16 %v636, %v635
          %v643 = vpack.c.b16 %v638, %v637
          %v644 = vpack.c.b16 %v640, %v639
          %v653 = vunpack.c.l.b16 %v569
          %v654 = vunpack.c.l.b16 %v570
          %v655 = vunpack.c.l.b16 %v571
          %v656 = vunpack.c.l.b16 %v572
          %v657 = vunpack.c.l.b16 %v573
          %v658 = vunpack.c.l.b16 %v574
          %v659 = vunpack.c.l.b16 %v575
          %v660 = vunpack.c.l.b16 %v576
          %v661 = vpack.c.b16 %v654, %v653
          %v662 = vpack.c.b16 %v656, %v655
          %v663 = vpack.c.b16 %v658, %v657
          %v664 = vpack.c.b16 %v660, %v659
          %vm669 = vcmask 523264
          %v671 = vsel %vm669, %v641, 0
          %v674 = vsel %vm669, %v642, 0
          %v677 = vsel %vm669, %v643, 0
          %v680 = vsel %vm669, %v644, 0
          %682 = vmatprep.subr.bf16.mxu0 0
          %683 = vmatpush1.bf16.msra.mxu0 %v661
          %684 = vmatprep.subr.bf16.mxu0 0
          %685 = vmatpush1.bf16.msra.mxu0 %v662
          %686 = vmatprep.subr.bf16.mxu0 0
          %687 = vmatpush1.bf16.msra.mxu0 %v663
          %688 = vmatprep.subr.bf16.mxu0 0
          %689 = vmatpush1.bf16.msra.mxu0 %v664
          %690 = vmatprep.subr.bf16.mxu0 0
          %691 = vmatpush1.bf16.msra.mxu0 0
          %692 = vmatprep.subr.bf16.mxu0 0
          %693 = vmatpush1.bf16.msra.mxu0 0
          %694 = vmatprep.subr.bf16.mxu0 0
          %695 = vmatpush1.bf16.msra.mxu0 0
          %696 = vmatprep.subr.bf16.mxu0 0
          %697 = vmatpush1.bf16.msra.mxu0 0
          %698 = vmatprep.subr.bf16.mxu0 0
          %699 = vmatpush1.bf16.msra.mxu0 0
          %700 = vmatprep.subr.bf16.mxu0 0
          %701 = vmatpush1.bf16.msra.mxu0 0
          %702 = vmatprep.subr.bf16.mxu0 0
          %703 = vmatpush1.bf16.msra.mxu0 0
          %704 = vmatprep.subr.bf16.mxu0 0
          %705 = vmatpush1.bf16.msra.mxu0 0
          %706 = vmatprep.subr.bf16.mxu0 0
          %707 = vmatpush1.bf16.msra.mxu0 0
          %708 = vmatprep.subr.bf16.mxu0 0
          %709 = vmatpush1.bf16.msra.mxu0 0
          %710 = vmatprep.subr.bf16.mxu0 0
          %711 = vmatpush1.bf16.msra.mxu0 0
          %712 = vmatprep.subr.bf16.mxu0 0
          %713 = vmatpush1.bf16.msra.mxu0 0
          %714 = vmatprep.mubr.bf16.mxu0 0
          %715 = vmatmul.mubr.bf16.gmra.mrb[0].mxu0 %v671
          %v716 = vpop.f32.mrb[0].mxu0
          %v717 = vadd.f32 %v588, %v716
          %v718 = vpop.f32.mrb[0].mxu0
          %v719 = vpop.f32.mrb[0].mxu0
          %v720 = vadd.f32 %v593, %v719
          %v721 = vpop.f32.mrb[0].mxu0
          %722 = vmatprep.mubr.bf16.mxu0 0
          %723 = vmatmul.mubr.bf16.gmra.mrb[0].mxu0 %v674
          %v724 = vpop.f32.mrb[0].mxu0
          %v725 = vadd.f32 %v598, %v724
          %v726 = vpop.f32.mrb[0].mxu0
          %v727 = vpop.f32.mrb[0].mxu0
          %v728 = vadd.f32 %v603, %v727
          %v729 = vpop.f32.mrb[0].mxu0
          %730 = vmatprep.mubr.bf16.mxu0 0
          %731 = vmatmul.mubr.bf16.gmra.mrb[0].mxu0 %v677
          %v732 = vpop.f32.mrb[0].mxu0
          %v733 = vadd.f32 %v608, %v732
          %v734 = vpop.f32.mrb[0].mxu0
          %v735 = vpop.f32.mrb[0].mxu0
          %v736 = vadd.f32 %v613, %v735
          %v737 = vpop.f32.mrb[0].mxu0
          %738 = vmatprep.mubr.bf16.mxu0 0
          %739 = vmatmul.mubr.bf16.gmra.mrb[0].mxu0 %v680
          %v740 = vpop.f32.mrb[0].mxu0
          %v741 = vadd.f32 %v618, %v740
          %v742 = vpop.f32.mrb[0].mxu0
          %v743 = vpop.f32.mrb[0].mxu0
          %v744 = vadd.f32 %v623, %v743
          %v745 = vpop.f32.mrb[0].mxu0
          %746 = vdwg.mxu0
          %v747 = vld [vmem:[%s7] sm:$0xf]
          %v748 = vld [vmem:[%s7 + $0x4] sm:$0xf]
          %v749 = vld [vmem:[%s7 + $0x8] sm:$0xf]
          %v750 = vld [vmem:[%s7 + $0xc] sm:$0xf]
          %v751 = vld [vmem:[%s7 + $0x10] sm:$0xf]
          %v752 = vld [vmem:[%s7 + $0x14] sm:$0xf]
          %v753 = vld [vmem:[%s7 + $0x18] sm:$0xf]
          %v754 = vld [vmem:[%s7 + $0x1c] sm:$0xf]
          %v755 = vld [vmem:[%s555] sm:$0xf]
          %v756 = vld [vmem:[%s555 + $0x4] sm:$0xf]
          %v757 = vld [vmem:[%s555 + $0x8] sm:$0xf]
          %v758 = vld [vmem:[%s555 + $0xc] sm:$0xf]
          %v759 = vld [vmem:[%s555 + $0x10] sm:$0xf]
          %v760 = vld [vmem:[%s555 + $0x14] sm:$0xf]
          %v761 = vld [vmem:[%s555 + $0x18] sm:$0xf]
          %v762 = vld [vmem:[%s555 + $0x1c] sm:$0xf]
          %v763 = vld [vmem:[%s8] sm:$0xff]
          %v764 = vld [vmem:[%s8 + $0x8] sm:$0xff]
          %v765 = vld [vmem:[%s8 + $0x10] sm:$0xff]
          %v766 = vld [vmem:[%s8 + $0x18] sm:$0xff]
          %v767 = vld [vmem:[%s8 + $0x20] sm:$0xff]
          %v768 = vld [vmem:[%s8 + $0x28] sm:$0xff]
          %v769 = vld [vmem:[%s8 + $0x30] sm:$0xff]
          %v770 = vld [vmem:[%s8 + $0x38] sm:$0xff]
          %772 = vset.pattern.permute.xlu0 0
          %773 = vperm.xlu0 %772, %v763
          %v774 = vpop.permute.xlu0 %773
          %777 = vset.pattern.permute.xlu0 0
          %778 = vperm.xlu0 %777, %v764
          %v779 = vpop.permute.xlu0 %778
          %782 = vset.pattern.permute.xlu0 0
          %783 = vperm.xlu0 %782, %v765
          %v784 = vpop.permute.xlu0 %783
          %787 = vset.pattern.permute.xlu0 0
          %788 = vperm.xlu0 %787, %v766
          %v789 = vpop.permute.xlu0 %788
          %792 = vset.pattern.permute.xlu0 0
          %793 = vperm.xlu0 %792, %v767
          %v794 = vpop.permute.xlu0 %793
          %797 = vset.pattern.permute.xlu0 0
          %798 = vperm.xlu0 %797, %v768
          %v799 = vpop.permute.xlu0 %798
          %802 = vset.pattern.permute.xlu0 0
          %803 = vperm.xlu0 %802, %v769
          %v804 = vpop.permute.xlu0 %803
          %807 = vset.pattern.permute.xlu0 0
          %808 = vperm.xlu0 %807, %v770
          %v809 = vpop.permute.xlu0 %808
          %v819 = vunpack.c.l.b16 %v747
          %v820 = vunpack.c.l.b16 %v748
          %v821 = vunpack.c.l.b16 %v749
          %v822 = vunpack.c.l.b16 %v750
          %v823 = vunpack.c.l.b16 %v751
          %v824 = vunpack.c.l.b16 %v752
          %v825 = vunpack.c.l.b16 %v753
          %v826 = vunpack.c.l.b16 %v754
          %v827 = vpack.c.b16 %v820, %v819
          %v828 = vpack.c.b16 %v822, %v821
          %v829 = vpack.c.b16 %v824, %v823
          %v830 = vpack.c.b16 %v826, %v825
          %v839 = vunpack.c.l.b16 %v755
          %v840 = vunpack.c.l.b16 %v756
          %v841 = vunpack.c.l.b16 %v757
          %v842 = vunpack.c.l.b16 %v758
          %v843 = vunpack.c.l.b16 %v759
          %v844 = vunpack.c.l.b16 %v760
          %v845 = vunpack.c.l.b16 %v761
          %v846 = vunpack.c.l.b16 %v762
          %v847 = vpack.c.b16 %v840, %v839
          %v848 = vpack.c.b16 %v842, %v841
          %v849 = vpack.c.b16 %v844, %v843
          %v850 = vpack.c.b16 %v846, %v845
          %v856 = vsel %vm669, %v827, 0
          %v859 = vsel %vm669, %v828, 0
          %v862 = vsel %vm669, %v829, 0
          %v865 = vsel %vm669, %v830, 0
          %867 = vmatprep.subr.bf16.mxu0 0
          %868 = vmatpush1.bf16.msra.mxu0 %v847
          %869 = vmatprep.subr.bf16.mxu0 0
          %870 = vmatpush1.bf16.msra.mxu0 %v848
          %871 = vmatprep.subr.bf16.mxu0 0
          %872 = vmatpush1.bf16.msra.mxu0 %v849
          %873 = vmatprep.subr.bf16.mxu0 0
          %874 = vmatpush1.bf16.msra.mxu0 %v850
          %875 = vmatprep.subr.bf16.mxu0 0
          %876 = vmatpush1.bf16.msra.mxu0 0
          %877 = vmatprep.subr.bf16.mxu0 0
          %878 = vmatpush1.bf16.msra.mxu0 0
          %879 = vmatprep.subr.bf16.mxu0 0
          %880 = vmatpush1.bf16.msra.mxu0 0
          %881 = vmatprep.subr.bf16.mxu0 0
          %882 = vmatpush1.bf16.msra.mxu0 0
          %883 = vmatprep.subr.bf16.mxu0 0
          %884 = vmatpush1.bf16.msra.mxu0 0
          %885 = vmatprep.subr.bf16.mxu0 0
          %886 = vmatpush1.bf16.msra.mxu0 0
          %887 = vmatprep.subr.bf16.mxu0 0
          %888 = vmatpush1.bf16.msra.mxu0 0
          %889 = vmatprep.subr.bf16.mxu0 0
          %890 = vmatpush1.bf16.msra.mxu0 0
          %891 = vmatprep.subr.bf16.mxu0 0
          %892 = vmatpush1.bf16.msra.mxu0 0
          %893 = vmatprep.subr.bf16.mxu0 0
          %894 = vmatpush1.bf16.msra.mxu0 0
          %895 = vmatprep.subr.bf16.mxu0 0
          %896 = vmatpush1.bf16.msra.mxu0 0
          %897 = vmatprep.subr.bf16.mxu0 0
          %898 = vmatpush1.bf16.msra.mxu0 0
          %899 = vmatprep.mubr.bf16.mxu0 0
          %900 = vmatmul.mubr.bf16.gmra.mrb[0].mxu0 %v856
          %v901 = vpop.f32.mrb[0].mxu0
          %v902 = vadd.f32 %v774, %v901
          %v903 = vpop.f32.mrb[0].mxu0
          %v904 = vpop.f32.mrb[0].mxu0
          %v905 = vadd.f32 %v779, %v904
          %v906 = vpop.f32.mrb[0].mxu0
          %907 = vmatprep.mubr.bf16.mxu0 0
          %908 = vmatmul.mubr.bf16.gmra.mrb[0].mxu0 %v859
          %v909 = vpop.f32.mrb[0].mxu0
          %v910 = vadd.f32 %v784, %v909
          %v911 = vpop.f32.mrb[0].mxu0
          %v912 = vpop.f32.mrb[0].mxu0
          %v913 = vadd.f32 %v789, %v912
          %v914 = vpop.f32.mrb[0].mxu0
          %915 = vmatprep.mubr.bf16.mxu0 0
          %916 = vmatmul.mubr.bf16.gmra.mrb[0].mxu0 %v862
          %v917 = vpop.f32.mrb[0].mxu0
          %v918 = vadd.f32 %v794, %v917
          %v919 = vpop.f32.mrb[0].mxu0
          %v920 = vpop.f32.mrb[0].mxu0
          %v921 = vadd.f32 %v799, %v920
          %v922 = vpop.f32.mrb[0].mxu0
          %923 = vmatprep.mubr.bf16.mxu0 0
          %924 = vmatmul.mubr.bf16.gmra.mrb[0].mxu0 %v865
          %v925 = vpop.f32.mrb[0].mxu0
          %v926 = vadd.f32 %v804, %v925
          %v927 = vpop.f32.mrb[0].mxu0
          %v928 = vpop.f32.mrb[0].mxu0
          %v929 = vadd.f32 %v809, %v928
          %v930 = vpop.f32.mrb[0].mxu0
          %931 = vdwg.mxu0
          %v932 = vpack.c.bf16 %v720, %v717
          %v933 = vpack.c.bf16 %v728, %v725
          %v934 = vpack.c.bf16 %v736, %v733
          %v935 = vpack.c.bf16 %v744, %v741
          %936 = vst [vmem:[#allocation2] sm:$0xff] %v932
          %937 = vst [vmem:[#allocation2 + $0x8] sm:$0xff] %v933
          %938 = vst [vmem:[#allocation2 + $0x10] sm:$0xff] %v934
          %939 = vst [vmem:[#allocation2 + $0x18] sm:$0xff] %v935
          %v940 = vpack.c.bf16 %v905, %v902
          %v941 = vpack.c.bf16 %v913, %v910
          %v942 = vpack.c.bf16 %v921, %v918
          %v943 = vpack.c.bf16 %v929, %v926
          %944 = vst [vmem:[#allocation3] sm:$0xff] %v940
          %945 = vst [vmem:[#allocation3 + $0x8] sm:$0xff] %v941
          %946 = vst [vmem:[#allocation3 + $0x10] sm:$0xff] %v942
          %947 = vst [vmem:[#allocation3 + $0x18] sm:$0xff] %v943
        $region80: #{tpu_custom_call.1} parent=71 // pred_fallthru
          _
        %v948 = vld [vmem:[%s486] sm:$0xff]
        %v949 = vld [vmem:[%s486 + $0x8] sm:$0xff]
        %v950 = vld [vmem:[%s486 + $0x10] sm:$0xff]
        %v951 = vld [vmem:[%s486 + $0x18] sm:$0xff]
        %v952 = vld [vmem:[%s486 + $0x20] sm:$0xff]
        %v953 = vld [vmem:[%s486 + $0x28] sm:$0xff]
        %v954 = vld [vmem:[%s486 + $0x30] sm:$0xff]
        %v955 = vld [vmem:[%s486 + $0x38] sm:$0xff]
        %v956 = vld [vmem:[%s3] sm:$0xf]
        %v957 = vld [vmem:[%s3 + $0x4] sm:$0xf]
        %v958 = vld [vmem:[%s3 + $0x8] sm:$0xf]
        %v959 = vld [vmem:[%s3 + $0xc] sm:$0xf]
        %v960 = vld [vmem:[%s3 + $0x10] sm:$0xf]
        %v961 = vld [vmem:[%s3 + $0x14] sm:$0xf]
        %v962 = vld [vmem:[%s3 + $0x18] sm:$0xf]
        %v963 = vld [vmem:[%s3 + $0x1c] sm:$0xf]
        %v964 = vpack.c.bf16 %v949, %v948
        %v965 = vpack.c.bf16 %v951, %v950
        %v966 = vpack.c.bf16 %v953, %v952
        %v967 = vpack.c.bf16 %v955, %v954
        %v968 = vld [vmem:[%s4] sm:$0xff]
        %v969 = vld [vmem:[%s4 + $0x8] sm:$0xff]
        %v970 = vld [vmem:[%s4 + $0x10] sm:$0xff]
        %v971 = vld [vmem:[%s4 + $0x18] sm:$0xff]
        %v972 = vld [vmem:[%s4 + $0x20] sm:$0xff]
        %v973 = vld [vmem:[%s4 + $0x28] sm:$0xff]
        %v974 = vld [vmem:[%s4 + $0x30] sm:$0xff]
        %v975 = vld [vmem:[%s4 + $0x38] sm:$0xff]
        %977 = vset.pattern.permute.xlu0 0
        %978 = vperm.xlu0 %977, %v968
        %v979 = vpop.permute.xlu0 %978
        %982 = vset.pattern.permute.xlu0 0
        %983 = vperm.xlu0 %982, %v969
        %v984 = vpop.permute.xlu0 %983
        %987 = vset.pattern.permute.xlu0 0
        %988 = vperm.xlu0 %987, %v970
        %v989 = vpop.permute.xlu0 %988
        %992 = vset.pattern.permute.xlu0 0
        %993 = vperm.xlu0 %992, %v971
        %v994 = vpop.permute.xlu0 %993
        %997 = vset.pattern.permute.xlu0 0
        %998 = vperm.xlu0 %997, %v972
        %v999 = vpop.permute.xlu0 %998
        %1002 = vset.pattern.permute.xlu0 0
        %1003 = vperm.xlu0 %1002, %v973
        %v1004 = vpop.permute.xlu0 %1003
        %1007 = vset.pattern.permute.xlu0 0
        %1008 = vperm.xlu0 %1007, %v974
        %v1009 = vpop.permute.xlu0 %1008
        %1012 = vset.pattern.permute.xlu0 0
        %1013 = vperm.xlu0 %1012, %v975
        %v1014 = vpop.permute.xlu0 %1013
        %v1024 = vunpack.c.l.b16 %v956
        %v1025 = vunpack.c.l.b16 %v957
        %v1026 = vunpack.c.l.b16 %v958
        %v1027 = vunpack.c.l.b16 %v959
        %v1028 = vunpack.c.l.b16 %v960
        %v1029 = vunpack.c.l.b16 %v961
        %v1030 = vunpack.c.l.b16 %v962
        %v1031 = vunpack.c.l.b16 %v963
        %v1032 = vpack.c.b16 %v1025, %v1024
        %v1033 = vpack.c.b16 %v1027, %v1026
        %v1034 = vpack.c.b16 %v1029, %v1028
        %v1035 = vpack.c.b16 %v1031, %v1030
        %vm1036 = vcmask 523264
        %v1038 = vsel %vm1036, %v1032, 0
        %v1041 = vsel %vm1036, %v1033, 0
        %v1044 = vsel %vm1036, %v1034, 0
        %v1047 = vsel %vm1036, %v1035, 0
        %1049 = vmatprep.subr.bf16.mxu0 0
        %1050 = vmatpush1.bf16.msra.mxu0 %v964
        %1051 = vmatprep.subr.bf16.mxu0 0
        %1052 = vmatpush1.bf16.msra.mxu0 %v965
        %1053 = vmatprep.subr.bf16.mxu0 0
        %1054 = vmatpush1.bf16.msra.mxu0 %v966
        %1055 = vmatprep.subr.bf16.mxu0 0
        %1056 = vmatpush1.bf16.msra.mxu0 %v967
        %1057 = vmatprep.subr.bf16.mxu0 0
        %1058 = vmatpush1.bf16.msra.mxu0 0
        %1059 = vmatprep.subr.bf16.mxu0 0
        %1060 = vmatpush1.bf16.msra.mxu0 0
        %1061 = vmatprep.subr.bf16.mxu0 0
        %1062 = vmatpush1.bf16.msra.mxu0 0
        %1063 = vmatprep.subr.bf16.mxu0 0
        %1064 = vmatpush1.bf16.msra.mxu0 0
        %1065 = vmatprep.subr.bf16.mxu0 0
        %1066 = vmatpush1.bf16.msra.mxu0 0
        %1067 = vmatprep.subr.bf16.mxu0 0
        %1068 = vmatpush1.bf16.msra.mxu0 0
        %1069 = vmatprep.subr.bf16.mxu0 0
        %1070 = vmatpush1.bf16.msra.mxu0 0
        %1071 = vmatprep.subr.bf16.mxu0 0
        %1072 = vmatpush1.bf16.msra.mxu0 0
        %1073 = vmatprep.subr.bf16.mxu0 0
        %1074 = vmatpush1.bf16.msra.mxu0 0
        %1075 = vmatprep.subr.bf16.mxu0 0
        %1076 = vmatpush1.bf16.msra.mxu0 0
        %1077 = vmatprep.subr.bf16.mxu0 0
        %1078 = vmatpush1.bf16.msra.mxu0 0
        %1079 = vmatprep.subr.bf16.mxu0 0
        %1080 = vmatpush1.bf16.msra.mxu0 0
        %1081 = vmatprep.mubr.bf16.mxu0 0
        %1082 = vmatmul.mubr.bf16.gmra.mrb[0].mxu0 %v1038
        %v1083 = vpop.f32.mrb[0].mxu0
        %v1084 = vadd.f32 %v979, %v1083
        %v1085 = vpop.f32.mrb[0].mxu0
        %v1086 = vpop.f32.mrb[0].mxu0
        %v1087 = vadd.f32 %v984, %v1086
        %v1088 = vpop.f32.mrb[0].mxu0
        %1089 = vmatprep.mubr.bf16.mxu0 0
        %1090 = vmatmul.mubr.bf16.gmra.mrb[0].mxu0 %v1041
        %v1091 = vpop.f32.mrb[0].mxu0
        %v1092 = vadd.f32 %v989, %v1091
        %v1093 = vpop.f32.mrb[0].mxu0
        %v1094 = vpop.f32.mrb[0].mxu0
        %v1095 = vadd.f32 %v994, %v1094
        %v1096 = vpop.f32.mrb[0].mxu0
        %1097 = vmatprep.mubr.bf16.mxu0 0
        %1098 = vmatmul.mubr.bf16.gmra.mrb[0].mxu0 %v1044
        %v1099 = vpop.f32.mrb[0].mxu0
        %v1100 = vadd.f32 %v999, %v1099
        %v1101 = vpop.f32.mrb[0].mxu0
        %v1102 = vpop.f32.mrb[0].mxu0
        %v1103 = vadd.f32 %v1004, %v1102
        %v1104 = vpop.f32.mrb[0].mxu0
        %1105 = vmatprep.mubr.bf16.mxu0 0
        %1106 = vmatmul.mubr.bf16.gmra.mrb[0].mxu0 %v1047
        %v1107 = vpop.f32.mrb[0].mxu0
        %v1108 = vadd.f32 %v1009, %v1107
        %v1109 = vpop.f32.mrb[0].mxu0
        %v1110 = vpop.f32.mrb[0].mxu0
        %v1111 = vadd.f32 %v1014, %v1110
        %v1112 = vpop.f32.mrb[0].mxu0
        %1113 = vdwg.mxu0
        %v1114 = vpack.c.bf16 %v1087, %v1084
        %v1115 = vpack.c.bf16 %v1095, %v1092
        %v1116 = vpack.c.bf16 %v1103, %v1100
        %v1117 = vpack.c.bf16 %v1111, %v1108
        %v1118 = vld [vmem:[#allocation2] sm:$0xff]
        %v1119 = vld [vmem:[#allocation2 + $0x8] sm:$0xff]
        %v1120 = vld [vmem:[#allocation2 + $0x10] sm:$0xff]
        %v1121 = vld [vmem:[#allocation2 + $0x18] sm:$0xff]
        %v1122 = vld [vmem:[#allocation3] sm:$0xff]
        %v1123 = vld [vmem:[#allocation3 + $0x8] sm:$0xff]
        %v1124 = vld [vmem:[#allocation3 + $0x10] sm:$0xff]
        %v1125 = vld [vmem:[#allocation3 + $0x18] sm:$0xff]
        %1126 = vxpose.xlu0.c.b16.start [1/8] %v1118, 128
        %1127 = vxpose.xlu0.c.b16.cont [2/8] 0, 128
        %1128 = vxpose.xlu0.c.b16.cont [3/8] 0, 128
        %1129 = vxpose.xlu0.c.b16.cont [4/8] 0, 128
        %1130 = vxpose.xlu0.c.b16.cont [5/8] 0, 128
        %1131 = vxpose.xlu0.c.b16.cont [6/8] 0, 128
        %1132 = vxpose.xlu0.c.b16.cont [7/8] 0, 128
        %1133 = vxpose.xlu0.c.b16.end [8/8] 0, 128
        %v1134 = vpop.trf.xlu0
        %v1135 = vpop.trf.xlu0
        %v1136 = vpop.trf.xlu0
        %v1137 = vpop.trf.xlu0
        %v1138 = vpop.trf.xlu0
        %v1139 = vpop.trf.xlu0
        %v1140 = vpop.trf.xlu0
        %v1141 = vpop.trf.xlu0
        %vm1142 = vcmask 130048
        %v1144 = vsel %vm1142, %v1134, 0
        %v1147 = vsel %vm1142, %v1135, 0
        %v1150 = vsel %vm1142, %v1136, 0
        %v1153 = vsel %vm1142, %v1137, 0
        %v1156 = vsel %vm1142, %v1138, 0
        %v1159 = vsel %vm1142, %v1139, 0
        %v1162 = vsel %vm1142, %v1140, 0
        %v1165 = vsel %vm1142, %v1141, 0
        %1167 = vmatprep.subr.bf16.mxu0 0
        %1168 = vmatpush1.bf16.msra.mxu0 %v1114
        %1169 = vmatprep.subr.bf16.mxu0 0
        %1170 = vmatpush1.bf16.msra.mxu0 0
        %1171 = vmatprep.subr.bf16.mxu0 0
        %1172 = vmatpush1.bf16.msra.mxu0 0
        %1173 = vmatprep.subr.bf16.mxu0 0
        %1174 = vmatpush1.bf16.msra.mxu0 0
        %1175 = vmatprep.subr.bf16.mxu0 0
        %1176 = vmatpush1.bf16.msra.mxu0 0
        %1177 = vmatprep.subr.bf16.mxu0 0
        %1178 = vmatpush1.bf16.msra.mxu0 0
        %1179 = vmatprep.subr.bf16.mxu0 0
        %1180 = vmatpush1.bf16.msra.mxu0 0
        %1181 = vmatprep.subr.bf16.mxu0 0
        %1182 = vmatpush1.bf16.msra.mxu0 0
        %1183 = vmatprep.subr.bf16.mxu0 0
        %1184 = vmatpush1.bf16.msra.mxu0 0
        %1185 = vmatprep.subr.bf16.mxu0 0
        %1186 = vmatpush1.bf16.msra.mxu0 0
        %1187 = vmatprep.subr.bf16.mxu0 0
        %1188 = vmatpush1.bf16.msra.mxu0 0
        %1189 = vmatprep.subr.bf16.mxu0 0
        %1190 = vmatpush1.bf16.msra.mxu0 0
        %1191 = vmatprep.subr.bf16.mxu0 0
        %1192 = vmatpush1.bf16.msra.mxu0 0
        %1193 = vmatprep.subr.bf16.mxu0 0
        %1194 = vmatpush1.bf16.msra.mxu0 0
        %1195 = vmatprep.subr.bf16.mxu0 0
        %1196 = vmatpush1.bf16.msra.mxu0 0
        %1197 = vmatprep.subr.bf16.mxu0 0
        %1198 = vmatpush1.bf16.msra.mxu0 0
        %1199 = vmatprep.mubr.bf16.mxu0 0
        %1200 = vmatmul.mubr.bf16.gmra.mrb[0].mxu0 %v1144
        %v1201 = vpop.f32.mrb[0].mxu0
        %v1202 = vadd.f32 0.0, %v1201
        %v1203 = vpop.f32.mrb[0].mxu0
        %v1204 = vpop.f32.mrb[0].mxu0
        %v1205 = vadd.f32 0.0, %v1204
        %v1206 = vpop.f32.mrb[0].mxu0
        %1207 = vmatprep.mubr.bf16.mxu0 0
        %1208 = vmatmul.mubr.bf16.gmra.mrb[0].mxu0 %v1147
        %v1209 = vpop.f32.mrb[0].mxu0
        %v1210 = vadd.f32 0.0, %v1209
        %v1211 = vpop.f32.mrb[0].mxu0
        %v1212 = vpop.f32.mrb[0].mxu0
        %v1213 = vadd.f32 0.0, %v1212
        %v1214 = vpop.f32.mrb[0].mxu0
        %1215 = vmatprep.mubr.bf16.mxu0 0
        %1216 = vmatmul.mubr.bf16.gmra.mrb[0].mxu0 %v1150
        %v1217 = vpop.f32.mrb[0].mxu0
        %v1218 = vadd.f32 0.0, %v1217
        %v1219 = vpop.f32.mrb[0].mxu0
        %v1220 = vpop.f32.mrb[0].mxu0
        %v1221 = vadd.f32 0.0, %v1220
        %v1222 = vpop.f32.mrb[0].mxu0
        %1223 = vmatprep.mubr.bf16.mxu0 0
        %1224 = vmatmul.mubr.bf16.gmra.mrb[0].mxu0 %v1153
        %v1225 = vpop.f32.mrb[0].mxu0
        %v1226 = vadd.f32 0.0, %v1225
        %v1227 = vpop.f32.mrb[0].mxu0
        %v1228 = vpop.f32.mrb[0].mxu0
        %v1229 = vadd.f32 0.0, %v1228
        %v1230 = vpop.f32.mrb[0].mxu0
        %1231 = vmatprep.mubr.bf16.mxu0 0
        %1232 = vmatmul.mubr.bf16.gmra.mrb[0].mxu0 %v1156
        %v1233 = vpop.f32.mrb[0].mxu0
        %v1234 = vadd.f32 0.0, %v1233
        %v1235 = vpop.f32.mrb[0].mxu0
        %v1236 = vpop.f32.mrb[0].mxu0
        %v1237 = vadd.f32 0.0, %v1236
        %v1238 = vpop.f32.mrb[0].mxu0
        %1239 = vmatprep.mubr.bf16.mxu0 0
        %1240 = vmatmul.mubr.bf16.gmra.mrb[0].mxu0 %v1159
        %v1241 = vpop.f32.mrb[0].mxu0
        %v1242 = vadd.f32 0.0, %v1241
        %v1243 = vpop.f32.mrb[0].mxu0
        %v1244 = vpop.f32.mrb[0].mxu0
        %v1245 = vadd.f32 0.0, %v1244
        %v1246 = vpop.f32.mrb[0].mxu0
        %1247 = vmatprep.mubr.bf16.mxu0 0
        %1248 = vmatmul.mubr.bf16.gmra.mrb[0].mxu0 %v1162
        %v1249 = vpop.f32.mrb[0].mxu0
        %v1250 = vadd.f32 0.0, %v1249
        %v1251 = vpop.f32.mrb[0].mxu0
        %v1252 = vpop.f32.mrb[0].mxu0
        %v1253 = vadd.f32 0.0, %v1252
        %v1254 = vpop.f32.mrb[0].mxu0
        %1255 = vmatprep.mubr.bf16.mxu0 0
        %1256 = vmatmul.mubr.bf16.gmra.mrb[0].mxu0 %v1165
        %v1257 = vpop.f32.mrb[0].mxu0
        %v1258 = vadd.f32 0.0, %v1257
        %v1259 = vpop.f32.mrb[0].mxu0
        %v1260 = vpop.f32.mrb[0].mxu0
        %v1261 = vadd.f32 0.0, %v1260
        %v1262 = vpop.f32.mrb[0].mxu0
        %1263 = vdwg.mxu0
        %1264 = vxpose.xlu0.c.b16.start [1/8] %v1119, 128
        %1265 = vxpose.xlu0.c.b16.cont [2/8] 0, 128
        %1266 = vxpose.xlu0.c.b16.cont [3/8] 0, 128
        %1267 = vxpose.xlu0.c.b16.cont [4/8] 0, 128
        %1268 = vxpose.xlu0.c.b16.cont [5/8] 0, 128
        %1269 = vxpose.xlu0.c.b16.cont [6/8] 0, 128
        %1270 = vxpose.xlu0.c.b16.cont [7/8] 0, 128
        %1271 = vxpose.xlu0.c.b16.end [8/8] 0, 128
        %v1272 = vpop.trf.xlu0
        %v1273 = vpop.trf.xlu0
        %v1274 = vpop.trf.xlu0
        %v1275 = vpop.trf.xlu0
        %v1276 = vpop.trf.xlu0
        %v1277 = vpop.trf.xlu0
        %v1278 = vpop.trf.xlu0
        %v1279 = vpop.trf.xlu0
        %v1281 = vsel %vm1142, %v1272, 0
        %v1284 = vsel %vm1142, %v1273, 0
        %v1287 = vsel %vm1142, %v1274, 0
        %v1290 = vsel %vm1142, %v1275, 0
        %v1293 = vsel %vm1142, %v1276, 0
        %v1296 = vsel %vm1142, %v1277, 0
        %v1299 = vsel %vm1142, %v1278, 0
        %v1302 = vsel %vm1142, %v1279, 0
        %1304 = vmatprep.subr.bf16.mxu0 0
        %1305 = vmatpush1.bf16.msra.mxu0 %v1115
        %1306 = vmatprep.subr.bf16.mxu0 0
        %1307 = vmatpush1.bf16.msra.mxu0 0
        %1308 = vmatprep.subr.bf16.mxu0 0
        %1309 = vmatpush1.bf16.msra.mxu0 0
        %1310 = vmatprep.subr.bf16.mxu0 0
        %1311 = vmatpush1.bf16.msra.mxu0 0
        %1312 = vmatprep.subr.bf16.mxu0 0
        %1313 = vmatpush1.bf16.msra.mxu0 0
        %1314 = vmatprep.subr.bf16.mxu0 0
        %1315 = vmatpush1.bf16.msra.mxu0 0
        %1316 = vmatprep.subr.bf16.mxu0 0
        %1317 = vmatpush1.bf16.msra.mxu0 0
        %1318 = vmatprep.subr.bf16.mxu0 0
        %1319 = vmatpush1.bf16.msra.mxu0 0
        %1320 = vmatprep.subr.bf16.mxu0 0
        %1321 = vmatpush1.bf16.msra.mxu0 0
        %1322 = vmatprep.subr.bf16.mxu0 0
        %1323 = vmatpush1.bf16.msra.mxu0 0
        %1324 = vmatprep.subr.bf16.mxu0 0
        %1325 = vmatpush1.bf16.msra.mxu0 0
        %1326 = vmatprep.subr.bf16.mxu0 0
        %1327 = vmatpush1.bf16.msra.mxu0 0
        %1328 = vmatprep.subr.bf16.mxu0 0
        %1329 = vmatpush1.bf16.msra.mxu0 0
        %1330 = vmatprep.subr.bf16.mxu0 0
        %1331 = vmatpush1.bf16.msra.mxu0 0
        %1332 = vmatprep.subr.bf16.mxu0 0
        %1333 = vmatpush1.bf16.msra.mxu0 0
        %1334 = vmatprep.subr.bf16.mxu0 0
        %1335 = vmatpush1.bf16.msra.mxu0 0
        %1336 = vmatprep.mubr.bf16.mxu0 0
        %1337 = vmatmul.mubr.bf16.gmra.mrb[0].mxu0 %v1281
        %v1338 = vpop.f32.mrb[0].mxu0
        %v1339 = vadd.f32 0.0, %v1338
        %v1340 = vpop.f32.mrb[0].mxu0
        %v1341 = vpop.f32.mrb[0].mxu0
        %v1342 = vadd.f32 0.0, %v1341
        %v1343 = vpop.f32.mrb[0].mxu0
        %1344 = vmatprep.mubr.bf16.mxu0 0
        %1345 = vmatmul.mubr.bf16.gmra.mrb[0].mxu0 %v1284
        %v1346 = vpop.f32.mrb[0].mxu0
        %v1347 = vadd.f32 0.0, %v1346
        %v1348 = vpop.f32.mrb[0].mxu0
        %v1349 = vpop.f32.mrb[0].mxu0
        %v1350 = vadd.f32 0.0, %v1349
        %v1351 = vpop.f32.mrb[0].mxu0
        %1352 = vmatprep.mubr.bf16.mxu0 0
        %1353 = vmatmul.mubr.bf16.gmra.mrb[0].mxu0 %v1287
        %v1354 = vpop.f32.mrb[0].mxu0
        %v1355 = vadd.f32 0.0, %v1354
        %v1356 = vpop.f32.mrb[0].mxu0
        %v1357 = vpop.f32.mrb[0].mxu0
        %v1358 = vadd.f32 0.0, %v1357
        %v1359 = vpop.f32.mrb[0].mxu0
        %1360 = vmatprep.mubr.bf16.mxu0 0
        %1361 = vmatmul.mubr.bf16.gmra.mrb[0].mxu0 %v1290
        %v1362 = vpop.f32.mrb[0].mxu0
        %v1363 = vadd.f32 0.0, %v1362
        %v1364 = vpop.f32.mrb[0].mxu0
        %v1365 = vpop.f32.mrb[0].mxu0
        %v1366 = vadd.f32 0.0, %v1365
        %v1367 = vpop.f32.mrb[0].mxu0
        %1368 = vmatprep.mubr.bf16.mxu0 0
        %1369 = vmatmul.mubr.bf16.gmra.mrb[0].mxu0 %v1293
        %v1370 = vpop.f32.mrb[0].mxu0
        %v1371 = vadd.f32 0.0, %v1370
        %v1372 = vpop.f32.mrb[0].mxu0
        %v1373 = vpop.f32.mrb[0].mxu0
        %v1374 = vadd.f32 0.0, %v1373
        %v1375 = vpop.f32.mrb[0].mxu0
        %1376 = vmatprep.mubr.bf16.mxu0 0
        %1377 = vmatmul.mubr.bf16.gmra.mrb[0].mxu0 %v1296
        %v1378 = vpop.f32.mrb[0].mxu0
        %v1379 = vadd.f32 0.0, %v1378
        %v1380 = vpop.f32.mrb[0].mxu0
        %v1381 = vpop.f32.mrb[0].mxu0
        %v1382 = vadd.f32 0.0, %v1381
        %v1383 = vpop.f32.mrb[0].mxu0
        %1384 = vmatprep.mubr.bf16.mxu0 0
        %1385 = vmatmul.mubr.bf16.gmra.mrb[0].mxu0 %v1299
        %v1386 = vpop.f32.mrb[0].mxu0
        %v1387 = vadd.f32 0.0, %v1386
        %v1388 = vpop.f32.mrb[0].mxu0
        %v1389 = vpop.f32.mrb[0].mxu0
        %v1390 = vadd.f32 0.0, %v1389
        %v1391 = vpop.f32.mrb[0].mxu0
        %1392 = vmatprep.mubr.bf16.mxu0 0
        %1393 = vmatmul.mubr.bf16.gmra.mrb[0].mxu0 %v1302
        %v1394 = vpop.f32.mrb[0].mxu0
        %v1395 = vadd.f32 0.0, %v1394
        %v1396 = vpop.f32.mrb[0].mxu0
        %v1397 = vpop.f32.mrb[0].mxu0
        %v1398 = vadd.f32 0.0, %v1397
        %v1399 = vpop.f32.mrb[0].mxu0
        %1400 = vdwg.mxu0
        %1401 = vxpose.xlu0.c.b16.start [1/8] %v1120, 128
        %1402 = vxpose.xlu0.c.b16.cont [2/8] 0, 128
        %1403 = vxpose.xlu0.c.b16.cont [3/8] 0, 128
        %1404 = vxpose.xlu0.c.b16.cont [4/8] 0, 128
        %1405 = vxpose.xlu0.c.b16.cont [5/8] 0, 128
        %1406 = vxpose.xlu0.c.b16.cont [6/8] 0, 128
        %1407 = vxpose.xlu0.c.b16.cont [7/8] 0, 128
        %1408 = vxpose.xlu0.c.b16.end [8/8] 0, 128
        %v1409 = vpop.trf.xlu0
        %v1410 = vpop.trf.xlu0
        %v1411 = vpop.trf.xlu0
        %v1412 = vpop.trf.xlu0
        %v1413 = vpop.trf.xlu0
        %v1414 = vpop.trf.xlu0
        %v1415 = vpop.trf.xlu0
        %v1416 = vpop.trf.xlu0
        %v1418 = vsel %vm1142, %v1409, 0
        %v1421 = vsel %vm1142, %v1410, 0
        %v1424 = vsel %vm1142, %v1411, 0
        %v1427 = vsel %vm1142, %v1412, 0
        %v1430 = vsel %vm1142, %v1413, 0
        %v1433 = vsel %vm1142, %v1414, 0
        %v1436 = vsel %vm1142, %v1415, 0
        %v1439 = vsel %vm1142, %v1416, 0
        %1441 = vmatprep.subr.bf16.mxu0 0
        %1442 = vmatpush1.bf16.msra.mxu0 %v1116
        %1443 = vmatprep.subr.bf16.mxu0 0
        %1444 = vmatpush1.bf16.msra.mxu0 0
        %1445 = vmatprep.subr.bf16.mxu0 0
        %1446 = vmatpush1.bf16.msra.mxu0 0
        %1447 = vmatprep.subr.bf16.mxu0 0
        %1448 = vmatpush1.bf16.msra.mxu0 0
        %1449 = vmatprep.subr.bf16.mxu0 0
        %1450 = vmatpush1.bf16.msra.mxu0 0
        %1451 = vmatprep.subr.bf16.mxu0 0
        %1452 = vmatpush1.bf16.msra.mxu0 0
        %1453 = vmatprep.subr.bf16.mxu0 0
        %1454 = vmatpush1.bf16.msra.mxu0 0
        %1455 = vmatprep.subr.bf16.mxu0 0
        %1456 = vmatpush1.bf16.msra.mxu0 0
        %1457 = vmatprep.subr.bf16.mxu0 0
        %1458 = vmatpush1.bf16.msra.mxu0 0
        %1459 = vmatprep.subr.bf16.mxu0 0
        %1460 = vmatpush1.bf16.msra.mxu0 0
        %1461 = vmatprep.subr.bf16.mxu0 0
        %1462 = vmatpush1.bf16.msra.mxu0 0
        %1463 = vmatprep.subr.bf16.mxu0 0
        %1464 = vmatpush1.bf16.msra.mxu0 0
        %1465 = vmatprep.subr.bf16.mxu0 0
        %1466 = vmatpush1.bf16.msra.mxu0 0
        %1467 = vmatprep.subr.bf16.mxu0 0
        %1468 = vmatpush1.bf16.msra.mxu0 0
        %1469 = vmatprep.subr.bf16.mxu0 0
        %1470 = vmatpush1.bf16.msra.mxu0 0
        %1471 = vmatprep.subr.bf16.mxu0 0
        %1472 = vmatpush1.bf16.msra.mxu0 0
        %1473 = vmatprep.mubr.bf16.mxu0 0
        %1474 = vmatmul.mubr.bf16.gmra.mrb[0].mxu0 %v1418
        %v1475 = vpop.f32.mrb[0].mxu0
        %v1476 = vadd.f32 0.0, %v1475
        %v1477 = vpop.f32.mrb[0].mxu0
        %v1478 = vpop.f32.mrb[0].mxu0
        %v1479 = vadd.f32 0.0, %v1478
        %v1480 = vpop.f32.mrb[0].mxu0
        %1481 = vmatprep.mubr.bf16.mxu0 0
        %1482 = vmatmul.mubr.bf16.gmra.mrb[0].mxu0 %v1421
        %v1483 = vpop.f32.mrb[0].mxu0
        %v1484 = vadd.f32 0.0, %v1483
        %v1485 = vpop.f32.mrb[0].mxu0
        %v1486 = vpop.f32.mrb[0].mxu0
        %v1487 = vadd.f32 0.0, %v1486
        %v1488 = vpop.f32.mrb[0].mxu0
        %1489 = vmatprep.mubr.bf16.mxu0 0
        %1490 = vmatmul.mubr.bf16.gmra.mrb[0].mxu0 %v1424
        %v1491 = vpop.f32.mrb[0].mxu0
        %v1492 = vadd.f32 0.0, %v1491
        %v1493 = vpop.f32.mrb[0].mxu0
        %v1494 = vpop.f32.mrb[0].mxu0
        %v1495 = vadd.f32 0.0, %v1494
        %v1496 = vpop.f32.mrb[0].mxu0
        %1497 = vmatprep.mubr.bf16.mxu0 0
        %1498 = vmatmul.mubr.bf16.gmra.mrb[0].mxu0 %v1427
        %v1499 = vpop.f32.mrb[0].mxu0
        %v1500 = vadd.f32 0.0, %v1499
        %v1501 = vpop.f32.mrb[0].mxu0
        %v1502 = vpop.f32.mrb[0].mxu0
        %v1503 = vadd.f32 0.0, %v1502
        %v1504 = vpop.f32.mrb[0].mxu0
        %1505 = vmatprep.mubr.bf16.mxu0 0
        %1506 = vmatmul.mubr.bf16.gmra.mrb[0].mxu0 %v1430
        %v1507 = vpop.f32.mrb[0].mxu0
        %v1508 = vadd.f32 0.0, %v1507
        %v1509 = vpop.f32.mrb[0].mxu0
        %v1510 = vpop.f32.mrb[0].mxu0
        %v1511 = vadd.f32 0.0, %v1510
        %v1512 = vpop.f32.mrb[0].mxu0
        %1513 = vmatprep.mubr.bf16.mxu0 0
        %1514 = vmatmul.mubr.bf16.gmra.mrb[0].mxu0 %v1433
        %v1515 = vpop.f32.mrb[0].mxu0
        %v1516 = vadd.f32 0.0, %v1515
        %v1517 = vpop.f32.mrb[0].mxu0
        %v1518 = vpop.f32.mrb[0].mxu0
        %v1519 = vadd.f32 0.0, %v1518
        %v1520 = vpop.f32.mrb[0].mxu0
        %1521 = vmatprep.mubr.bf16.mxu0 0
        %1522 = vmatmul.mubr.bf16.gmra.mrb[0].mxu0 %v1436
        %v1523 = vpop.f32.mrb[0].mxu0
        %v1524 = vadd.f32 0.0, %v1523
        %v1525 = vpop.f32.mrb[0].mxu0
        %v1526 = vpop.f32.mrb[0].mxu0
        %v1527 = vadd.f32 0.0, %v1526
        %v1528 = vpop.f32.mrb[0].mxu0
        %1529 = vmatprep.mubr.bf16.mxu0 0
        %1530 = vmatmul.mubr.bf16.gmra.mrb[0].mxu0 %v1439
        %v1531 = vpop.f32.mrb[0].mxu0
        %v1532 = vadd.f32 0.0, %v1531
        %v1533 = vpop.f32.mrb[0].mxu0
        %v1534 = vpop.f32.mrb[0].mxu0
        %v1535 = vadd.f32 0.0, %v1534
        %v1536 = vpop.f32.mrb[0].mxu0
        %1537 = vdwg.mxu0
        %1538 = vxpose.xlu0.c.b16.start [1/8] %v1121, 128
        %1539 = vxpose.xlu0.c.b16.cont [2/8] 0, 128
        %1540 = vxpose.xlu0.c.b16.cont [3/8] 0, 128
        %1541 = vxpose.xlu0.c.b16.cont [4/8] 0, 128
        %1542 = vxpose.xlu0.c.b16.cont [5/8] 0, 128
        %1543 = vxpose.xlu0.c.b16.cont [6/8] 0, 128
        %1544 = vxpose.xlu0.c.b16.cont [7/8] 0, 128
        %1545 = vxpose.xlu0.c.b16.end [8/8] 0, 128
        %v1546 = vpop.trf.xlu0
        %v1547 = vpop.trf.xlu0
        %v1548 = vpop.trf.xlu0
        %v1549 = vpop.trf.xlu0
        %v1550 = vpop.trf.xlu0
        %v1551 = vpop.trf.xlu0
        %v1552 = vpop.trf.xlu0
        %v1553 = vpop.trf.xlu0
        %v1555 = vsel %vm1142, %v1546, 0
        %v1558 = vsel %vm1142, %v1547, 0
        %v1561 = vsel %vm1142, %v1548, 0
        %v1564 = vsel %vm1142, %v1549, 0
        %v1567 = vsel %vm1142, %v1550, 0
        %v1570 = vsel %vm1142, %v1551, 0
        %v1573 = vsel %vm1142, %v1552, 0
        %v1576 = vsel %vm1142, %v1553, 0
        %1578 = vmatprep.subr.bf16.mxu0 0
        %1579 = vmatpush1.bf16.msra.mxu0 %v1117
        %1580 = vmatprep.subr.bf16.mxu0 0
        %1581 = vmatpush1.bf16.msra.mxu0 0
        %1582 = vmatprep.subr.bf16.mxu0 0
        %1583 = vmatpush1.bf16.msra.mxu0 0
        %1584 = vmatprep.subr.bf16.mxu0 0
        %1585 = vmatpush1.bf16.msra.mxu0 0
        %1586 = vmatprep.subr.bf16.mxu0 0
        %1587 = vmatpush1.bf16.msra.mxu0 0
        %1588 = vmatprep.subr.bf16.mxu0 0
        %1589 = vmatpush1.bf16.msra.mxu0 0
        %1590 = vmatprep.subr.bf16.mxu0 0
        %1591 = vmatpush1.bf16.msra.mxu0 0
        %1592 = vmatprep.subr.bf16.mxu0 0
        %1593 = vmatpush1.bf16.msra.mxu0 0
        %1594 = vmatprep.subr.bf16.mxu0 0
        %1595 = vmatpush1.bf16.msra.mxu0 0
        %1596 = vmatprep.subr.bf16.mxu0 0
        %1597 = vmatpush1.bf16.msra.mxu0 0
        %1598 = vmatprep.subr.bf16.mxu0 0
        %1599 = vmatpush1.bf16.msra.mxu0 0
        %1600 = vmatprep.subr.bf16.mxu0 0
        %1601 = vmatpush1.bf16.msra.mxu0 0
        %1602 = vmatprep.subr.bf16.mxu0 0
        %1603 = vmatpush1.bf16.msra.mxu0 0
        %1604 = vmatprep.subr.bf16.mxu0 0
        %1605 = vmatpush1.bf16.msra.mxu0 0
        %1606 = vmatprep.subr.bf16.mxu0 0
        %1607 = vmatpush1.bf16.msra.mxu0 0
        %1608 = vmatprep.subr.bf16.mxu0 0
        %1609 = vmatpush1.bf16.msra.mxu0 0
        %1610 = vmatprep.mubr.bf16.mxu0 0
        %1611 = vmatmul.mubr.bf16.gmra.mrb[0].mxu0 %v1555
        %v1612 = vpop.f32.mrb[0].mxu0
        %v1613 = vadd.f32 0.0, %v1612
        %v1614 = vpop.f32.mrb[0].mxu0
        %v1615 = vpop.f32.mrb[0].mxu0
        %v1616 = vadd.f32 0.0, %v1615
        %v1617 = vpop.f32.mrb[0].mxu0
        %1618 = vmatprep.mubr.bf16.mxu0 0
        %1619 = vmatmul.mubr.bf16.gmra.mrb[0].mxu0 %v1558
        %v1620 = vpop.f32.mrb[0].mxu0
        %v1621 = vadd.f32 0.0, %v1620
        %v1622 = vpop.f32.mrb[0].mxu0
        %v1623 = vpop.f32.mrb[0].mxu0
        %v1624 = vadd.f32 0.0, %v1623
        %v1625 = vpop.f32.mrb[0].mxu0
        %1626 = vmatprep.mubr.bf16.mxu0 0
        %1627 = vmatmul.mubr.bf16.gmra.mrb[0].mxu0 %v1561
        %v1628 = vpop.f32.mrb[0].mxu0
        %v1629 = vadd.f32 0.0, %v1628
        %v1630 = vpop.f32.mrb[0].mxu0
        %v1631 = vpop.f32.mrb[0].mxu0
        %v1632 = vadd.f32 0.0, %v1631
        %v1633 = vpop.f32.mrb[0].mxu0
        %1634 = vmatprep.mubr.bf16.mxu0 0
        %1635 = vmatmul.mubr.bf16.gmra.mrb[0].mxu0 %v1564
        %v1636 = vpop.f32.mrb[0].mxu0
        %v1637 = vadd.f32 0.0, %v1636
        %v1638 = vpop.f32.mrb[0].mxu0
        %v1639 = vpop.f32.mrb[0].mxu0
        %v1640 = vadd.f32 0.0, %v1639
        %v1641 = vpop.f32.mrb[0].mxu0
        %1642 = vmatprep.mubr.bf16.mxu0 0
        %1643 = vmatmul.mubr.bf16.gmra.mrb[0].mxu0 %v1567
        %v1644 = vpop.f32.mrb[0].mxu0
        %v1645 = vadd.f32 0.0, %v1644
        %v1646 = vpop.f32.mrb[0].mxu0
        %v1647 = vpop.f32.mrb[0].mxu0
        %v1648 = vadd.f32 0.0, %v1647
        %v1649 = vpop.f32.mrb[0].mxu0
        %1650 = vmatprep.mubr.bf16.mxu0 0
        %1651 = vmatmul.mubr.bf16.gmra.mrb[0].mxu0 %v1570
        %v1652 = vpop.f32.mrb[0].mxu0
        %v1653 = vadd.f32 0.0, %v1652
        %v1654 = vpop.f32.mrb[0].mxu0
        %v1655 = vpop.f32.mrb[0].mxu0
        %v1656 = vadd.f32 0.0, %v1655
        %v1657 = vpop.f32.mrb[0].mxu0
        %1658 = vmatprep.mubr.bf16.mxu0 0
        %1659 = vmatmul.mubr.bf16.gmra.mrb[0].mxu0 %v1573
        %v1660 = vpop.f32.mrb[0].mxu0
        %v1661 = vadd.f32 0.0, %v1660
        %v1662 = vpop.f32.mrb[0].mxu0
        %v1663 = vpop.f32.mrb[0].mxu0
        %v1664 = vadd.f32 0.0, %v1663
        %v1665 = vpop.f32.mrb[0].mxu0
        %1666 = vmatprep.mubr.bf16.mxu0 0
        %1667 = vmatmul.mubr.bf16.gmra.mrb[0].mxu0 %v1576
        %v1668 = vpop.f32.mrb[0].mxu0
        %v1669 = vadd.f32 0.0, %v1668
        %v1670 = vpop.f32.mrb[0].mxu0
        %v1671 = vpop.f32.mrb[0].mxu0
        %v1672 = vadd.f32 0.0, %v1671
        %v1673 = vpop.f32.mrb[0].mxu0
        %1674 = vdwg.mxu0
        %v1675 = vmax.f32 %v1202, %v1205
        %v1676 = vmax.f32 %v1675, %v1210
        %v1677 = vmax.f32 %v1676, %v1213
        %v1678 = vmax.f32 %v1677, %v1218
        %v1679 = vmax.f32 %v1678, %v1221
        %v1680 = vmax.f32 %v1679, %v1226
        %v1681 = vmax.f32 %v1680, %v1229
        %v1682 = vmax.f32 %v1681, %v1234
        %v1683 = vmax.f32 %v1682, %v1237
        %v1684 = vmax.f32 %v1683, %v1242
        %v1685 = vmax.f32 %v1684, %v1245
        %v1686 = vmax.f32 %v1685, %v1250
        %v1687 = vmax.f32 %v1686, %v1253
        %v1688 = vmax.f32 %v1687, %v1258
        %v1689 = vmax.f32 %v1688, %v1261
        %v1690 = vrot.slane %v1689, 4
        %v1691 = vmax.f32 %v1689, %v1690
        %v1692 = vrot.slane %v1691, 2
        %v1693 = vmax.f32 %v1691, %v1692
        %v1694 = vrot.slane %v1693, 1
        %v1695 = vmax.f32 %v1693, %v1694
        %v1696 = vmax.f32 %v1339, %v1342
        %v1697 = vmax.f32 %v1696, %v1347
        %v1698 = vmax.f32 %v1697, %v1350
        %v1699 = vmax.f32 %v1698, %v1355
        %v1700 = vmax.f32 %v1699, %v1358
        %v1701 = vmax.f32 %v1700, %v1363
        %v1702 = vmax.f32 %v1701, %v1366
        %v1703 = vmax.f32 %v1702, %v1371
        %v1704 = vmax.f32 %v1703, %v1374
        %v1705 = vmax.f32 %v1704, %v1379
        %v1706 = vmax.f32 %v1705, %v1382
        %v1707 = vmax.f32 %v1706, %v1387
        %v1708 = vmax.f32 %v1707, %v1390
        %v1709 = vmax.f32 %v1708, %v1395
        %v1710 = vmax.f32 %v1709, %v1398
        %v1711 = vrot.slane %v1710, 4
        %v1712 = vmax.f32 %v1710, %v1711
        %v1713 = vrot.slane %v1712, 2
        %v1714 = vmax.f32 %v1712, %v1713
        %v1715 = vrot.slane %v1714, 1
        %v1716 = vmax.f32 %v1714, %v1715
        %v1717 = vmax.f32 %v1476, %v1479
        %v1718 = vmax.f32 %v1717, %v1484
        %v1719 = vmax.f32 %v1718, %v1487
        %v1720 = vmax.f32 %v1719, %v1492
        %v1721 = vmax.f32 %v1720, %v1495
        %v1722 = vmax.f32 %v1721, %v1500
        %v1723 = vmax.f32 %v1722, %v1503
        %v1724 = vmax.f32 %v1723, %v1508
        %v1725 = vmax.f32 %v1724, %v1511
        %v1726 = vmax.f32 %v1725, %v1516
        %v1727 = vmax.f32 %v1726, %v1519
        %v1728 = vmax.f32 %v1727, %v1524
        %v1729 = vmax.f32 %v1728, %v1527
        %v1730 = vmax.f32 %v1729, %v1532
        %v1731 = vmax.f32 %v1730, %v1535
        %v1732 = vrot.slane %v1731, 4
        %v1733 = vmax.f32 %v1731, %v1732
        %v1734 = vrot.slane %v1733, 2
        %v1735 = vmax.f32 %v1733, %v1734
        %v1736 = vrot.slane %v1735, 1
        %v1737 = vmax.f32 %v1735, %v1736
        %v1738 = vmax.f32 %v1613, %v1616
        %v1739 = vmax.f32 %v1738, %v1621
        %v1740 = vmax.f32 %v1739, %v1624
        %v1741 = vmax.f32 %v1740, %v1629
        %v1742 = vmax.f32 %v1741, %v1632
        %v1743 = vmax.f32 %v1742, %v1637
        %v1744 = vmax.f32 %v1743, %v1640
        %v1745 = vmax.f32 %v1744, %v1645
        %v1746 = vmax.f32 %v1745, %v1648
        %v1747 = vmax.f32 %v1746, %v1653
        %v1748 = vmax.f32 %v1747, %v1656
        %v1749 = vmax.f32 %v1748, %v1661
        %v1750 = vmax.f32 %v1749, %v1664
        %v1751 = vmax.f32 %v1750, %v1669
        %v1752 = vmax.f32 %v1751, %v1672
        %v1753 = vrot.slane %v1752, 4
        %v1754 = vmax.f32 %v1752, %v1753
        %v1755 = vrot.slane %v1754, 2
        %v1756 = vmax.f32 %v1754, %v1755
        %v1757 = vrot.slane %v1756, 1
        %v1758 = vmax.f32 %v1756, %v1757
        %v1759 = vsub.f32 %v1202, %v1695
        %v1760 = vsub.f32 %v1205, %v1695
        %v1761 = vsub.f32 %v1210, %v1695
        %v1762 = vsub.f32 %v1213, %v1695
        %v1763 = vsub.f32 %v1218, %v1695
        %v1764 = vsub.f32 %v1221, %v1695
        %v1765 = vsub.f32 %v1226, %v1695
        %v1766 = vsub.f32 %v1229, %v1695
        %v1767 = vsub.f32 %v1234, %v1695
        %v1768 = vsub.f32 %v1237, %v1695
        %v1769 = vsub.f32 %v1242, %v1695
        %v1770 = vsub.f32 %v1245, %v1695
        %v1771 = vsub.f32 %v1250, %v1695
        %v1772 = vsub.f32 %v1253, %v1695
        %v1773 = vsub.f32 %v1258, %v1695
        %v1774 = vsub.f32 %v1261, %v1695
        %v1775 = vsub.f32 %v1339, %v1716
        %v1776 = vsub.f32 %v1342, %v1716
        %v1777 = vsub.f32 %v1347, %v1716
        %v1778 = vsub.f32 %v1350, %v1716
        %v1779 = vsub.f32 %v1355, %v1716
        %v1780 = vsub.f32 %v1358, %v1716
        %v1781 = vsub.f32 %v1363, %v1716
        %v1782 = vsub.f32 %v1366, %v1716
        %v1783 = vsub.f32 %v1371, %v1716
        %v1784 = vsub.f32 %v1374, %v1716
        %v1785 = vsub.f32 %v1379, %v1716
        %v1786 = vsub.f32 %v1382, %v1716
        %v1787 = vsub.f32 %v1387, %v1716
        %v1788 = vsub.f32 %v1390, %v1716
        %v1789 = vsub.f32 %v1395, %v1716
        %v1790 = vsub.f32 %v1398, %v1716
        %v1791 = vsub.f32 %v1476, %v1737
        %v1792 = vsub.f32 %v1479, %v1737
        %v1793 = vsub.f32 %v1484, %v1737
        %v1794 = vsub.f32 %v1487, %v1737
        %v1795 = vsub.f32 %v1492, %v1737
        %v1796 = vsub.f32 %v1495, %v1737
        %v1797 = vsub.f32 %v1500, %v1737
        %v1798 = vsub.f32 %v1503, %v1737
        %v1799 = vsub.f32 %v1508, %v1737
        %v1800 = vsub.f32 %v1511, %v1737
        %v1801 = vsub.f32 %v1516, %v1737
        %v1802 = vsub.f32 %v1519, %v1737
        %v1803 = vsub.f32 %v1524, %v1737
        %v1804 = vsub.f32 %v1527, %v1737
        %v1805 = vsub.f32 %v1532, %v1737
        %v1806 = vsub.f32 %v1535, %v1737
        %v1807 = vsub.f32 %v1613, %v1758
        %v1808 = vsub.f32 %v1616, %v1758
        %v1809 = vsub.f32 %v1621, %v1758
        %v1810 = vsub.f32 %v1624, %v1758
        %v1811 = vsub.f32 %v1629, %v1758
        %v1812 = vsub.f32 %v1632, %v1758
        %v1813 = vsub.f32 %v1637, %v1758
        %v1814 = vsub.f32 %v1640, %v1758
        %v1815 = vsub.f32 %v1645, %v1758
        %v1816 = vsub.f32 %v1648, %v1758
        %v1817 = vsub.f32 %v1653, %v1758
        %v1818 = vsub.f32 %v1656, %v1758
        %v1819 = vsub.f32 %v1661, %v1758
        %v1820 = vsub.f32 %v1664, %v1758
        %v1821 = vsub.f32 %v1669, %v1758
        %v1822 = vsub.f32 %v1672, %v1758
        %v1823 = vmul.f32 %v1759, 1.442695
        %v1824 = vpow.pop %v1823
        %v1825 = vmul.f32 %v1760, 1.442695
        %v1826 = vpow.pop %v1825
        %v1827 = vmul.f32 %v1761, 1.442695
        %v1828 = vpow.pop %v1827
        %v1829 = vmul.f32 %v1762, 1.442695
        %v1830 = vpow.pop %v1829
        %v1831 = vmul.f32 %v1763, 1.442695
        %v1832 = vpow.pop %v1831
        %v1833 = vmul.f32 %v1764, 1.442695
        %v1834 = vpow.pop %v1833
        %v1835 = vmul.f32 %v1765, 1.442695
        %v1836 = vpow.pop %v1835
        %v1837 = vmul.f32 %v1766, 1.442695
        %v1838 = vpow.pop %v1837
        %v1839 = vmul.f32 %v1767, 1.442695
        %v1840 = vpow.pop %v1839
        %v1841 = vmul.f32 %v1768, 1.442695
        %v1842 = vpow.pop %v1841
        %v1843 = vmul.f32 %v1769, 1.442695
        %v1844 = vpow.pop %v1843
        %v1845 = vmul.f32 %v1770, 1.442695
        %v1846 = vpow.pop %v1845
        %v1847 = vmul.f32 %v1771, 1.442695
        %v1848 = vpow.pop %v1847
        %v1849 = vmul.f32 %v1772, 1.442695
        %v1850 = vpow.pop %v1849
        %v1851 = vmul.f32 %v1773, 1.442695
        %v1852 = vpow.pop %v1851
        %v1853 = vmul.f32 %v1774, 1.442695
        %v1854 = vpow.pop %v1853
        %v1855 = vmul.f32 %v1775, 1.442695
        %v1856 = vpow.pop %v1855
        %v1857 = vmul.f32 %v1776, 1.442695
        %v1858 = vpow.pop %v1857
        %v1859 = vmul.f32 %v1777, 1.442695
        %v1860 = vpow.pop %v1859
        %v1861 = vmul.f32 %v1778, 1.442695
        %v1862 = vpow.pop %v1861
        %v1863 = vmul.f32 %v1779, 1.442695
        %v1864 = vpow.pop %v1863
        %v1865 = vmul.f32 %v1780, 1.442695
        %v1866 = vpow.pop %v1865
        %v1867 = vmul.f32 %v1781, 1.442695
        %v1868 = vpow.pop %v1867
        %v1869 = vmul.f32 %v1782, 1.442695
        %v1870 = vpow.pop %v1869
        %v1871 = vmul.f32 %v1783, 1.442695
        %v1872 = vpow.pop %v1871
        %v1873 = vmul.f32 %v1784, 1.442695
        %v1874 = vpow.pop %v1873
        %v1875 = vmul.f32 %v1785, 1.442695
        %v1876 = vpow.pop %v1875
        %v1877 = vmul.f32 %v1786, 1.442695
        %v1878 = vpow.pop %v1877
        %v1879 = vmul.f32 %v1787, 1.442695
        %v1880 = vpow.pop %v1879
        %v1881 = vmul.f32 %v1788, 1.442695
        %v1882 = vpow.pop %v1881
        %v1883 = vmul.f32 %v1789, 1.442695
        %v1884 = vpow.pop %v1883
        %v1885 = vmul.f32 %v1790, 1.442695
        %v1886 = vpow.pop %v1885
        %v1887 = vmul.f32 %v1791, 1.442695
        %v1888 = vpow.pop %v1887
        %v1889 = vmul.f32 %v1792, 1.442695
        %v1890 = vpow.pop %v1889
        %v1891 = vmul.f32 %v1793, 1.442695
        %v1892 = vpow.pop %v1891
        %v1893 = vmul.f32 %v1794, 1.442695
        %v1894 = vpow.pop %v1893
        %v1895 = vmul.f32 %v1795, 1.442695
        %v1896 = vpow.pop %v1895
        %v1897 = vmul.f32 %v1796, 1.442695
        %v1898 = vpow.pop %v1897
        %v1899 = vmul.f32 %v1797, 1.442695
        %v1900 = vpow.pop %v1899
        %v1901 = vmul.f32 %v1798, 1.442695
        %v1902 = vpow.pop %v1901
        %v1903 = vmul.f32 %v1799, 1.442695
        %v1904 = vpow.pop %v1903
        %v1905 = vmul.f32 %v1800, 1.442695
        %v1906 = vpow.pop %v1905
        %v1907 = vmul.f32 %v1801, 1.442695
        %v1908 = vpow.pop %v1907
        %v1909 = vmul.f32 %v1802, 1.442695
        %v1910 = vpow.pop %v1909
        %v1911 = vmul.f32 %v1803, 1.442695
        %v1912 = vpow.pop %v1911
        %v1913 = vmul.f32 %v1804, 1.442695
        %v1914 = vpow.pop %v1913
        %v1915 = vmul.f32 %v1805, 1.442695
        %v1916 = vpow.pop %v1915
        %v1917 = vmul.f32 %v1806, 1.442695
        %v1918 = vpow.pop %v1917
        %v1919 = vmul.f32 %v1807, 1.442695
        %v1920 = vpow.pop %v1919
        %v1921 = vmul.f32 %v1808, 1.442695
        %v1922 = vpow.pop %v1921
        %v1923 = vmul.f32 %v1809, 1.442695
        %v1924 = vpow.pop %v1923
        %v1925 = vmul.f32 %v1810, 1.442695
        %v1926 = vpow.pop %v1925
        %v1927 = vmul.f32 %v1811, 1.442695
        %v1928 = vpow.pop %v1927
        %v1929 = vmul.f32 %v1812, 1.442695
        %v1930 = vpow.pop %v1929
        %v1931 = vmul.f32 %v1813, 1.442695
        %v1932 = vpow.pop %v1931
        %v1933 = vmul.f32 %v1814, 1.442695
        %v1934 = vpow.pop %v1933
        %v1935 = vmul.f32 %v1815, 1.442695
        %v1936 = vpow.pop %v1935
        %v1937 = vmul.f32 %v1816, 1.442695
        %v1938 = vpow.pop %v1937
        %v1939 = vmul.f32 %v1817, 1.442695
        %v1940 = vpow.pop %v1939
        %v1941 = vmul.f32 %v1818, 1.442695
        %v1942 = vpow.pop %v1941
        %v1943 = vmul.f32 %v1819, 1.442695
        %v1944 = vpow.pop %v1943
        %v1945 = vmul.f32 %v1820, 1.442695
        %v1946 = vpow.pop %v1945
        %v1947 = vmul.f32 %v1821, 1.442695
        %v1948 = vpow.pop %v1947
        %v1949 = vmul.f32 %v1822, 1.442695
        %v1950 = vpow.pop %v1949
        %v1951 = vadd.f32 %v1824, %v1826
        %v1952 = vadd.f32 %v1951, %v1828
        %v1953 = vadd.f32 %v1952, %v1830
        %v1954 = vadd.f32 %v1953, %v1832
        %v1955 = vadd.f32 %v1954, %v1834
        %v1956 = vadd.f32 %v1955, %v1836
        %v1957 = vadd.f32 %v1956, %v1838
        %v1958 = vadd.f32 %v1957, %v1840
        %v1959 = vadd.f32 %v1958, %v1842
        %v1960 = vadd.f32 %v1959, %v1844
        %v1961 = vadd.f32 %v1960, %v1846
        %v1962 = vadd.f32 %v1961, %v1848
        %v1963 = vadd.f32 %v1962, %v1850
        %v1964 = vadd.f32 %v1963, %v1852
        %v1965 = vadd.f32 %v1964, %v1854
        %v1966 = vrot.slane %v1965, 4
        %v1967 = vadd.f32 %v1965, %v1966
        %v1968 = vrot.slane %v1967, 2
        %v1969 = vadd.f32 %v1967, %v1968
        %v1970 = vrot.slane %v1969, 1
        %v1971 = vadd.f32 %v1969, %v1970
        %v1972 = vadd.f32 %v1856, %v1858
        %v1973 = vadd.f32 %v1972, %v1860
        %v1974 = vadd.f32 %v1973, %v1862
        %v1975 = vadd.f32 %v1974, %v1864
        %v1976 = vadd.f32 %v1975, %v1866
        %v1977 = vadd.f32 %v1976, %v1868
        %v1978 = vadd.f32 %v1977, %v1870
        %v1979 = vadd.f32 %v1978, %v1872
        %v1980 = vadd.f32 %v1979, %v1874
        %v1981 = vadd.f32 %v1980, %v1876
        %v1982 = vadd.f32 %v1981, %v1878
        %v1983 = vadd.f32 %v1982, %v1880
        %v1984 = vadd.f32 %v1983, %v1882
        %v1985 = vadd.f32 %v1984, %v1884
        %v1986 = vadd.f32 %v1985, %v1886
        %v1987 = vrot.slane %v1986, 4
        %v1988 = vadd.f32 %v1986, %v1987
        %v1989 = vrot.slane %v1988, 2
        %v1990 = vadd.f32 %v1988, %v1989
        %v1991 = vrot.slane %v1990, 1
        %v1992 = vadd.f32 %v1990, %v1991
        %v1993 = vadd.f32 %v1888, %v1890
        %v1994 = vadd.f32 %v1993, %v1892
        %v1995 = vadd.f32 %v1994, %v1894
        %v1996 = vadd.f32 %v1995, %v1896
        %v1997 = vadd.f32 %v1996, %v1898
        %v1998 = vadd.f32 %v1997, %v1900
        %v1999 = vadd.f32 %v1998, %v1902
        %v2000 = vadd.f32 %v1999, %v1904
        %v2001 = vadd.f32 %v2000, %v1906
        %v2002 = vadd.f32 %v2001, %v1908
        %v2003 = vadd.f32 %v2002, %v1910
        %v2004 = vadd.f32 %v2003, %v1912
        %v2005 = vadd.f32 %v2004, %v1914
        %v2006 = vadd.f32 %v2005, %v1916
        %v2007 = vadd.f32 %v2006, %v1918
        %v2008 = vrot.slane %v2007, 4
        %v2009 = vadd.f32 %v2007, %v2008
        %v2010 = vrot.slane %v2009, 2
        %v2011 = vadd.f32 %v2009, %v2010
        %v2012 = vrot.slane %v2011, 1
        %v2013 = vadd.f32 %v2011, %v2012
        %v2014 = vadd.f32 %v1920, %v1922
        %v2015 = vadd.f32 %v2014, %v1924
        %v2016 = vadd.f32 %v2015, %v1926
        %v2017 = vadd.f32 %v2016, %v1928
        %v2018 = vadd.f32 %v2017, %v1930
        %v2019 = vadd.f32 %v2018, %v1932
        %v2020 = vadd.f32 %v2019, %v1934
        %v2021 = vadd.f32 %v2020, %v1936
        %v2022 = vadd.f32 %v2021, %v1938
        %v2023 = vadd.f32 %v2022, %v1940
        %v2024 = vadd.f32 %v2023, %v1942
        %v2025 = vadd.f32 %v2024, %v1944
        %v2026 = vadd.f32 %v2025, %v1946
        %v2027 = vadd.f32 %v2026, %v1948
        %v2028 = vadd.f32 %v2027, %v1950
        %v2029 = vrot.slane %v2028, 4
        %v2030 = vadd.f32 %v2028, %v2029
        %v2031 = vrot.slane %v2030, 2
        %v2032 = vadd.f32 %v2030, %v2031
        %v2033 = vrot.slane %v2032, 1
        %v2034 = vadd.f32 %v2032, %v2033
        %v2035 = vrcp.pop %v1971
        %v2036 = vmul.f32 %v1824, %v2035
        %v2037 = vmul.f32 %v1826, %v2035
        %v2038 = vmul.f32 %v1828, %v2035
        %v2039 = vmul.f32 %v1830, %v2035
        %v2040 = vmul.f32 %v1832, %v2035
        %v2041 = vmul.f32 %v1834, %v2035
        %v2042 = vmul.f32 %v1836, %v2035
        %v2043 = vmul.f32 %v1838, %v2035
        %v2044 = vmul.f32 %v1840, %v2035
        %v2045 = vmul.f32 %v1842, %v2035
        %v2046 = vmul.f32 %v1844, %v2035
        %v2047 = vmul.f32 %v1846, %v2035
        %v2048 = vmul.f32 %v1848, %v2035
        %v2049 = vmul.f32 %v1850, %v2035
        %v2050 = vmul.f32 %v1852, %v2035
        %v2051 = vmul.f32 %v1854, %v2035
        %v2052 = vrcp.pop %v1992
        %v2053 = vmul.f32 %v1856, %v2052
        %v2054 = vmul.f32 %v1858, %v2052
        %v2055 = vmul.f32 %v1860, %v2052
        %v2056 = vmul.f32 %v1862, %v2052
        %v2057 = vmul.f32 %v1864, %v2052
        %v2058 = vmul.f32 %v1866, %v2052
        %v2059 = vmul.f32 %v1868, %v2052
        %v2060 = vmul.f32 %v1870, %v2052
        %v2061 = vmul.f32 %v1872, %v2052
        %v2062 = vmul.f32 %v1874, %v2052
        %v2063 = vmul.f32 %v1876, %v2052
        %v2064 = vmul.f32 %v1878, %v2052
        %v2065 = vmul.f32 %v1880, %v2052
        %v2066 = vmul.f32 %v1882, %v2052
        %v2067 = vmul.f32 %v1884, %v2052
        %v2068 = vmul.f32 %v1886, %v2052
        %v2069 = vrcp.pop %v2013
        %v2070 = vmul.f32 %v1888, %v2069
        %v2071 = vmul.f32 %v1890, %v2069
        %v2072 = vmul.f32 %v1892, %v2069
        %v2073 = vmul.f32 %v1894, %v2069
        %v2074 = vmul.f32 %v1896, %v2069
        %v2075 = vmul.f32 %v1898, %v2069
        %v2076 = vmul.f32 %v1900, %v2069
        %v2077 = vmul.f32 %v1902, %v2069
        %v2078 = vmul.f32 %v1904, %v2069
        %v2079 = vmul.f32 %v1906, %v2069
        %v2080 = vmul.f32 %v1908, %v2069
        %v2081 = vmul.f32 %v1910, %v2069
        %v2082 = vmul.f32 %v1912, %v2069
        %v2083 = vmul.f32 %v1914, %v2069
        %v2084 = vmul.f32 %v1916, %v2069
        %v2085 = vmul.f32 %v1918, %v2069
        %v2086 = vrcp.pop %v2034
        %v2087 = vmul.f32 %v1920, %v2086
        %v2088 = vmul.f32 %v1922, %v2086
        %v2089 = vmul.f32 %v1924, %v2086
        %v2090 = vmul.f32 %v1926, %v2086
        %v2091 = vmul.f32 %v1928, %v2086
        %v2092 = vmul.f32 %v1930, %v2086
        %v2093 = vmul.f32 %v1932, %v2086
        %v2094 = vmul.f32 %v1934, %v2086
        %v2095 = vmul.f32 %v1936, %v2086
        %v2096 = vmul.f32 %v1938, %v2086
        %v2097 = vmul.f32 %v1940, %v2086
        %v2098 = vmul.f32 %v1942, %v2086
        %v2099 = vmul.f32 %v1944, %v2086
        %v2100 = vmul.f32 %v1946, %v2086
        %v2101 = vmul.f32 %v1948, %v2086
        %v2102 = vmul.f32 %v1950, %v2086
        %v2103 = vpack.c.bf16 %v2037, %v2036
        %v2104 = vpack.c.bf16 %v2039, %v2038
        %v2105 = vpack.c.bf16 %v2041, %v2040
        %v2106 = vpack.c.bf16 %v2043, %v2042
        %v2107 = vpack.c.bf16 %v2045, %v2044
        %v2108 = vpack.c.bf16 %v2047, %v2046
        %v2109 = vpack.c.bf16 %v2049, %v2048
        %v2110 = vpack.c.bf16 %v2051, %v2050
        %v2111 = vpack.c.bf16 %v2054, %v2053
        %v2112 = vpack.c.bf16 %v2056, %v2055
        %v2113 = vpack.c.bf16 %v2058, %v2057
        %v2114 = vpack.c.bf16 %v2060, %v2059
        %v2115 = vpack.c.bf16 %v2062, %v2061
        %v2116 = vpack.c.bf16 %v2064, %v2063
        %v2117 = vpack.c.bf16 %v2066, %v2065
        %v2118 = vpack.c.bf16 %v2068, %v2067
        %v2119 = vpack.c.bf16 %v2071, %v2070
        %v2120 = vpack.c.bf16 %v2073, %v2072
        %v2121 = vpack.c.bf16 %v2075, %v2074
        %v2122 = vpack.c.bf16 %v2077, %v2076
        %v2123 = vpack.c.bf16 %v2079, %v2078
        %v2124 = vpack.c.bf16 %v2081, %v2080
        %v2125 = vpack.c.bf16 %v2083, %v2082
        %v2126 = vpack.c.bf16 %v2085, %v2084
        %v2127 = vpack.c.bf16 %v2088, %v2087
        %v2128 = vpack.c.bf16 %v2090, %v2089
        %v2129 = vpack.c.bf16 %v2092, %v2091
        %v2130 = vpack.c.bf16 %v2094, %v2093
        %v2131 = vpack.c.bf16 %v2096, %v2095
        %v2132 = vpack.c.bf16 %v2098, %v2097
        %v2133 = vpack.c.bf16 %v2100, %v2099
        %v2134 = vpack.c.bf16 %v2102, %v2101
        %v2167 = vunpack.c.l.b16 %v2103
        %v2168 = vunpack.c.h.b16 %v2103
        %v2169 = vunpack.c.l.b16 %v2104
        %v2170 = vunpack.c.h.b16 %v2104
        %v2171 = vunpack.c.l.b16 %v2105
        %v2172 = vunpack.c.h.b16 %v2105
        %v2173 = vunpack.c.l.b16 %v2106
        %v2174 = vunpack.c.h.b16 %v2106
        %v2175 = vunpack.c.l.b16 %v2107
        %v2176 = vunpack.c.h.b16 %v2107
        %v2177 = vunpack.c.l.b16 %v2108
        %v2178 = vunpack.c.h.b16 %v2108
        %v2179 = vunpack.c.l.b16 %v2109
        %v2180 = vunpack.c.h.b16 %v2109
        %v2181 = vunpack.c.l.b16 %v2110
        %v2182 = vunpack.c.h.b16 %v2110
        %v2183 = vunpack.c.l.b16 %v2111
        %v2184 = vunpack.c.h.b16 %v2111
        %v2185 = vunpack.c.l.b16 %v2112
        %v2186 = vunpack.c.h.b16 %v2112
        %v2187 = vunpack.c.l.b16 %v2113
        %v2188 = vunpack.c.h.b16 %v2113
        %v2189 = vunpack.c.l.b16 %v2114
        %v2190 = vunpack.c.h.b16 %v2114
        %v2191 = vunpack.c.l.b16 %v2115
        %v2192 = vunpack.c.h.b16 %v2115
        %v2193 = vunpack.c.l.b16 %v2116
        %v2194 = vunpack.c.h.b16 %v2116
        %v2195 = vunpack.c.l.b16 %v2117
        %v2196 = vunpack.c.h.b16 %v2117
        %v2197 = vunpack.c.l.b16 %v2118
        %v2198 = vunpack.c.h.b16 %v2118
        %v2199 = vunpack.c.l.b16 %v2119
        %v2200 = vunpack.c.h.b16 %v2119
        %v2201 = vunpack.c.l.b16 %v2120
        %v2202 = vunpack.c.h.b16 %v2120
        %v2203 = vunpack.c.l.b16 %v2121
        %v2204 = vunpack.c.h.b16 %v2121
        %v2205 = vunpack.c.l.b16 %v2122
        %v2206 = vunpack.c.h.b16 %v2122
        %v2207 = vunpack.c.l.b16 %v2123
        %v2208 = vunpack.c.h.b16 %v2123
        %v2209 = vunpack.c.l.b16 %v2124
        %v2210 = vunpack.c.h.b16 %v2124
        %v2211 = vunpack.c.l.b16 %v2125
        %v2212 = vunpack.c.h.b16 %v2125
        %v2213 = vunpack.c.l.b16 %v2126
        %v2214 = vunpack.c.h.b16 %v2126
        %v2215 = vunpack.c.l.b16 %v2127
        %v2216 = vunpack.c.h.b16 %v2127
        %v2217 = vunpack.c.l.b16 %v2128
        %v2218 = vunpack.c.h.b16 %v2128
        %v2219 = vunpack.c.l.b16 %v2129
        %v2220 = vunpack.c.h.b16 %v2129
        %v2221 = vunpack.c.l.b16 %v2130
        %v2222 = vunpack.c.h.b16 %v2130
        %v2223 = vunpack.c.l.b16 %v2131
        %v2224 = vunpack.c.h.b16 %v2131
        %v2225 = vunpack.c.l.b16 %v2132
        %v2226 = vunpack.c.h.b16 %v2132
        %v2227 = vunpack.c.l.b16 %v2133
        %v2228 = vunpack.c.h.b16 %v2133
        %v2229 = vunpack.c.l.b16 %v2134
        %v2230 = vunpack.c.h.b16 %v2134
        %v2231 = vpack.c.b16 %v2167, %v2167
        %v2232 = vpack.c.b16 %v2168, %v2168
        %v2233 = vpack.c.b16 %v2169, %v2169
        %v2234 = vpack.c.b16 %v2170, %v2170
        %v2235 = vpack.c.b16 %v2171, %v2171
        %v2236 = vpack.c.b16 %v2172, %v2172
        %v2237 = vpack.c.b16 %v2173, %v2173
        %v2238 = vpack.c.b16 %v2174, %v2174
        %v2239 = vpack.c.b16 %v2175, %v2175
        %v2240 = vpack.c.b16 %v2176, %v2176
        %v2241 = vpack.c.b16 %v2177, %v2177
        %v2242 = vpack.c.b16 %v2178, %v2178
        %v2243 = vpack.c.b16 %v2179, %v2179
        %v2244 = vpack.c.b16 %v2180, %v2180
        %v2245 = vpack.c.b16 %v2181, %v2181
        %v2246 = vpack.c.b16 %v2182, %v2182
        %v2247 = vpack.c.b16 %v2183, %v2183
        %v2248 = vpack.c.b16 %v2184, %v2184
        %v2249 = vpack.c.b16 %v2185, %v2185
        %v2250 = vpack.c.b16 %v2186, %v2186
        %v2251 = vpack.c.b16 %v2187, %v2187
        %v2252 = vpack.c.b16 %v2188, %v2188
        %v2253 = vpack.c.b16 %v2189, %v2189
        %v2254 = vpack.c.b16 %v2190, %v2190
        %v2255 = vpack.c.b16 %v2191, %v2191
        %v2256 = vpack.c.b16 %v2192, %v2192
        %v2257 = vpack.c.b16 %v2193, %v2193
        %v2258 = vpack.c.b16 %v2194, %v2194
        %v2259 = vpack.c.b16 %v2195, %v2195
        %v2260 = vpack.c.b16 %v2196, %v2196
        %v2261 = vpack.c.b16 %v2197, %v2197
        %v2262 = vpack.c.b16 %v2198, %v2198
        %v2263 = vpack.c.b16 %v2199, %v2199
        %v2264 = vpack.c.b16 %v2200, %v2200
        %v2265 = vpack.c.b16 %v2201, %v2201
        %v2266 = vpack.c.b16 %v2202, %v2202
        %v2267 = vpack.c.b16 %v2203, %v2203
        %v2268 = vpack.c.b16 %v2204, %v2204
        %v2269 = vpack.c.b16 %v2205, %v2205
        %v2270 = vpack.c.b16 %v2206, %v2206
        %v2271 = vpack.c.b16 %v2207, %v2207
        %v2272 = vpack.c.b16 %v2208, %v2208
        %v2273 = vpack.c.b16 %v2209, %v2209
        %v2274 = vpack.c.b16 %v2210, %v2210
        %v2275 = vpack.c.b16 %v2211, %v2211
        %v2276 = vpack.c.b16 %v2212, %v2212
        %v2277 = vpack.c.b16 %v2213, %v2213
        %v2278 = vpack.c.b16 %v2214, %v2214
        %v2279 = vpack.c.b16 %v2215, %v2215
        %v2280 = vpack.c.b16 %v2216, %v2216
        %v2281 = vpack.c.b16 %v2217, %v2217
        %v2282 = vpack.c.b16 %v2218, %v2218
        %v2283 = vpack.c.b16 %v2219, %v2219
        %v2284 = vpack.c.b16 %v2220, %v2220
        %v2285 = vpack.c.b16 %v2221, %v2221
        %v2286 = vpack.c.b16 %v2222, %v2222
        %v2287 = vpack.c.b16 %v2223, %v2223
        %v2288 = vpack.c.b16 %v2224, %v2224
        %v2289 = vpack.c.b16 %v2225, %v2225
        %v2290 = vpack.c.b16 %v2226, %v2226
        %v2291 = vpack.c.b16 %v2227, %v2227
        %v2292 = vpack.c.b16 %v2228, %v2228
        %v2293 = vpack.c.b16 %v2229, %v2229
        %v2294 = vpack.c.b16 %v2230, %v2230
        %2359 = vst [vmem:[%s545] sm:$0xf] %v2231
        %2360 = vst [vmem:[%s545 + $0x4] sm:$0xf] %v2232
        %2361 = vst [vmem:[%s545 + $0x8] sm:$0xf] %v2233
        %2362 = vst [vmem:[%s545 + $0xc] sm:$0xf] %v2234
        %2363 = vst [vmem:[%s545 + $0x10] sm:$0xf] %v2235
        %2364 = vst [vmem:[%s545 + $0x14] sm:$0xf] %v2236
        %2365 = vst [vmem:[%s545 + $0x18] sm:$0xf] %v2237
        %2366 = vst [vmem:[%s545 + $0x1c] sm:$0xf] %v2238
        %2367 = vst [vmem:[%s545 + $0x20] sm:$0xf] %v2239
        %2368 = vst [vmem:[%s545 + $0x24] sm:$0xf] %v2240
        %2369 = vst [vmem:[%s545 + $0x28] sm:$0xf] %v2241
        %2370 = vst [vmem:[%s545 + $0x2c] sm:$0xf] %v2242
        %2371 = vst [vmem:[%s545 + $0x30] sm:$0xf] %v2243
        %2372 = vst [vmem:[%s545 + $0x34] sm:$0xf] %v2244
        %2373 = vst [vmem:[%s545 + $0x38] sm:$0xf] %v2245
        %2374 = vst [vmem:[%s545 + $0x3c] sm:$0xf] %v2246
        %2375 = vst [vmem:[%s545 + $0x40] sm:$0xf] %v2247
        %2376 = vst [vmem:[%s545 + $0x44] sm:$0xf] %v2248
        %2377 = vst [vmem:[%s545 + $0x48] sm:$0xf] %v2249
        %2378 = vst [vmem:[%s545 + $0x4c] sm:$0xf] %v2250
        %2379 = vst [vmem:[%s545 + $0x50] sm:$0xf] %v2251
        %2380 = vst [vmem:[%s545 + $0x54] sm:$0xf] %v2252
        %2381 = vst [vmem:[%s545 + $0x58] sm:$0xf] %v2253
        %2382 = vst [vmem:[%s545 + $0x5c] sm:$0xf] %v2254
        %2383 = vst [vmem:[%s545 + $0x60] sm:$0xf] %v2255
        %2384 = vst [vmem:[%s545 + $0x64] sm:$0xf] %v2256
        %2385 = vst [vmem:[%s545 + $0x68] sm:$0xf] %v2257
        %2386 = vst [vmem:[%s545 + $0x6c] sm:$0xf] %v2258
        %2387 = vst [vmem:[%s545 + $0x70] sm:$0xf] %v2259
        %2388 = vst [vmem:[%s545 + $0x74] sm:$0xf] %v2260
        %2389 = vst [vmem:[%s545 + $0x78] sm:$0xf] %v2261
        %2390 = vst [vmem:[%s545 + $0x7c] sm:$0xf] %v2262
        %2391 = vst [vmem:[%s545 + $0x80] sm:$0xf] %v2263
        %2392 = vst [vmem:[%s545 + $0x84] sm:$0xf] %v2264
        %2393 = vst [vmem:[%s545 + $0x88] sm:$0xf] %v2265
        %2394 = vst [vmem:[%s545 + $0x8c] sm:$0xf] %v2266
        %2395 = vst [vmem:[%s545 + $0x90] sm:$0xf] %v2267
        %2396 = vst [vmem:[%s545 + $0x94] sm:$0xf] %v2268
        %2397 = vst [vmem:[%s545 + $0x98] sm:$0xf] %v2269
        %2398 = vst [vmem:[%s545 + $0x9c] sm:$0xf] %v2270
        %2399 = vst [vmem:[%s545 + $0xa0] sm:$0xf] %v2271
        %2400 = vst [vmem:[%s545 + $0xa4] sm:$0xf] %v2272
        %2401 = vst [vmem:[%s545 + $0xa8] sm:$0xf] %v2273
        %2402 = vst [vmem:[%s545 + $0xac] sm:$0xf] %v2274
        %2403 = vst [vmem:[%s545 + $0xb0] sm:$0xf] %v2275
        %2404 = vst [vmem:[%s545 + $0xb4] sm:$0xf] %v2276
        %2405 = vst [vmem:[%s545 + $0xb8] sm:$0xf] %v2277
        %2406 = vst [vmem:[%s545 + $0xbc] sm:$0xf] %v2278
        %2407 = vst [vmem:[%s545 + $0xc0] sm:$0xf] %v2279
        %2408 = vst [vmem:[%s545 + $0xc4] sm:$0xf] %v2280
        %2409 = vst [vmem:[%s545 + $0xc8] sm:$0xf] %v2281
        %2410 = vst [vmem:[%s545 + $0xcc] sm:$0xf] %v2282
        %2411 = vst [vmem:[%s545 + $0xd0] sm:$0xf] %v2283
        %2412 = vst [vmem:[%s545 + $0xd4] sm:$0xf] %v2284
        %2413 = vst [vmem:[%s545 + $0xd8] sm:$0xf] %v2285
        %2414 = vst [vmem:[%s545 + $0xdc] sm:$0xf] %v2286
        %2415 = vst [vmem:[%s545 + $0xe0] sm:$0xf] %v2287
        %2416 = vst [vmem:[%s545 + $0xe4] sm:$0xf] %v2288
        %2417 = vst [vmem:[%s545 + $0xe8] sm:$0xf] %v2289
        %2418 = vst [vmem:[%s545 + $0xec] sm:$0xf] %v2290
        %2419 = vst [vmem:[%s545 + $0xf0] sm:$0xf] %v2291
        %2420 = vst [vmem:[%s545 + $0xf4] sm:$0xf] %v2292
        %2421 = vst [vmem:[%s545 + $0xf8] sm:$0xf] %v2293
        %2422 = vst [vmem:[%s545 + $0xfc] sm:$0xf] %v2294
        %2423 = vmatprep.subr.bf16.mxu0 0
        %2424 = vmatpush1.bf16.msra.mxu0 %v2103
        %2425 = vmatprep.subr.bf16.mxu0 0
        %2426 = vmatpush1.bf16.msra.mxu0 %v2104
        %2427 = vmatprep.subr.bf16.mxu0 0
        %2428 = vmatpush1.bf16.msra.mxu0 %v2105
        %2429 = vmatprep.subr.bf16.mxu0 0
        %2430 = vmatpush1.bf16.msra.mxu0 %v2106
        %2431 = vmatprep.subr.bf16.mxu0 0
        %2432 = vmatpush1.bf16.msra.mxu0 %v2107
        %2433 = vmatprep.subr.bf16.mxu0 0
        %2434 = vmatpush1.bf16.msra.mxu0 %v2108
        %2435 = vmatprep.subr.bf16.mxu0 0
        %2436 = vmatpush1.bf16.msra.mxu0 %v2109
        %2437 = vmatprep.subr.bf16.mxu0 0
        %2438 = vmatpush1.bf16.msra.mxu0 %v2110
        %2439 = vmatprep.subr.bf16.mxu0 0
        %2440 = vmatpush1.bf16.msra.mxu0 0
        %2441 = vmatprep.subr.bf16.mxu0 0
        %2442 = vmatpush1.bf16.msra.mxu0 0
        %2443 = vmatprep.subr.bf16.mxu0 0
        %2444 = vmatpush1.bf16.msra.mxu0 0
        %2445 = vmatprep.subr.bf16.mxu0 0
        %2446 = vmatpush1.bf16.msra.mxu0 0
        %2447 = vmatprep.subr.bf16.mxu0 0
        %2448 = vmatpush1.bf16.msra.mxu0 0
        %2449 = vmatprep.subr.bf16.mxu0 0
        %2450 = vmatpush1.bf16.msra.mxu0 0
        %2451 = vmatprep.subr.bf16.mxu0 0
        %2452 = vmatpush1.bf16.msra.mxu0 0
        %2453 = vmatprep.subr.bf16.mxu0 0
        %2454 = vmatpush1.bf16.msra.mxu0 0
        %2455 = vmatprep.mubr.bf16.mxu0 0
        %2456 = vmatmul.mubr.bf16.gmra.mrb[0].mxu0 %v1122
        %v2457 = vpop.f32.mrb[0].mxu0
        %v2458 = vadd.f32 0.0, %v2457
        %v2459 = vpop.f32.mrb[0].mxu0
        %v2460 = vpop.f32.mrb[0].mxu0
        %v2461 = vadd.f32 0.0, %v2460
        %v2462 = vpop.f32.mrb[0].mxu0
        %2463 = vdwg.mxu0
        %2464 = vmatprep.subr.bf16.mxu0 0
        %2465 = vmatpush1.bf16.msra.mxu0 %v2111
        %2466 = vmatprep.subr.bf16.mxu0 0
        %2467 = vmatpush1.bf16.msra.mxu0 %v2112
        %2468 = vmatprep.subr.bf16.mxu0 0
        %2469 = vmatpush1.bf16.msra.mxu0 %v2113
        %2470 = vmatprep.subr.bf16.mxu0 0
        %2471 = vmatpush1.bf16.msra.mxu0 %v2114
        %2472 = vmatprep.subr.bf16.mxu0 0
        %2473 = vmatpush1.bf16.msra.mxu0 %v2115
        %2474 = vmatprep.subr.bf16.mxu0 0
        %2475 = vmatpush1.bf16.msra.mxu0 %v2116
        %2476 = vmatprep.subr.bf16.mxu0 0
        %2477 = vmatpush1.bf16.msra.mxu0 %v2117
        %2478 = vmatprep.subr.bf16.mxu0 0
        %2479 = vmatpush1.bf16.msra.mxu0 %v2118
        %2480 = vmatprep.subr.bf16.mxu0 0
        %2481 = vmatpush1.bf16.msra.mxu0 0
        %2482 = vmatprep.subr.bf16.mxu0 0
        %2483 = vmatpush1.bf16.msra.mxu0 0
        %2484 = vmatprep.subr.bf16.mxu0 0
        %2485 = vmatpush1.bf16.msra.mxu0 0
        %2486 = vmatprep.subr.bf16.mxu0 0
        %2487 = vmatpush1.bf16.msra.mxu0 0
        %2488 = vmatprep.subr.bf16.mxu0 0
        %2489 = vmatpush1.bf16.msra.mxu0 0
        %2490 = vmatprep.subr.bf16.mxu0 0
        %2491 = vmatpush1.bf16.msra.mxu0 0
        %2492 = vmatprep.subr.bf16.mxu0 0
        %2493 = vmatpush1.bf16.msra.mxu0 0
        %2494 = vmatprep.subr.bf16.mxu0 0
        %2495 = vmatpush1.bf16.msra.mxu0 0
        %2496 = vmatprep.mubr.bf16.mxu0 0
        %2497 = vmatmul.mubr.bf16.gmra.mrb[0].mxu0 %v1123
        %v2498 = vpop.f32.mrb[0].mxu0
        %v2499 = vadd.f32 0.0, %v2498
        %v2500 = vpop.f32.mrb[0].mxu0
        %v2501 = vpop.f32.mrb[0].mxu0
        %v2502 = vadd.f32 0.0, %v2501
        %v2503 = vpop.f32.mrb[0].mxu0
        %2504 = vdwg.mxu0
        %2505 = vmatprep.subr.bf16.mxu0 0
        %2506 = vmatpush1.bf16.msra.mxu0 %v2119
        %2507 = vmatprep.subr.bf16.mxu0 0
        %2508 = vmatpush1.bf16.msra.mxu0 %v2120
        %2509 = vmatprep.subr.bf16.mxu0 0
        %2510 = vmatpush1.bf16.msra.mxu0 %v2121
        %2511 = vmatprep.subr.bf16.mxu0 0
        %2512 = vmatpush1.bf16.msra.mxu0 %v2122
        %2513 = vmatprep.subr.bf16.mxu0 0
        %2514 = vmatpush1.bf16.msra.mxu0 %v2123
        %2515 = vmatprep.subr.bf16.mxu0 0
        %2516 = vmatpush1.bf16.msra.mxu0 %v2124
        %2517 = vmatprep.subr.bf16.mxu0 0
        %2518 = vmatpush1.bf16.msra.mxu0 %v2125
        %2519 = vmatprep.subr.bf16.mxu0 0
        %2520 = vmatpush1.bf16.msra.mxu0 %v2126
        %2521 = vmatprep.subr.bf16.mxu0 0
        %2522 = vmatpush1.bf16.msra.mxu0 0
        %2523 = vmatprep.subr.bf16.mxu0 0
        %2524 = vmatpush1.bf16.msra.mxu0 0
        %2525 = vmatprep.subr.bf16.mxu0 0
        %2526 = vmatpush1.bf16.msra.mxu0 0
        %2527 = vmatprep.subr.bf16.mxu0 0
        %2528 = vmatpush1.bf16.msra.mxu0 0
        %2529 = vmatprep.subr.bf16.mxu0 0
        %2530 = vmatpush1.bf16.msra.mxu0 0
        %2531 = vmatprep.subr.bf16.mxu0 0
        %2532 = vmatpush1.bf16.msra.mxu0 0
        %2533 = vmatprep.subr.bf16.mxu0 0
        %2534 = vmatpush1.bf16.msra.mxu0 0
        %2535 = vmatprep.subr.bf16.mxu0 0
        %2536 = vmatpush1.bf16.msra.mxu0 0
        %2537 = vmatprep.mubr.bf16.mxu0 0
        %2538 = vmatmul.mubr.bf16.gmra.mrb[0].mxu0 %v1124
        %v2539 = vpop.f32.mrb[0].mxu0
        %v2540 = vadd.f32 0.0, %v2539
        %v2541 = vpop.f32.mrb[0].mxu0
        %v2542 = vpop.f32.mrb[0].mxu0
        %v2543 = vadd.f32 0.0, %v2542
        %v2544 = vpop.f32.mrb[0].mxu0
        %2545 = vdwg.mxu0
        %2546 = vmatprep.subr.bf16.mxu0 0
        %2547 = vmatpush1.bf16.msra.mxu0 %v2127
        %2548 = vmatprep.subr.bf16.mxu0 0
        %2549 = vmatpush1.bf16.msra.mxu0 %v2128
        %2550 = vmatprep.subr.bf16.mxu0 0
        %2551 = vmatpush1.bf16.msra.mxu0 %v2129
        %2552 = vmatprep.subr.bf16.mxu0 0
        %2553 = vmatpush1.bf16.msra.mxu0 %v2130
        %2554 = vmatprep.subr.bf16.mxu0 0
        %2555 = vmatpush1.bf16.msra.mxu0 %v2131
        %2556 = vmatprep.subr.bf16.mxu0 0
        %2557 = vmatpush1.bf16.msra.mxu0 %v2132
        %2558 = vmatprep.subr.bf16.mxu0 0
        %2559 = vmatpush1.bf16.msra.mxu0 %v2133
        %2560 = vmatprep.subr.bf16.mxu0 0
        %2561 = vmatpush1.bf16.msra.mxu0 %v2134
        %2562 = vmatprep.subr.bf16.mxu0 0
        %2563 = vmatpush1.bf16.msra.mxu0 0
        %2564 = vmatprep.subr.bf16.mxu0 0
        %2565 = vmatpush1.bf16.msra.mxu0 0
        %2566 = vmatprep.subr.bf16.mxu0 0
        %2567 = vmatpush1.bf16.msra.mxu0 0
        %2568 = vmatprep.subr.bf16.mxu0 0
        %2569 = vmatpush1.bf16.msra.mxu0 0
        %2570 = vmatprep.subr.bf16.mxu0 0
        %2571 = vmatpush1.bf16.msra.mxu0 0
        %2572 = vmatprep.subr.bf16.mxu0 0
        %2573 = vmatpush1.bf16.msra.mxu0 0
        %2574 = vmatprep.subr.bf16.mxu0 0
        %2575 = vmatpush1.bf16.msra.mxu0 0
        %2576 = vmatprep.subr.bf16.mxu0 0
        %2577 = vmatpush1.bf16.msra.mxu0 0
        %2578 = vmatprep.mubr.bf16.mxu0 0
        %2579 = vmatmul.mubr.bf16.gmra.mrb[0].mxu0 %v1125
        %v2580 = vpop.f32.mrb[0].mxu0
        %v2581 = vadd.f32 0.0, %v2580
        %v2582 = vpop.f32.mrb[0].mxu0
        %v2583 = vpop.f32.mrb[0].mxu0
        %v2584 = vadd.f32 0.0, %v2583
        %v2585 = vpop.f32.mrb[0].mxu0
        %2586 = vdwg.mxu0
        %v2587 = vld [vmem:[%s9] sm:$0xf]
        %v2588 = vld [vmem:[%s9 + $0x4] sm:$0xf]
        %v2589 = vld [vmem:[%s9 + $0x8] sm:$0xf]
        %v2590 = vld [vmem:[%s9 + $0xc] sm:$0xf]
        %v2591 = vld [vmem:[%s9 + $0x10] sm:$0xf]
        %v2592 = vld [vmem:[%s9 + $0x14] sm:$0xf]
        %v2593 = vld [vmem:[%s9 + $0x18] sm:$0xf]
        %v2594 = vld [vmem:[%s9 + $0x1c] sm:$0xf]
        %v2595 = vpack.c.bf16 %v2461, %v2458
        %v2596 = vpack.c.bf16 %v2502, %v2499
        %v2597 = vpack.c.bf16 %v2543, %v2540
        %v2598 = vpack.c.bf16 %v2584, %v2581
        %v2599 = vld [vmem:[%s10] sm:$0xff]
        %v2600 = vld [vmem:[%s10 + $0x8] sm:$0xff]
        %v2601 = vld [vmem:[%s10 + $0x10] sm:$0xff]
        %v2602 = vld [vmem:[%s10 + $0x18] sm:$0xff]
        %v2603 = vld [vmem:[%s10 + $0x20] sm:$0xff]
        %v2604 = vld [vmem:[%s10 + $0x28] sm:$0xff]
        %v2605 = vld [vmem:[%s10 + $0x30] sm:$0xff]
        %v2606 = vld [vmem:[%s10 + $0x38] sm:$0xff]
        %2608 = vset.pattern.permute.xlu0 0
        %2609 = vperm.xlu0 %2608, %v2599
        %v2610 = vpop.permute.xlu0 %2609
        %2613 = vset.pattern.permute.xlu0 0
        %2614 = vperm.xlu0 %2613, %v2600
        %v2615 = vpop.permute.xlu0 %2614
        %2618 = vset.pattern.permute.xlu0 0
        %2619 = vperm.xlu0 %2618, %v2601
        %v2620 = vpop.permute.xlu0 %2619
        %2623 = vset.pattern.permute.xlu0 0
        %2624 = vperm.xlu0 %2623, %v2602
        %v2625 = vpop.permute.xlu0 %2624
        %2628 = vset.pattern.permute.xlu0 0
        %2629 = vperm.xlu0 %2628, %v2603
        %v2630 = vpop.permute.xlu0 %2629
        %2633 = vset.pattern.permute.xlu0 0
        %2634 = vperm.xlu0 %2633, %v2604
        %v2635 = vpop.permute.xlu0 %2634
        %2638 = vset.pattern.permute.xlu0 0
        %2639 = vperm.xlu0 %2638, %v2605
        %v2640 = vpop.permute.xlu0 %2639
        %2643 = vset.pattern.permute.xlu0 0
        %2644 = vperm.xlu0 %2643, %v2606
        %v2645 = vpop.permute.xlu0 %2644
        %v2655 = vunpack.c.l.b16 %v2587
        %v2656 = vunpack.c.l.b16 %v2588
        %v2657 = vunpack.c.l.b16 %v2589
        %v2658 = vunpack.c.l.b16 %v2590
        %v2659 = vunpack.c.l.b16 %v2591
        %v2660 = vunpack.c.l.b16 %v2592
        %v2661 = vunpack.c.l.b16 %v2593
        %v2662 = vunpack.c.l.b16 %v2594
        %v2663 = vpack.c.b16 %v2656, %v2655
        %v2664 = vpack.c.b16 %v2658, %v2657
        %v2665 = vpack.c.b16 %v2660, %v2659
        %v2666 = vpack.c.b16 %v2662, %v2661
        %v2668 = vsel %vm1036, %v2663, 0
        %v2671 = vsel %vm1036, %v2664, 0
        %v2674 = vsel %vm1036, %v2665, 0
        %v2677 = vsel %vm1036, %v2666, 0
        %2679 = vmatprep.subr.bf16.mxu0 0
        %2680 = vmatpush1.bf16.msra.mxu0 %v2595
        %2681 = vmatprep.subr.bf16.mxu0 0
        %2682 = vmatpush1.bf16.msra.mxu0 %v2596
        %2683 = vmatprep.subr.bf16.mxu0 0
        %2684 = vmatpush1.bf16.msra.mxu0 %v2597
        %2685 = vmatprep.subr.bf16.mxu0 0
        %2686 = vmatpush1.bf16.msra.mxu0 %v2598
        %2687 = vmatprep.subr.bf16.mxu0 0
        %2688 = vmatpush1.bf16.msra.mxu0 0
        %2689 = vmatprep.subr.bf16.mxu0 0
        %2690 = vmatpush1.bf16.msra.mxu0 0
        %2691 = vmatprep.subr.bf16.mxu0 0
        %2692 = vmatpush1.bf16.msra.mxu0 0
        %2693 = vmatprep.subr.bf16.mxu0 0
        %2694 = vmatpush1.bf16.msra.mxu0 0
        %2695 = vmatprep.subr.bf16.mxu0 0
        %2696 = vmatpush1.bf16.msra.mxu0 0
        %2697 = vmatprep.subr.bf16.mxu0 0
        %2698 = vmatpush1.bf16.msra.mxu0 0
        %2699 = vmatprep.subr.bf16.mxu0 0
        %2700 = vmatpush1.bf16.msra.mxu0 0
        %2701 = vmatprep.subr.bf16.mxu0 0
        %2702 = vmatpush1.bf16.msra.mxu0 0
        %2703 = vmatprep.subr.bf16.mxu0 0
        %2704 = vmatpush1.bf16.msra.mxu0 0
        %2705 = vmatprep.subr.bf16.mxu0 0
        %2706 = vmatpush1.bf16.msra.mxu0 0
        %2707 = vmatprep.subr.bf16.mxu0 0
        %2708 = vmatpush1.bf16.msra.mxu0 0
        %2709 = vmatprep.subr.bf16.mxu0 0
        %2710 = vmatpush1.bf16.msra.mxu0 0
        %2711 = vmatprep.mubr.bf16.mxu0 0
        %2712 = vmatmul.mubr.bf16.gmra.mrb[0].mxu0 %v2668
        %v2713 = vpop.f32.mrb[0].mxu0
        %v2714 = vadd.f32 %v2610, %v2713
        %v2715 = vpop.f32.mrb[0].mxu0
        %v2716 = vpop.f32.mrb[0].mxu0
        %v2717 = vadd.f32 %v2615, %v2716
        %v2718 = vpop.f32.mrb[0].mxu0
        %2719 = vmatprep.mubr.bf16.mxu0 0
        %2720 = vmatmul.mubr.bf16.gmra.mrb[0].mxu0 %v2671
        %v2721 = vpop.f32.mrb[0].mxu0
        %v2722 = vadd.f32 %v2620, %v2721
        %v2723 = vpop.f32.mrb[0].mxu0
        %v2724 = vpop.f32.mrb[0].mxu0
        %v2725 = vadd.f32 %v2625, %v2724
        %v2726 = vpop.f32.mrb[0].mxu0
        %2727 = vmatprep.mubr.bf16.mxu0 0
        %2728 = vmatmul.mubr.bf16.gmra.mrb[0].mxu0 %v2674
        %v2729 = vpop.f32.mrb[0].mxu0
        %v2730 = vadd.f32 %v2630, %v2729
        %v2731 = vpop.f32.mrb[0].mxu0
        %v2732 = vpop.f32.mrb[0].mxu0
        %v2733 = vadd.f32 %v2635, %v2732
        %v2734 = vpop.f32.mrb[0].mxu0
        %2735 = vmatprep.mubr.bf16.mxu0 0
        %2736 = vmatmul.mubr.bf16.gmra.mrb[0].mxu0 %v2677
        %v2737 = vpop.f32.mrb[0].mxu0
        %v2738 = vadd.f32 %v2640, %v2737
        %v2739 = vpop.f32.mrb[0].mxu0
        %v2740 = vpop.f32.mrb[0].mxu0
        %v2741 = vadd.f32 %v2645, %v2740
        %v2742 = vpop.f32.mrb[0].mxu0
        %2743 = vdwg.mxu0
        %v2744 = vadd.f32 %v2714, %v948
        %v2745 = vadd.f32 %v2717, %v949
        %v2746 = vadd.f32 %v2722, %v950
        %v2747 = vadd.f32 %v2725, %v951
        %v2748 = vadd.f32 %v2730, %v952
        %v2749 = vadd.f32 %v2733, %v953
        %v2750 = vadd.f32 %v2738, %v954
        %v2751 = vadd.f32 %v2741, %v955
        %v2752 = vadd.f32 %v2744, %v2745
        %v2753 = vadd.f32 %v2752, %v2746
        %v2754 = vadd.f32 %v2753, %v2747
        %v2755 = vadd.f32 %v2754, %v2748
        %v2756 = vadd.f32 %v2755, %v2749
        %v2757 = vadd.f32 %v2756, %v2750
        %v2758 = vadd.f32 %v2757, %v2751
        %v2759 = vrot.slane %v2758, 4
        %v2760 = vadd.f32 %v2758, %v2759
        %v2761 = vrot.slane %v2760, 2
        %v2762 = vadd.f32 %v2760, %v2761
        %v2763 = vrot.slane %v2762, 1
        %v2764 = vadd.f32 %v2762, %v2763
        %v2765 = vrcp.pop 64.0
        %v2766 = vmul.f32 %v2764, %v2765
        %v2767 = vsub.f32 %v2744, %v2766
        %v2768 = vsub.f32 %v2745, %v2766
        %v2769 = vsub.f32 %v2746, %v2766
        %v2770 = vsub.f32 %v2747, %v2766
        %v2771 = vsub.f32 %v2748, %v2766
        %v2772 = vsub.f32 %v2749, %v2766
        %v2773 = vsub.f32 %v2750, %v2766
        %v2774 = vsub.f32 %v2751, %v2766
        %v2775 = vmul.f32 %v2767, %v2767
        %v2776 = vmul.f32 %v2768, %v2768
        %v2777 = vmul.f32 %v2769, %v2769
        %v2778 = vmul.f32 %v2770, %v2770
        %v2779 = vmul.f32 %v2771, %v2771
        %v2780 = vmul.f32 %v2772, %v2772
        %v2781 = vmul.f32 %v2773, %v2773
        %v2782 = vmul.f32 %v2774, %v2774
        %v2783 = vadd.f32 %v2775, %v2776
        %v2784 = vadd.f32 %v2783, %v2777
        %v2785 = vadd.f32 %v2784, %v2778
        %v2786 = vadd.f32 %v2785, %v2779
        %v2787 = vadd.f32 %v2786, %v2780
        %v2788 = vadd.f32 %v2787, %v2781
        %v2789 = vadd.f32 %v2788, %v2782
        %v2790 = vrot.slane %v2789, 4
        %v2791 = vadd.f32 %v2789, %v2790
        %v2792 = vrot.slane %v2791, 2
        %v2793 = vadd.f32 %v2791, %v2792
        %v2794 = vrot.slane %v2793, 1
        %v2795 = vadd.f32 %v2793, %v2794
        %v2796 = vmul.f32 %v2795, %v2765
        %v2797 = vadd.f32 %v2796, 1e-05
        %v2798 = vrsqrt.pop %v2797
        %v2799 = vmul.f32 %v2767, %v2798
        %v2800 = vmul.f32 %v2768, %v2798
        %v2801 = vmul.f32 %v2769, %v2798
        %v2802 = vmul.f32 %v2770, %v2798
        %v2803 = vmul.f32 %v2771, %v2798
        %v2804 = vmul.f32 %v2772, %v2798
        %v2805 = vmul.f32 %v2773, %v2798
        %v2806 = vmul.f32 %v2774, %v2798
        %v2807 = vld [vmem:[%s12] sm:$0xff]
        %v2808 = vld [vmem:[%s12 + $0x8] sm:$0xff]
        %v2809 = vld [vmem:[%s12 + $0x10] sm:$0xff]
        %v2810 = vld [vmem:[%s12 + $0x18] sm:$0xff]
        %v2811 = vld [vmem:[%s12 + $0x20] sm:$0xff]
        %v2812 = vld [vmem:[%s12 + $0x28] sm:$0xff]
        %v2813 = vld [vmem:[%s12 + $0x30] sm:$0xff]
        %v2814 = vld [vmem:[%s12 + $0x38] sm:$0xff]
        %2816 = vset.pattern.permute.xlu0 0
        %2817 = vperm.xlu0 %2816, %v2807
        %v2818 = vpop.permute.xlu0 %2817
        %2821 = vset.pattern.permute.xlu0 0
        %2822 = vperm.xlu0 %2821, %v2808
        %v2823 = vpop.permute.xlu0 %2822
        %2826 = vset.pattern.permute.xlu0 0
        %2827 = vperm.xlu0 %2826, %v2809
        %v2828 = vpop.permute.xlu0 %2827
        %2831 = vset.pattern.permute.xlu0 0
        %2832 = vperm.xlu0 %2831, %v2810
        %v2833 = vpop.permute.xlu0 %2832
        %2836 = vset.pattern.permute.xlu0 0
        %2837 = vperm.xlu0 %2836, %v2811
        %v2838 = vpop.permute.xlu0 %2837
        %2841 = vset.pattern.permute.xlu0 0
        %2842 = vperm.xlu0 %2841, %v2812
        %v2843 = vpop.permute.xlu0 %2842
        %2846 = vset.pattern.permute.xlu0 0
        %2847 = vperm.xlu0 %2846, %v2813
        %v2848 = vpop.permute.xlu0 %2847
        %2851 = vset.pattern.permute.xlu0 0
        %2852 = vperm.xlu0 %2851, %v2814
        %v2853 = vpop.permute.xlu0 %2852
        %v2855 = vadd.f32 %v2799, %v2818
        %v2856 = vadd.f32 %v2800, %v2823
        %v2857 = vadd.f32 %v2801, %v2828
        %v2858 = vadd.f32 %v2802, %v2833
        %v2859 = vadd.f32 %v2803, %v2838
        %v2860 = vadd.f32 %v2804, %v2843
        %v2861 = vadd.f32 %v2805, %v2848
        %v2862 = vadd.f32 %v2806, %v2853
        %v2863 = vld [vmem:[%s11] sm:$0xff]
        %v2864 = vld [vmem:[%s11 + $0x8] sm:$0xff]
        %v2865 = vld [vmem:[%s11 + $0x10] sm:$0xff]
        %v2866 = vld [vmem:[%s11 + $0x18] sm:$0xff]
        %v2867 = vld [vmem:[%s11 + $0x20] sm:$0xff]
        %v2868 = vld [vmem:[%s11 + $0x28] sm:$0xff]
        %v2869 = vld [vmem:[%s11 + $0x30] sm:$0xff]
        %v2870 = vld [vmem:[%s11 + $0x38] sm:$0xff]
        %2872 = vset.pattern.permute.xlu0 0
        %2873 = vperm.xlu0 %2872, %v2863
        %v2874 = vpop.permute.xlu0 %2873
        %2877 = vset.pattern.permute.xlu0 0
        %2878 = vperm.xlu0 %2877, %v2864
        %v2879 = vpop.permute.xlu0 %2878
        %2882 = vset.pattern.permute.xlu0 0
        %2883 = vperm.xlu0 %2882, %v2865
        %v2884 = vpop.permute.xlu0 %2883
        %2887 = vset.pattern.permute.xlu0 0
        %2888 = vperm.xlu0 %2887, %v2866
        %v2889 = vpop.permute.xlu0 %2888
        %2892 = vset.pattern.permute.xlu0 0
        %2893 = vperm.xlu0 %2892, %v2867
        %v2894 = vpop.permute.xlu0 %2893
        %2897 = vset.pattern.permute.xlu0 0
        %2898 = vperm.xlu0 %2897, %v2868
        %v2899 = vpop.permute.xlu0 %2898
        %2902 = vset.pattern.permute.xlu0 0
        %2903 = vperm.xlu0 %2902, %v2869
        %v2904 = vpop.permute.xlu0 %2903
        %2907 = vset.pattern.permute.xlu0 0
        %2908 = vperm.xlu0 %2907, %v2870
        %v2909 = vpop.permute.xlu0 %2908
        %v2911 = vmul.f32 %v2855, %v2874
        %v2912 = vmul.f32 %v2856, %v2879
        %v2913 = vmul.f32 %v2857, %v2884
        %v2914 = vmul.f32 %v2858, %v2889
        %v2915 = vmul.f32 %v2859, %v2894
        %v2916 = vmul.f32 %v2860, %v2899
        %v2917 = vmul.f32 %v2861, %v2904
        %v2918 = vmul.f32 %v2862, %v2909
        %2919 = vst [vmem:[%s538] sm:$0xff] %v2911
        %2920 = vst [vmem:[%s538 + $0x8] sm:$0xff] %v2912
        %2921 = vst [vmem:[%s538 + $0x10] sm:$0xff] %v2913
        %2922 = vst [vmem:[%s538 + $0x18] sm:$0xff] %v2914
        %2923 = vst [vmem:[%s538 + $0x20] sm:$0xff] %v2915
        %2924 = vst [vmem:[%s538 + $0x28] sm:$0xff] %v2916
        %2925 = vst [vmem:[%s538 + $0x30] sm:$0xff] %v2917
        %2926 = vst [vmem:[%s538 + $0x38] sm:$0xff] %v2918
        %s2927 = sand.u32 %s347, 1
        %s2928 = scalar_lea.sflag [#allocation6], %s2927
        %s2929 = sand.u32 %s347, 1
        %s2930 = smul.addr %s2929, 64
        %s2931 = scalar_lea.vmem [#allocation7], %s2930
        %s2932 = sand.u32 %s375, 1
        %s2933 = scalar_lea.sflag [#allocation9], %s2932
        %s2934 = sand.u32 %s375, 1
        %s2935 = smul.addr %s2934, 256
        %s2936 = scalar_lea.vmem [#allocation8], %s2935
        // Predicated region
        $region81: #{tpu_custom_call.1} parent=71 // pred_check
          %p2937 = pneg %p357
        $region82: #{tpu_custom_call.1} parent=71 // pred_check_branch
          %2939 = sbr.rel (%p2937) target = $region84
        $region83: #{tpu_custom_call.1} parent=71 // pred_region
          %s2941 = ssub.s32 1024, 1024
          %2942 = vsyncadd %s2928, %s2941
          %s2943 = smul.addr %s39, 16
          %s2944 = sadd.s32 %s40, %s2943
          %s2945 = smul.addr %s2944, 128
          %s2946 = scalar_lea.hbm %s13, %s2945
          %s2947 = sshll.u32 %s2931, 4
          %s2948 = int_to_ptr.vmem [resolvable:$true] %s2947
          %2953 = dma.vmem_to_hbm [thread:$0]  %s2948, 1024, %s2946, %s2928, 128, 256, 8
        $region84: #{tpu_custom_call.1} parent=71 // pred_fallthru
          _
        // Predicated region
        $region85: #{tpu_custom_call.1} parent=71 // pred_check
          %p2954 = pneg %p385
        $region86: #{tpu_custom_call.1} parent=71 // pred_check_branch
          %2956 = sbr.rel (%p2954) target = $region88
        $region87: #{tpu_custom_call.1} parent=71 // pred_region
          #allocation11 [shape = 'u32[6]{0}', space=smem, size = 0x18, scoped, tag = 'DMA stride descriptor']
          %s2958 = ssub.s32 4096, 4096
          %2959 = vsyncadd %s2933, %s2958
          %s2960 = smul.addr %s39, 32
          %s2961 = sadd.s32 %s40, %s2960
          %s2962 = smul.addr %s2961, 64
          %s2963 = scalar_lea.hbm %s14, %s2962
          %s2965 = sshll.u32 1, 14
          %s2966 = sxor.u32 4294967295, %s2965
          %s2969 = sshll.u32 7, 18
          %s2970 = sxor.u32 4294967295, %s2969
          %s2971 = sand.u32 0, %s2970
          %s2973 = sor.u32 %s2971, 0
          %s2975 = sshll.u32 3, 24
          %s2976 = sxor.u32 4294967295, %s2975
          %s2977 = sand.u32 %s2973, %s2976
          %s2979 = sor.u32 %s2977, 0
          %s2980 = sshll.u32 %s2936, 4
          %s2981 = int_to_ptr.vmem [resolvable:$true] %s2980
          %2987 = sst [smem:[#allocation11]] 1024
          %s2988 = scalar_lea.smem [#allocation11], 1
          %2989 = sst [smem:[%s2988]] 4096
          %s2990 = scalar_lea.smem [#allocation11], 2
          %2991 = sst [smem:[%s2990]] 16
          %s2992 = scalar_lea.smem [#allocation11], 3
          %2993 = sst [smem:[%s2992]] 64
          %s2994 = scalar_lea.smem [#allocation11], 4
          %2995 = sst [smem:[%s2994]] 128
          %s2996 = scalar_lea.smem [#allocation11], 5
          %2997 = sst [smem:[%s2996]] 4
          %2999 = dma.general %s2981, 4096, %s2963, %s2933, [#allocation10], [#allocation11], %s2979, 0
        $region88: #{tpu_custom_call.1} parent=71 // pred_fallthru
          _
      $region72: #{tpu_custom_call.1} parent=5 // pred_fallthru
        _
      %p3000 = scmp.le.s32.totalorder 2, %s30
      // Predicated region
      $region89: #{tpu_custom_call.1} parent=5 // pred_check
        %p3001 = pneg %p3000
      $region90: #{tpu_custom_call.1} parent=5 // pred_check_branch
        %3003 = sbr.rel (%p3001) target = $region92
      $region91: #{tpu_custom_call.1} parent=5 // pred_region
        %s3004 = ssub.s32 %s30, 2
        // Predicated region
        $region93: #{tpu_custom_call.1} parent=91 // pred_check
          %p3005 = pneg %p363
        $region94: #{tpu_custom_call.1} parent=91 // pred_check_branch
          %3007 = sbr.rel (%p3005) target = $region96
        $region95: #{tpu_custom_call.1} parent=91 // pred_region
          %s3008 = sand.u32 %s348, 1
          %s3009 = scalar_lea.sflag [#allocation6], %s3008
          %s3010 = sand.u32 %s348, 1
          %s3011 = smul.addr %s3010, 64
          %s3012 = scalar_lea.vmem [#allocation7], %s3011
          %3013 = dma.done %s3009, 1024
        $region96: #{tpu_custom_call.1} parent=91 // pred_fallthru
          _
        // Predicated region
        $region97: #{tpu_custom_call.1} parent=91 // pred_check
          %p3014 = pneg %p391
        $region98: #{tpu_custom_call.1} parent=91 // pred_check_branch
          %3016 = sbr.rel (%p3014) target = $region100
        $region99: #{tpu_custom_call.1} parent=91 // pred_region
          %s3017 = sand.u32 %s376, 1
          %s3018 = scalar_lea.sflag [#allocation9], %s3017
          %s3019 = sand.u32 %s376, 1
          %s3020 = smul.addr %s3019, 256
          %s3021 = scalar_lea.vmem [#allocation8], %s3020
          %3022 = dma.done %s3018, 4096
        $region100: #{tpu_custom_call.1} parent=91 // pred_fallthru
          _
      $region92: #{tpu_custom_call.1} parent=5 // pred_fallthru
        _
    $region6: #{tpu_custom_call.1} parent=1 // loop_footer
      %s34 = sadd.s32 1, %s30
    $region7: #{tpu_custom_call.1} parent=1 // loop_footer_branch
      %29 = sbr.rel target = $region3
    $region8: #{tpu_custom_call.1} parent=1 // loop_exit
      _
    %3023 = vsyncpa [#allocation5], 1
    %s3024 = scalar_lea.sflag [#allocation5], 1
    %3025 = vsyncpa %s3024, 1
    %3026 = vsyncpa [#allocation6], 1
    %s3027 = scalar_lea.sflag [#allocation6], 1
    %3028 = vsyncpa %s3027, 1
    %3029 = vsyncpa [#allocation9], 1
    %s3030 = scalar_lea.sflag [#allocation9], 1
    %3031 = vsyncpa %s3030, 1

// kernel: tpu_custom_call.1
$region0: #{tpu_custom_call.1}
  #allocation0 [shape = 'u32[]', space=smem, size = 0x4, offset = 0x4, fixed_abs, tag = 'smem constant byte address 0x4 - core index']
  #allocation1 [shape = 'u32[144,128]{1,0:T(1,128)}', space=vmem, size = 0x12000, scoped, tag = 'internal scratch']
  #allocation2 [shape = 'bf16[64,128]{1,0:T(16,128)(2,1)}', space=vmem, size = 0x4000, scoped, tag = 'scratch operand']
  #allocation3 [shape = 'bf16[64,128]{1,0:T(16,128)(2,1)}', space=vmem, size = 0x4000, scoped, tag = 'scratch operand']
  #allocation10 [shape = 's32[]', space=sflag, size = 0x4, offset = 0, fixed_abs, tag = 'sflag constant byte address 0x0 - dummy sync flag']
  %s0 = inlined_call_operand.hbm [shape: f32[2,64,256], index: 0, kind: input, shape index: {}]
  %s1 = inlined_call_operand.vmem [shape: bf16[2,64,128], index: 1, kind: input, shape index: {}]
  %s2 = inlined_call_operand.vmem [shape: bf16[2,64,128], index: 2, kind: input, shape index: {}]
  %s3 = inlined_call_operand.vmem [shape: bf16[64,64], index: 3, kind: input, shape index: {}]
  %s4 = inlined_call_operand.vmem [shape: f32[64,1], index: 4, kind: input, shape index: {}]
  %s5 = inlined_call_operand.vmem [shape: bf16[64,64], index: 5, kind: input, shape index: {}]
  %s6 = inlined_call_operand.vmem [shape: f32[64,1], index: 6, kind: input, shape index: {}]
  %s7 = inlined_call_operand.vmem [shape: bf16[64,64], index: 7, kind: input, shape index: {}]
  %s8 = inlined_call_operand.vmem [shape: f32[64,1], index: 8, kind: input, shape index: {}]
  %s9 = inlined_call_operand.vmem [shape: bf16[64,64], index: 9, kind: input, shape index: {}]
  %s10 = inlined_call_operand.vmem [shape: f32[64,1], index: 10, kind: input, shape index: {}]
  %s11 = inlined_call_operand.vmem [shape: f32[64,1], index: 11, kind: input, shape index: {}]
  %s12 = inlined_call_operand.vmem [shape: f32[64,1], index: 12, kind: input, shape index: {}]
  %s13 = inlined_call_operand.hbm [shape: f32[2,64,256], index: 13, kind: output, shape index: {0}]
  %s14 = inlined_call_operand.hbm [shape: bf16[4,2,128,256], index: 14, kind: output, shape index: {1}]
  %15 = xla_tuple %s13, %s14
  %s16 = sld [smem:[#allocation0]]
  $region101: #{tpu_custom_call.1} parent=0
    _
  %s18 = ssub.s32 1, %s16
  %s19 = scalar_select 0, %s18, %s16
  $region1: #{tpu_custom_call.1} parent=0
    #allocation4 [shape = 'u8[65536]{0}', space=vmem, size = 0x10000, scoped, tag = 'input window, operand 0']
    #allocation5 [shape = 's32[2]{0}', space=sflag, size = 0x8, scoped, tag = 'scoped memory for tpu_custom_call.1']
    #allocation6 [shape = 's32[2]{0}', space=sflag, size = 0x8, scoped, tag = 'scoped memory for tpu_custom_call.1']
    #allocation7 [shape = 'u8[65536]{0}', space=vmem, size = 0x10000, scoped, tag = 'output window, operand 0']
    #allocation8 [shape = 'u8[262144]{0}', space=vmem, size = 0x40000, scoped, tag = 'output window, operand 1']
    #allocation9 [shape = 's32[2]{0}', space=sflag, size = 0x8, scoped, tag = 'scoped memory for tpu_custom_call.1']
    %20 = vsyncpa [#allocation5], 0
    %s21 = scalar_lea.sflag [#allocation5], 1
    %22 = vsyncpa %s21, 0
    %23 = vsyncpa [#allocation6], 0
    %s24 = scalar_lea.sflag [#allocation6], 1
    %25 = vsyncpa %s24, 0
    %26 = vsyncpa [#allocation9], 0
    %s27 = scalar_lea.sflag [#allocation9], 1
    %28 = vsyncpa %s27, 0
    loop: start=0, step=1, limit=6
    $region2: #{tpu_custom_call.1} parent=1 // loop_pre_header
      _
    $region3: #{tpu_custom_call.1} parent=1 // loop_header
      %s30 = sphi 0, %s34
      %p31 = scmp.ge.s32.totalorder %s30, 6
      %s37 = sphi 0, %s49
      %s38 = sphi 0, %s45
      %s39 = sphi 0, %s37
      %s40 = sphi 0, %s38
      %s41 = sphi 0, %s39
      %s42 = sphi 0, %s40
      %s54 = sphi 0, %s56
      %s57 = sphi 0, %s54
      %s58 = sphi 0, %s57
      %s74 = sphi 0, %s58
      %s80 = sphi 0, %s82
      %s83 = sphi 0, %s80
      %s84 = sphi 0, %s83
      %s100 = sphi 0, %s84
      %s106 = sphi 0, %s108
      %s109 = sphi 0, %s106
      %s110 = sphi 0, %s109
      %s126 = sphi 0, %s110
      %s130 = sphi 0, %s130
      %s132 = sphi 0, %s130
      %s133 = sphi 0, %s132
      %s147 = sphi 0, %s133
      %s151 = sphi 0, %s151
      %s153 = sphi 0, %s151
      %s154 = sphi 0, %s153
      %s168 = sphi 0, %s154
      %s172 = sphi 0, %s172
      %s174 = sphi 0, %s172
      %s175 = sphi 0, %s174
      %s189 = sphi 0, %s175
      %s193 = sphi 0, %s193
      %s195 = sphi 0, %s193
      %s196 = sphi 0, %s195
      %s210 = sphi 0, %s196
      %s214 = sphi 0, %s214
      %s216 = sphi 0, %s214
      %s217 = sphi 0, %s216
      %s231 = sphi 0, %s217
      %s235 = sphi 0, %s235
      %s237 = sphi 0, %s235
      %s238 = sphi 0, %s237
      %s252 = sphi 0, %s238
      %s256 = sphi 0, %s256
      %s258 = sphi 0, %s256
      %s259 = sphi 0, %s258
      %s273 = sphi 0, %s259
      %s277 = sphi 0, %s277
      %s279 = sphi 0, %s277
      %s280 = sphi 0, %s279
      %s294 = sphi 0, %s280
      %s298 = sphi 0, %s298
      %s300 = sphi 0, %s298
      %s301 = sphi 0, %s300
      %s315 = sphi 0, %s301
      %s319 = sphi 0, %s319
      %s321 = sphi 0, %s319
      %s322 = sphi 0, %s321
      %s336 = sphi 0, %s322
      %s344 = sphi 0, %s346
      %s347 = sphi 0, %s344
      %s348 = sphi 0, %s347
      %s364 = sphi 0, %s348
      %s372 = sphi 0, %s374
      %s375 = sphi 0, %s372
      %s376 = sphi 0, %s375
      %s392 = sphi 0, %s376
    $region4: #{tpu_custom_call.1} parent=1 // loop_header_branch
      %33 = sbr.rel (%p31) target = $region8
    $region5: #{tpu_custom_call.1} parent=1 // loop_body
      %s35 = ssub.s32 %s30, 1
      %s36 = ssub.s32 %s30, 2
      %s43 = sadd.s32 1, %s38
      %p44 = scmp.ge.s32.totalorder %s43, 2
      %s45 = scalar_select %p44, 0, %s43
      %s46 = sadd.s32 1, %s37
      %s47 = scalar_select %p44, %s46, %s37
      %p48 = scmp.ge.s32.totalorder %s47, 2
      %s49 = scalar_select %p48, 0, %s47
      %s50 = ssub.s32 %s37, %s49
      %s51 = ssub.s32 %s38, %s45
      %s52 = sor.u32 %s50, %s51
      %p53 = scmp.eq.s32.totalorder %s52, 0
      %s55 = sadd.s32 %s54, 1
      %s56 = scalar_select %p53, %s54, %s55
      %p59 = pneg %p53
      %p60 = scmp.eq.s32.totalorder %s30, 3
      %p61 = por %p59, %p60
      %p62 = scmp.ne.s32.totalorder %s54, %s57
      %p63 = scmp.eq.s32.totalorder %s30, 0
      %p64 = por %p62, %p63
      %p65 = scmp.ne.s32.totalorder %s54, %s57
      %p66 = scmp.eq.s32.totalorder %s35, 3
      %p67 = por %p65, %p66
      %p68 = scmp.ne.s32.totalorder %s57, %s58
      %p69 = scmp.eq.s32.totalorder %s35, 0
      %p70 = por %p68, %p69
      %p71 = scmp.ne.s32.totalorder %s57, %s58
      %p72 = scmp.eq.s32.totalorder %s36, 3
      %p73 = por %p71, %p72
      %p75 = scmp.ne.s32.totalorder %s58, %s74
      %p76 = scmp.eq.s32.totalorder %s36, 0
      %p77 = por %p75, %p76
      %s78 = ssub.s32 %s37, %s49
      %p79 = scmp.eq.s32.totalorder %s78, 0
      %s81 = sadd.s32 %s80, 1
      %s82 = scalar_select %p79, %s80, %s81
      %p85 = pneg %p79
      %p86 = scmp.eq.s32.totalorder %s30, 3
      %p87 = por %p85, %p86
      %p88 = scmp.ne.s32.totalorder %s80, %s83
      %p89 = scmp.eq.s32.totalorder %s30, 0
      %p90 = por %p88, %p89
      %p91 = scmp.ne.s32.totalorder %s80, %s83
      %p92 = scmp.eq.s32.totalorder %s35, 3
      %p93 = por %p91, %p92
      %p94 = scmp.ne.s32.totalorder %s83, %s84
      %p95 = scmp.eq.s32.totalorder %s35, 0
      %p96 = por %p94, %p95
      %p97 = scmp.ne.s32.totalorder %s83, %s84
      %p98 = scmp.eq.s32.totalorder %s36, 3
      %p99 = por %p97, %p98
      %p101 = scmp.ne.s32.totalorder %s84, %s100
      %p102 = scmp.eq.s32.totalorder %s36, 0
      %p103 = por %p101, %p102
      %s104 = ssub.s32 %s37, %s49
      %p105 = scmp.eq.s32.totalorder %s104, 0
      %s107 = sadd.s32 %s106, 1
      %s108 = scalar_select %p105, %s106, %s107
      %p111 = pneg %p105
      %p112 = scmp.eq.s32.totalorder %s30, 3
      %p113 = por %p111, %p112
      %p114 = scmp.ne.s32.totalorder %s106, %s109
      %p115 = scmp.eq.s32.totalorder %s30, 0
      %p116 = por %p114, %p115
      %p117 = scmp.ne.s32.totalorder %s106, %s109
      %p118 = scmp.eq.s32.totalorder %s35, 3
      %p119 = por %p117, %p118
      %p120 = scmp.ne.s32.totalorder %s109, %s110
      %p121 = scmp.eq.s32.totalorder %s35, 0
      %p122 = por %p120, %p121
      %p123 = scmp.ne.s32.totalorder %s109, %s110
      %p124 = scmp.eq.s32.totalorder %s36, 3
      %p125 = por %p123, %p124
      %p127 = scmp.ne.s32.totalorder %s110, %s126
      %p128 = scmp.eq.s32.totalorder %s36, 0
      %p129 = por %p127, %p128
      %s131 = sadd.s32 %s130, 1
      %p134 = scmp.eq.s32.totalorder %s30, 3
      %p135 = scmp.ne.s32.totalorder %s130, %s132
      %p136 = scmp.eq.s32.totalorder %s30, 0
      %p137 = por %p135, %p136
      %p138 = scmp.ne.s32.totalorder %s130, %s132
      %p139 = scmp.eq.s32.totalorder %s35, 3
      %p140 = por %p138, %p139
      %p141 = scmp.ne.s32.totalorder %s132, %s133
      %p142 = scmp.eq.s32.totalorder %s35, 0
      %p143 = por %p141, %p142
      %p144 = scmp.ne.s32.totalorder %s132, %s133
      %p145 = scmp.eq.s32.totalorder %s36, 3
      %p146 = por %p144, %p145
      %p148 = scmp.ne.s32.totalorder %s133, %s147
      %p149 = scmp.eq.s32.totalorder %s36, 0
      %p150 = por %p148, %p149
      %s152 = sadd.s32 %s151, 1
      %p155 = scmp.eq.s32.totalorder %s30, 3
      %p156 = scmp.ne.s32.totalorder %s151, %s153
      %p157 = scmp.eq.s32.totalorder %s30, 0
      %p158 = por %p156, %p157
      %p159 = scmp.ne.s32.totalorder %s151, %s153
      %p160 = scmp.eq.s32.totalorder %s35, 3
      %p161 = por %p159, %p160
      %p162 = scmp.ne.s32.totalorder %s153, %s154
      %p163 = scmp.eq.s32.totalorder %s35, 0
      %p164 = por %p162, %p163
      %p165 = scmp.ne.s32.totalorder %s153, %s154
      %p166 = scmp.eq.s32.totalorder %s36, 3
      %p167 = por %p165, %p166
      %p169 = scmp.ne.s32.totalorder %s154, %s168
      %p170 = scmp.eq.s32.totalorder %s36, 0
      %p171 = por %p169, %p170
      %s173 = sadd.s32 %s172, 1
      %p176 = scmp.eq.s32.totalorder %s30, 3
      %p177 = scmp.ne.s32.totalorder %s172, %s174
      %p178 = scmp.eq.s32.totalorder %s30, 0
      %p179 = por %p177, %p178
      %p180 = scmp.ne.s32.totalorder %s172, %s174
      %p181 = scmp.eq.s32.totalorder %s35, 3
      %p182 = por %p180, %p181
      %p183 = scmp.ne.s32.totalorder %s174, %s175
      %p184 = scmp.eq.s32.totalorder %s35, 0
      %p185 = por %p183, %p184
      %p186 = scmp.ne.s32.totalorder %s174, %s175
      %p187 = scmp.eq.s32.totalorder %s36, 3
      %p188 = por %p186, %p187
      %p190 = scmp.ne.s32.totalorder %s175, %s189
      %p191 = scmp.eq.s32.totalorder %s36, 0
      %p192 = por %p190, %p191
      %s194 = sadd.s32 %s193, 1
      %p197 = scmp.eq.s32.totalorder %s30, 3
      %p198 = scmp.ne.s32.totalorder %s193, %s195
      %p199 = scmp.eq.s32.totalorder %s30, 0
      %p200 = por %p198, %p199
      %p201 = scmp.ne.s32.totalorder %s193, %s195
      %p202 = scmp.eq.s32.totalorder %s35, 3
      %p203 = por %p201, %p202
      %p204 = scmp.ne.s32.totalorder %s195, %s196
      %p205 = scmp.eq.s32.totalorder %s35, 0
      %p206 = por %p204, %p205
      %p207 = scmp.ne.s32.totalorder %s195, %s196
      %p208 = scmp.eq.s32.totalorder %s36, 3
      %p209 = por %p207, %p208
      %p211 = scmp.ne.s32.totalorder %s196, %s210
      %p212 = scmp.eq.s32.totalorder %s36, 0
      %p213 = por %p211, %p212
      %s215 = sadd.s32 %s214, 1
      %p218 = scmp.eq.s32.totalorder %s30, 3
      %p219 = scmp.ne.s32.totalorder %s214, %s216
      %p220 = scmp.eq.s32.totalorder %s30, 0
      %p221 = por %p219, %p220
      %p222 = scmp.ne.s32.totalorder %s214, %s216
      %p223 = scmp.eq.s32.totalorder %s35, 3
      %p224 = por %p222, %p223
      %p225 = scmp.ne.s32.totalorder %s216, %s217
      %p226 = scmp.eq.s32.totalorder %s35, 0
      %p227 = por %p225, %p226
      %p228 = scmp.ne.s32.totalorder %s216, %s217
      %p229 = scmp.eq.s32.totalorder %s36, 3
      %p230 = por %p228, %p229
      %p232 = scmp.ne.s32.totalorder %s217, %s231
      %p233 = scmp.eq.s32.totalorder %s36, 0
      %p234 = por %p232, %p233
      %s236 = sadd.s32 %s235, 1
      %p239 = scmp.eq.s32.totalorder %s30, 3
      %p240 = scmp.ne.s32.totalorder %s235, %s237
      %p241 = scmp.eq.s32.totalorder %s30, 0
      %p242 = por %p240, %p241
      %p243 = scmp.ne.s32.totalorder %s235, %s237
      %p244 = scmp.eq.s32.totalorder %s35, 3
      %p245 = por %p243, %p244
      %p246 = scmp.ne.s32.totalorder %s237, %s238
      %p247 = scmp.eq.s32.totalorder %s35, 0
      %p248 = por %p246, %p247
      %p249 = scmp.ne.s32.totalorder %s237, %s238
      %p250 = scmp.eq.s32.totalorder %s36, 3
      %p251 = por %p249, %p250
      %p253 = scmp.ne.s32.totalorder %s238, %s252
      %p254 = scmp.eq.s32.totalorder %s36, 0
      %p255 = por %p253, %p254
      %s257 = sadd.s32 %s256, 1
      %p260 = scmp.eq.s32.totalorder %s30, 3
      %p261 = scmp.ne.s32.totalorder %s256, %s258
      %p262 = scmp.eq.s32.totalorder %s30, 0
      %p263 = por %p261, %p262
      %p264 = scmp.ne.s32.totalorder %s256, %s258
      %p265 = scmp.eq.s32.totalorder %s35, 3
      %p266 = por %p264, %p265
      %p267 = scmp.ne.s32.totalorder %s258, %s259
      %p268 = scmp.eq.s32.totalorder %s35, 0
      %p269 = por %p267, %p268
      %p270 = scmp.ne.s32.totalorder %s258, %s259
      %p271 = scmp.eq.s32.totalorder %s36, 3
      %p272 = por %p270, %p271
      %p274 = scmp.ne.s32.totalorder %s259, %s273
      %p275 = scmp.eq.s32.totalorder %s36, 0
      %p276 = por %p274, %p275
      %s278 = sadd.s32 %s277, 1
      %p281 = scmp.eq.s32.totalorder %s30, 3
      %p282 = scmp.ne.s32.totalorder %s277, %s279
      %p283 = scmp.eq.s32.totalorder %s30, 0
      %p284 = por %p282, %p283
      %p285 = scmp.ne.s32.totalorder %s277, %s279
      %p286 = scmp.eq.s32.totalorder %s35, 3
      %p287 = por %p285, %p286
      %p288 = scmp.ne.s32.totalorder %s279, %s280
      %p289 = scmp.eq.s32.totalorder %s35, 0
      %p290 = por %p288, %p289
      %p291 = scmp.ne.s32.totalorder %s279, %s280
      %p292 = scmp.eq.s32.totalorder %s36, 3
      %p293 = por %p291, %p292
      %p295 = scmp.ne.s32.totalorder %s280, %s294
      %p296 = scmp.eq.s32.totalorder %s36, 0
      %p297 = por %p295, %p296
      %s299 = sadd.s32 %s298, 1
      %p302 = scmp.eq.s32.totalorder %s30, 3
      %p303 = scmp.ne.s32.totalorder %s298, %s300
      %p304 = scmp.eq.s32.totalorder %s30, 0
      %p305 = por %p303, %p304
      %p306 = scmp.ne.s32.totalorder %s298, %s300
      %p307 = scmp.eq.s32.totalorder %s35, 3
      %p308 = por %p306, %p307
      %p309 = scmp.ne.s32.totalorder %s300, %s301
      %p310 = scmp.eq.s32.totalorder %s35, 0
      %p311 = por %p309, %p310
      %p312 = scmp.ne.s32.totalorder %s300, %s301
      %p313 = scmp.eq.s32.totalorder %s36, 3
      %p314 = por %p312, %p313
      %p316 = scmp.ne.s32.totalorder %s301, %s315
      %p317 = scmp.eq.s32.totalorder %s36, 0
      %p318 = por %p316, %p317
      %s320 = sadd.s32 %s319, 1
      %p323 = scmp.eq.s32.totalorder %s30, 3
      %p324 = scmp.ne.s32.totalorder %s319, %s321
      %p325 = scmp.eq.s32.totalorder %s30, 0
      %p326 = por %p324, %p325
      %p327 = scmp.ne.s32.totalorder %s319, %s321
      %p328 = scmp.eq.s32.totalorder %s35, 3
      %p329 = por %p327, %p328
      %p330 = scmp.ne.s32.totalorder %s321, %s322
      %p331 = scmp.eq.s32.totalorder %s35, 0
      %p332 = por %p330, %p331
      %p333 = scmp.ne.s32.totalorder %s321, %s322
      %p334 = scmp.eq.s32.totalorder %s36, 3
      %p335 = por %p333, %p334
      %p337 = scmp.ne.s32.totalorder %s322, %s336
      %p338 = scmp.eq.s32.totalorder %s36, 0
      %p339 = por %p337, %p338
      %s340 = ssub.s32 %s37, %s49
      %s341 = ssub.s32 %s38, %s45
      %s342 = sor.u32 %s340, %s341
      %p343 = scmp.eq.s32.totalorder %s342, 0
      %s345 = sadd.s32 %s344, 1
      %s346 = scalar_select %p343, %s344, %s345
      %p349 = pneg %p343
      %p350 = scmp.eq.s32.totalorder %s30, 3
      %p351 = por %p349, %p350
      %p352 = scmp.ne.s32.totalorder %s344, %s347
      %p353 = scmp.eq.s32.totalorder %s30, 0
      %p354 = por %p352, %p353
      %p355 = scmp.ne.s32.totalorder %s344, %s347
      %p356 = scmp.eq.s32.totalorder %s35, 3
      %p357 = por %p355, %p356
      %p358 = scmp.ne.s32.totalorder %s347, %s348
      %p359 = scmp.eq.s32.totalorder %s35, 0
      %p360 = por %p358, %p359
      %p361 = scmp.ne.s32.totalorder %s347, %s348
      %p362 = scmp.eq.s32.totalorder %s36, 3
      %p363 = por %p361, %p362
      %p365 = scmp.ne.s32.totalorder %s348, %s364
      %p366 = scmp.eq.s32.totalorder %s36, 0
      %p367 = por %p365, %p366
      %s368 = ssub.s32 %s37, %s49
      %s369 = ssub.s32 %s38, %s45
      %s370 = sor.u32 %s368, %s369
      %p371 = scmp.eq.s32.totalorder %s370, 0
      %s373 = sadd.s32 %s372, 1
      %s374 = scalar_select %p371, %s372, %s373
      %p377 = pneg %p371
      %p378 = scmp.eq.s32.totalorder %s30, 3
      %p379 = por %p377, %p378
      %p380 = scmp.ne.s32.totalorder %s372, %s375
      %p381 = scmp.eq.s32.totalorder %s30, 0
      %p382 = por %p380, %p381
      %p383 = scmp.ne.s32.totalorder %s372, %s375
      %p384 = scmp.eq.s32.totalorder %s35, 3
      %p385 = por %p383, %p384
      %p386 = scmp.ne.s32.totalorder %s375, %s376
      %p387 = scmp.eq.s32.totalorder %s35, 0
      %p388 = por %p386, %p387
      %p389 = scmp.ne.s32.totalorder %s375, %s376
      %p390 = scmp.eq.s32.totalorder %s36, 3
      %p391 = por %p389, %p390
      %p393 = scmp.ne.s32.totalorder %s376, %s392
      %p394 = scmp.eq.s32.totalorder %s36, 0
      %p395 = por %p393, %p394
      %p396 = scmp.le.s32.totalorder 1, %s30
      %p397 = scmp.lt.s32.totalorder %s30, 5
      %p398 = pnand %p396, %p397
      %p399 = pneg %p398
      // Predicated region
      $region9: #{tpu_custom_call.1} parent=5 // pred_check
        _
      $region10: #{tpu_custom_call.1} parent=5 // pred_check_branch
        %401 = sbr.rel (%p398) target = $region12
      $region11: #{tpu_custom_call.1} parent=5 // pred_region
        %s402 = ssub.s32 %s30, 1
        // Predicated region
        $region13: #{tpu_custom_call.1} parent=11 // pred_check
          %p403 = pneg %p143
        $region14: #{tpu_custom_call.1} parent=11 // pred_check_branch
          %405 = sbr.rel (%p403) target = $region16
        $region15: #{tpu_custom_call.1} parent=11 // pred_region
          _
        $region16: #{tpu_custom_call.1} parent=11 // pred_fallthru
          _
        // Predicated region
        $region17: #{tpu_custom_call.1} parent=11 // pred_check
          %p406 = pneg %p164
        $region18: #{tpu_custom_call.1} parent=11 // pred_check_branch
          %408 = sbr.rel (%p406) target = $region20
        $region19: #{tpu_custom_call.1} parent=11 // pred_region
          _
        $region20: #{tpu_custom_call.1} parent=11 // pred_fallthru
          _
        // Predicated region
        $region21: #{tpu_custom_call.1} parent=11 // pred_check
          %p409 = pneg %p185
        $region22: #{tpu_custom_call.1} parent=11 // pred_check_branch
          %411 = sbr.rel (%p409) target = $region24
        $region23: #{tpu_custom_call.1} parent=11 // pred_region
          _
        $region24: #{tpu_custom_call.1} parent=11 // pred_fallthru
          _
        // Predicated region
        $region25: #{tpu_custom_call.1} parent=11 // pred_check
          %p412 = pneg %p206
        $region26: #{tpu_custom_call.1} parent=11 // pred_check_branch
          %414 = sbr.rel (%p412) target = $region28
        $region27: #{tpu_custom_call.1} parent=11 // pred_region
          _
        $region28: #{tpu_custom_call.1} parent=11 // pred_fallthru
          _
        // Predicated region
        $region29: #{tpu_custom_call.1} parent=11 // pred_check
          %p415 = pneg %p227
        $region30: #{tpu_custom_call.1} parent=11 // pred_check_branch
          %417 = sbr.rel (%p415) target = $region32
        $region31: #{tpu_custom_call.1} parent=11 // pred_region
          _
        $region32: #{tpu_custom_call.1} parent=11 // pred_fallthru
          _
        // Predicated region
        $region33: #{tpu_custom_call.1} parent=11 // pred_check
          %p418 = pneg %p248
        $region34: #{tpu_custom_call.1} parent=11 // pred_check_branch
          %420 = sbr.rel (%p418) target = $region36
        $region35: #{tpu_custom_call.1} parent=11 // pred_region
          _
        $region36: #{tpu_custom_call.1} parent=11 // pred_fallthru
          _
        // Predicated region
        $region37: #{tpu_custom_call.1} parent=11 // pred_check
          %p421 = pneg %p269
        $region38: #{tpu_custom_call.1} parent=11 // pred_check_branch
          %423 = sbr.rel (%p421) target = $region40
        $region39: #{tpu_custom_call.1} parent=11 // pred_region
          _
        $region40: #{tpu_custom_call.1} parent=11 // pred_fallthru
          _
        // Predicated region
        $region41: #{tpu_custom_call.1} parent=11 // pred_check
          %p424 = pneg %p290
        $region42: #{tpu_custom_call.1} parent=11 // pred_check_branch
          %426 = sbr.rel (%p424) target = $region44
        $region43: #{tpu_custom_call.1} parent=11 // pred_region
          _
        $region44: #{tpu_custom_call.1} parent=11 // pred_fallthru
          _
        // Predicated region
        $region45: #{tpu_custom_call.1} parent=11 // pred_check
          %p427 = pneg %p311
        $region46: #{tpu_custom_call.1} parent=11 // pred_check_branch
          %429 = sbr.rel (%p427) target = $region48
        $region47: #{tpu_custom_call.1} parent=11 // pred_region
          _
        $region48: #{tpu_custom_call.1} parent=11 // pred_fallthru
          _
        // Predicated region
        $region49: #{tpu_custom_call.1} parent=11 // pred_check
          %p430 = pneg %p332
        $region50: #{tpu_custom_call.1} parent=11 // pred_check_branch
          %432 = sbr.rel (%p430) target = $region52
        $region51: #{tpu_custom_call.1} parent=11 // pred_region
          _
        $region52: #{tpu_custom_call.1} parent=11 // pred_fallthru
          _
      $region12: #{tpu_custom_call.1} parent=5 // pred_fallthru
        _
      %p433 = scmp.lt.s32.totalorder %s30, 4
      // Predicated region
      $region53: #{tpu_custom_call.1} parent=5 // pred_check
        %p434 = pneg %p433
      $region54: #{tpu_custom_call.1} parent=5 // pred_check_branch
        %436 = sbr.rel (%p434) target = $region56
      $region55: #{tpu_custom_call.1} parent=5 // pred_region
        // Predicated region
        $region57: #{tpu_custom_call.1} parent=55 // pred_check
          %p437 = pneg %p64
        $region58: #{tpu_custom_call.1} parent=55 // pred_check_branch
          %439 = sbr.rel (%p437) target = $region60
        $region59: #{tpu_custom_call.1} parent=55 // pred_region
          %s440 = sand.u32 %s54, 1
          %s441 = scalar_lea.sflag [#allocation5], %s440
          %s442 = sand.u32 %s54, 1
          %s443 = smul.addr %s442, 64
          %s444 = scalar_lea.vmem [#allocation4], %s443
          %s446 = ssub.s32 1024, 1024
          %447 = vsyncadd %s441, %s446
          %s448 = smul.addr %s37, 16
          %s449 = sadd.s32 %s38, %s448
          %s450 = smul.addr %s449, 128
          %s451 = scalar_lea.hbm %s0, %s450
          %s452 = sshll.u32 %s444, 4
          %s453 = int_to_ptr.vmem [resolvable:$true] %s452
          %458 = dma.hbm_to_vmem [thread:$0]  %s451, 1024, %s453, %s441, 256, 128, 8
        $region60: #{tpu_custom_call.1} parent=55 // pred_fallthru
          _
        // Predicated region
        $region61: #{tpu_custom_call.1} parent=55 // pred_check
          %p459 = pneg %p90
        $region62: #{tpu_custom_call.1} parent=55 // pred_check_branch
          %461 = sbr.rel (%p459) target = $region64
        $region63: #{tpu_custom_call.1} parent=55 // pred_region
          %p462 = scmp.lt.s32.totalorder %s37, 1
          %s463 = scalar_select %p462, %s37, 1
          %s464 = smul.addr %s463, 8
          %s465 = smul.addr %s464, 4
          %s466 = scalar_lea.vmem %s1, %s465
        $region64: #{tpu_custom_call.1} parent=55 // pred_fallthru
          _
        // Predicated region
        $region65: #{tpu_custom_call.1} parent=55 // pred_check
          %p467 = pneg %p116
        $region66: #{tpu_custom_call.1} parent=55 // pred_check_branch
          %469 = sbr.rel (%p467) target = $region68
        $region67: #{tpu_custom_call.1} parent=55 // pred_region
          %p470 = scmp.lt.s32.totalorder %s37, 1
          %s471 = scalar_select %p470, %s37, 1
          %s472 = smul.addr %s471, 8
          %s473 = smul.addr %s472, 4
          %s474 = scalar_lea.vmem %s2, %s473
        $region68: #{tpu_custom_call.1} parent=55 // pred_fallthru
          _
      $region56: #{tpu_custom_call.1} parent=5 // pred_fallthru
        _
      %p475 = scmp.le.s32.totalorder 1, %s30
      %p476 = scmp.lt.s32.totalorder %s30, 5
      %p477 = pnand %p475, %p476
      %p478 = pneg %p477
      // Predicated region
      $region69: #{tpu_custom_call.1} parent=5 // pred_check
        _
      $region70: #{tpu_custom_call.1} parent=5 // pred_check_branch
        %480 = sbr.rel (%p477) target = $region72
      $region71: #{tpu_custom_call.1} parent=5 // pred_region
        %s481 = ssub.s32 %s30, 1
        %s482 = sand.u32 %s57, 1
        %s483 = scalar_lea.sflag [#allocation5], %s482
        %s484 = sand.u32 %s57, 1
        %s485 = smul.addr %s484, 64
        %s486 = scalar_lea.vmem [#allocation4], %s485
        // Predicated region
        $region73: #{tpu_custom_call.1} parent=71 // pred_check
          %p487 = pneg %p70
        $region74: #{tpu_custom_call.1} parent=71 // pred_check_branch
          %489 = sbr.rel (%p487) target = $region76
        $region75: #{tpu_custom_call.1} parent=71 // pred_region
          %490 = dma.done %s483, 1024
        $region76: #{tpu_custom_call.1} parent=71 // pred_fallthru
          _
        %s491 = sand.u32 %s57, 1
        %s492 = scalar_lea.sflag [#allocation5], %s491
        %s493 = sand.u32 %s57, 1
        %s494 = smul.addr %s493, 64
        %s495 = scalar_lea.vmem [#allocation4], %s494
        %p496 = pneg %p70
        %p497 = pneg %p67
        %p498 = scmp.lt.s32.totalorder %s39, 1
        %s499 = scalar_select %p498, %s39, 1
        %s500 = smul.addr %s499, 8
        %s501 = smul.addr %s500, 4
        %s502 = scalar_lea.vmem %s1, %s501
        %p503 = pneg %p96
        %p504 = pneg %p93
        %p505 = scmp.lt.s32.totalorder %s39, 1
        %s506 = scalar_select %p505, %s39, 1
        %s507 = smul.addr %s506, 8
        %s508 = smul.addr %s507, 4
        %s509 = scalar_lea.vmem %s2, %s508
        %p510 = pneg %p122
        %p511 = pneg %p119
        %p512 = pneg %p143
        %p513 = pneg %p140
        %p514 = pneg %p164
        %p515 = pneg %p161
        %p516 = pneg %p185
        %p517 = pneg %p182
        %p518 = pneg %p206
        %p519 = pneg %p203
        %p520 = pneg %p227
        %p521 = pneg %p224
        %p522 = pneg %p248
        %p523 = pneg %p245
        %p524 = pneg %p269
        %p525 = pneg %p266
        %p526 = pneg %p290
        %p527 = pneg %p287
        %p528 = pneg %p311
        %p529 = pneg %p308
        %p530 = pneg %p332
        %p531 = pneg %p329
        %p532 = pneg %p360
        %p533 = pneg %p357
        %s534 = sand.u32 %s347, 1
        %s535 = scalar_lea.sflag [#allocation6], %s534
        %s536 = sand.u32 %s347, 1
        %s537 = smul.addr %s536, 64
        %s538 = scalar_lea.vmem [#allocation7], %s537
        %p539 = pneg %p388
        %p540 = pneg %p385
        %s541 = sand.u32 %s375, 1
        %s542 = scalar_lea.sflag [#allocation9], %s541
        %s543 = sand.u32 %s375, 1
        %s544 = smul.addr %s543, 256
        %s545 = scalar_lea.vmem [#allocation8], %s544
        %p546 = scmp.lt.s32.totalorder %s39, 1
        %s547 = scalar_select %p546, %s39, 1
        %s548 = smul.addr %s547, 8
        %s549 = smul.addr %s548, 4
        %s550 = scalar_lea.vmem %s1, %s549
        %p551 = scmp.lt.s32.totalorder %s39, 1
        %s552 = scalar_select %p551, %s39, 1
        %s553 = smul.addr %s552, 8
        %s554 = smul.addr %s553, 4
        %s555 = scalar_lea.vmem %s2, %s554
        %p557 = scmp.eq.s32.totalorder %s40, 0
        // Predicated region
        $region77: #{tpu_custom_call.1} parent=71 // pred_check
          %p558 = pneg %p557
        $region78: #{tpu_custom_call.1} parent=71 // pred_check_branch
          %560 = sbr.rel (%p558) target = $region80
        $region79: #{tpu_custom_call.1} parent=71 // pred_region
          %v561 = vld [vmem:[%s5] sm:$0xf]
          %v562 = vld [vmem:[%s5 + $0x4] sm:$0xf]
          %v563 = vld [vmem:[%s5 + $0x8] sm:$0xf]
          %v564 = vld [vmem:[%s5 + $0xc] sm:$0xf]
          %v565 = vld [vmem:[%s5 + $0x10] sm:$0xf]
          %v566 = vld [vmem:[%s5 + $0x14] sm:$0xf]
          %v567 = vld [vmem:[%s5 + $0x18] sm:$0xf]
          %v568 = vld [vmem:[%s5 + $0x1c] sm:$0xf]
          %v569 = vld [vmem:[%s550] sm:$0xf]
          %v570 = vld [vmem:[%s550 + $0x4] sm:$0xf]
          %v571 = vld [vmem:[%s550 + $0x8] sm:$0xf]
          %v572 = vld [vmem:[%s550 + $0xc] sm:$0xf]
          %v573 = vld [vmem:[%s550 + $0x10] sm:$0xf]
          %v574 = vld [vmem:[%s550 + $0x14] sm:$0xf]
          %v575 = vld [vmem:[%s550 + $0x18] sm:$0xf]
          %v576 = vld [vmem:[%s550 + $0x1c] sm:$0xf]
          %v577 = vld [vmem:[%s6] sm:$0xff]
          %v578 = vld [vmem:[%s6 + $0x8] sm:$0xff]
          %v579 = vld [vmem:[%s6 + $0x10] sm:$0xff]
          %v580 = vld [vmem:[%s6 + $0x18] sm:$0xff]
          %v581 = vld [vmem:[%s6 + $0x20] sm:$0xff]
          %v582 = vld [vmem:[%s6 + $0x28] sm:$0xff]
          %v583 = vld [vmem:[%s6 + $0x30] sm:$0xff]
          %v584 = vld [vmem:[%s6 + $0x38] sm:$0xff]
          %586 = vset.pattern.permute.xlu0 0
          %587 = vperm.xlu0 %586, %v577
          %v588 = vpop.permute.xlu0 %587
          %591 = vset.pattern.permute.xlu0 0
          %592 = vperm.xlu0 %591, %v578
          %v593 = vpop.permute.xlu0 %592
          %596 = vset.pattern.permute.xlu0 0
          %597 = vperm.xlu0 %596, %v579
          %v598 = vpop.permute.xlu0 %597
          %601 = vset.pattern.permute.xlu0 0
          %602 = vperm.xlu0 %601, %v580
          %v603 = vpop.permute.xlu0 %602
          %606 = vset.pattern.permute.xlu0 0
          %607 = vperm.xlu0 %606, %v581
          %v608 = vpop.permute.xlu0 %607
          %611 = vset.pattern.permute.xlu0 0
          %612 = vperm.xlu0 %611, %v582
          %v613 = vpop.permute.xlu0 %612
          %616 = vset.pattern.permute.xlu0 0
          %617 = vperm.xlu0 %616, %v583
          %v618 = vpop.permute.xlu0 %617
          %621 = vset.pattern.permute.xlu0 0
          %622 = vperm.xlu0 %621, %v584
          %v623 = vpop.permute.xlu0 %622
          %v633 = vunpack.c.l.b16 %v561
          %v634 = vunpack.c.l.b16 %v562
          %v635 = vunpack.c.l.b16 %v563
          %v636 = vunpack.c.l.b16 %v564
          %v637 = vunpack.c.l.b16 %v565
          %v638 = vunpack.c.l.b16 %v566
          %v639 = vunpack.c.l.b16 %v567
          %v640 = vunpack.c.l.b16 %v568
          %v641 = vpack.c.b16 %v634, %v633
          %v642 = vpack.c.b16 %v636, %v635
          %v643 = vpack.c.b16 %v638, %v637
          %v644 = vpack.c.b16 %v640, %v639
          %v653 = vunpack.c.l.b16 %v569
          %v654 = vunpack.c.l.b16 %v570
          %v655 = vunpack.c.l.b16 %v571
          %v656 = vunpack.c.l.b16 %v572
          %v657 = vunpack.c.l.b16 %v573
          %v658 = vunpack.c.l.b16 %v574
          %v659 = vunpack.c.l.b16 %v575
          %v660 = vunpack.c.l.b16 %v576
          %v661 = vpack.c.b16 %v654, %v653
          %v662 = vpack.c.b16 %v656, %v655
          %v663 = vpack.c.b16 %v658, %v657
          %v664 = vpack.c.b16 %v660, %v659
          %vm669 = vcmask 523264
          %v671 = vsel %vm669, %v641, 0
          %v674 = vsel %vm669, %v642, 0
          %v677 = vsel %vm669, %v643, 0
          %v680 = vsel %vm669, %v644, 0
          %682 = vmatprep.subr.bf16.mxu0 0
          %683 = vmatpush1.bf16.msra.mxu0 %v661
          %684 = vmatprep.subr.bf16.mxu0 0
          %685 = vmatpush1.bf16.msra.mxu0 %v662
          %686 = vmatprep.subr.bf16.mxu0 0
          %687 = vmatpush1.bf16.msra.mxu0 %v663
          %688 = vmatprep.subr.bf16.mxu0 0
          %689 = vmatpush1.bf16.msra.mxu0 %v664
          %690 = vmatprep.subr.bf16.mxu0 0
          %691 = vmatpush1.bf16.msra.mxu0 0
          %692 = vmatprep.subr.bf16.mxu0 0
          %693 = vmatpush1.bf16.msra.mxu0 0
          %694 = vmatprep.subr.bf16.mxu0 0
          %695 = vmatpush1.bf16.msra.mxu0 0
          %696 = vmatprep.subr.bf16.mxu0 0
          %697 = vmatpush1.bf16.msra.mxu0 0
          %698 = vmatprep.subr.bf16.mxu0 0
          %699 = vmatpush1.bf16.msra.mxu0 0
          %700 = vmatprep.subr.bf16.mxu0 0
          %701 = vmatpush1.bf16.msra.mxu0 0
          %702 = vmatprep.subr.bf16.mxu0 0
          %703 = vmatpush1.bf16.msra.mxu0 0
          %704 = vmatprep.subr.bf16.mxu0 0
          %705 = vmatpush1.bf16.msra.mxu0 0
          %706 = vmatprep.subr.bf16.mxu0 0
          %707 = vmatpush1.bf16.msra.mxu0 0
          %708 = vmatprep.subr.bf16.mxu0 0
          %709 = vmatpush1.bf16.msra.mxu0 0
          %710 = vmatprep.subr.bf16.mxu0 0
          %711 = vmatpush1.bf16.msra.mxu0 0
          %712 = vmatprep.subr.bf16.mxu0 0
          %713 = vmatpush1.bf16.msra.mxu0 0
          %714 = vmatprep.mubr.bf16.mxu0 0
          %715 = vmatmul.mubr.bf16.gmra.mrb[0].mxu0 %v671
          %v716 = vpop.f32.mrb[0].mxu0
          %v717 = vadd.f32 %v588, %v716
          %v718 = vpop.f32.mrb[0].mxu0
          %v719 = vpop.f32.mrb[0].mxu0
          %v720 = vadd.f32 %v593, %v719
          %v721 = vpop.f32.mrb[0].mxu0
          %722 = vmatprep.mubr.bf16.mxu0 0
          %723 = vmatmul.mubr.bf16.gmra.mrb[0].mxu0 %v674
          %v724 = vpop.f32.mrb[0].mxu0
          %v725 = vadd.f32 %v598, %v724
          %v726 = vpop.f32.mrb[0].mxu0
          %v727 = vpop.f32.mrb[0].mxu0
          %v728 = vadd.f32 %v603, %v727
          %v729 = vpop.f32.mrb[0].mxu0
          %730 = vmatprep.mubr.bf16.mxu0 0
          %731 = vmatmul.mubr.bf16.gmra.mrb[0].mxu0 %v677
          %v732 = vpop.f32.mrb[0].mxu0
          %v733 = vadd.f32 %v608, %v732
          %v734 = vpop.f32.mrb[0].mxu0
          %v735 = vpop.f32.mrb[0].mxu0
          %v736 = vadd.f32 %v613, %v735
          %v737 = vpop.f32.mrb[0].mxu0
          %738 = vmatprep.mubr.bf16.mxu0 0
          %739 = vmatmul.mubr.bf16.gmra.mrb[0].mxu0 %v680
          %v740 = vpop.f32.mrb[0].mxu0
          %v741 = vadd.f32 %v618, %v740
          %v742 = vpop.f32.mrb[0].mxu0
          %v743 = vpop.f32.mrb[0].mxu0
          %v744 = vadd.f32 %v623, %v743
          %v745 = vpop.f32.mrb[0].mxu0
          %746 = vdwg.mxu0
          %v747 = vld [vmem:[%s7] sm:$0xf]
          %v748 = vld [vmem:[%s7 + $0x4] sm:$0xf]
          %v749 = vld [vmem:[%s7 + $0x8] sm:$0xf]
          %v750 = vld [vmem:[%s7 + $0xc] sm:$0xf]
          %v751 = vld [vmem:[%s7 + $0x10] sm:$0xf]
          %v752 = vld [vmem:[%s7 + $0x14] sm:$0xf]
          %v753 = vld [vmem:[%s7 + $0x18] sm:$0xf]
          %v754 = vld [vmem:[%s7 + $0x1c] sm:$0xf]
          %v755 = vld [vmem:[%s555] sm:$0xf]
          %v756 = vld [vmem:[%s555 + $0x4] sm:$0xf]
          %v757 = vld [vmem:[%s555 + $0x8] sm:$0xf]
          %v758 = vld [vmem:[%s555 + $0xc] sm:$0xf]
          %v759 = vld [vmem:[%s555 + $0x10] sm:$0xf]
          %v760 = vld [vmem:[%s555 + $0x14] sm:$0xf]
          %v761 = vld [vmem:[%s555 + $0x18] sm:$0xf]
          %v762 = vld [vmem:[%s555 + $0x1c] sm:$0xf]
          %v763 = vld [vmem:[%s8] sm:$0xff]
          %v764 = vld [vmem:[%s8 + $0x8] sm:$0xff]
          %v765 = vld [vmem:[%s8 + $0x10] sm:$0xff]
          %v766 = vld [vmem:[%s8 + $0x18] sm:$0xff]
          %v767 = vld [vmem:[%s8 + $0x20] sm:$0xff]
          %v768 = vld [vmem:[%s8 + $0x28] sm:$0xff]
          %v769 = vld [vmem:[%s8 + $0x30] sm:$0xff]
          %v770 = vld [vmem:[%s8 + $0x38] sm:$0xff]
          %772 = vset.pattern.permute.xlu0 0
          %773 = vperm.xlu0 %772, %v763
          %v774 = vpop.permute.xlu0 %773
          %777 = vset.pattern.permute.xlu0 0
          %778 = vperm.xlu0 %777, %v764
          %v779 = vpop.permute.xlu0 %778
          %782 = vset.pattern.permute.xlu0 0
          %783 = vperm.xlu0 %782, %v765
          %v784 = vpop.permute.xlu0 %783
          %787 = vset.pattern.permute.xlu0 0
          %788 = vperm.xlu0 %787, %v766
          %v789 = vpop.permute.xlu0 %788
          %792 = vset.pattern.permute.xlu0 0
          %793 = vperm.xlu0 %792, %v767
          %v794 = vpop.permute.xlu0 %793
          %797 = vset.pattern.permute.xlu0 0
          %798 = vperm.xlu0 %797, %v768
          %v799 = vpop.permute.xlu0 %798
          %802 = vset.pattern.permute.xlu0 0
          %803 = vperm.xlu0 %802, %v769
          %v804 = vpop.permute.xlu0 %803
          %807 = vset.pattern.permute.xlu0 0
          %808 = vperm.xlu0 %807, %v770
          %v809 = vpop.permute.xlu0 %808
          %v819 = vunpack.c.l.b16 %v747
          %v820 = vunpack.c.l.b16 %v748
          %v821 = vunpack.c.l.b16 %v749
          %v822 = vunpack.c.l.b16 %v750
          %v823 = vunpack.c.l.b16 %v751
          %v824 = vunpack.c.l.b16 %v752
          %v825 = vunpack.c.l.b16 %v753
          %v826 = vunpack.c.l.b16 %v754
          %v827 = vpack.c.b16 %v820, %v819
          %v828 = vpack.c.b16 %v822, %v821
          %v829 = vpack.c.b16 %v824, %v823
          %v830 = vpack.c.b16 %v826, %v825
          %v839 = vunpack.c.l.b16 %v755
          %v840 = vunpack.c.l.b16 %v756
          %v841 = vunpack.c.l.b16 %v757
          %v842 = vunpack.c.l.b16 %v758
          %v843 = vunpack.c.l.b16 %v759
          %v844 = vunpack.c.l.b16 %v760
          %v845 = vunpack.c.l.b16 %v761
          %v846 = vunpack.c.l.b16 %v762
          %v847 = vpack.c.b16 %v840, %v839
          %v848 = vpack.c.b16 %v842, %v841
          %v849 = vpack.c.b16 %v844, %v843
          %v850 = vpack.c.b16 %v846, %v845
          %v856 = vsel %vm669, %v827, 0
          %v859 = vsel %vm669, %v828, 0
          %v862 = vsel %vm669, %v829, 0
          %v865 = vsel %vm669, %v830, 0
          %867 = vmatprep.subr.bf16.mxu0 0
          %868 = vmatpush1.bf16.msra.mxu0 %v847
          %869 = vmatprep.subr.bf16.mxu0 0
          %870 = vmatpush1.bf16.msra.mxu0 %v848
          %871 = vmatprep.subr.bf16.mxu0 0
          %872 = vmatpush1.bf16.msra.mxu0 %v849
          %873 = vmatprep.subr.bf16.mxu0 0
          %874 = vmatpush1.bf16.msra.mxu0 %v850
          %875 = vmatprep.subr.bf16.mxu0 0
          %876 = vmatpush1.bf16.msra.mxu0 0
          %877 = vmatprep.subr.bf16.mxu0 0
          %878 = vmatpush1.bf16.msra.mxu0 0
          %879 = vmatprep.subr.bf16.mxu0 0
          %880 = vmatpush1.bf16.msra.mxu0 0
          %881 = vmatprep.subr.bf16.mxu0 0
          %882 = vmatpush1.bf16.msra.mxu0 0
          %883 = vmatprep.subr.bf16.mxu0 0
          %884 = vmatpush1.bf16.msra.mxu0 0
          %885 = vmatprep.subr.bf16.mxu0 0
          %886 = vmatpush1.bf16.msra.mxu0 0
          %887 = vmatprep.subr.bf16.mxu0 0
          %888 = vmatpush1.bf16.msra.mxu0 0
          %889 = vmatprep.subr.bf16.mxu0 0
          %890 = vmatpush1.bf16.msra.mxu0 0
          %891 = vmatprep.subr.bf16.mxu0 0
          %892 = vmatpush1.bf16.msra.mxu0 0
          %893 = vmatprep.subr.bf16.mxu0 0
          %894 = vmatpush1.bf16.msra.mxu0 0
          %895 = vmatprep.subr.bf16.mxu0 0
          %896 = vmatpush1.bf16.msra.mxu0 0
          %897 = vmatprep.subr.bf16.mxu0 0
          %898 = vmatpush1.bf16.msra.mxu0 0
          %899 = vmatprep.mubr.bf16.mxu0 0
          %900 = vmatmul.mubr.bf16.gmra.mrb[0].mxu0 %v856
          %v901 = vpop.f32.mrb[0].mxu0
          %v902 = vadd.f32 %v774, %v901
          %v903 = vpop.f32.mrb[0].mxu0
          %v904 = vpop.f32.mrb[0].mxu0
          %v905 = vadd.f32 %v779, %v904
          %v906 = vpop.f32.mrb[0].mxu0
          %907 = vmatprep.mubr.bf16.mxu0 0
          %908 = vmatmul.mubr.bf16.gmra.mrb[0].mxu0 %v859
          %v909 = vpop.f32.mrb[0].mxu0
          %v910 = vadd.f32 %v784, %v909
          %v911 = vpop.f32.mrb[0].mxu0
          %v912 = vpop.f32.mrb[0].mxu0
          %v913 = vadd.f32 %v789, %v912
          %v914 = vpop.f32.mrb[0].mxu0
          %915 = vmatprep.mubr.bf16.mxu0 0
          %916 = vmatmul.mubr.bf16.gmra.mrb[0].mxu0 %v862
          %v917 = vpop.f32.mrb[0].mxu0
          %v918 = vadd.f32 %v794, %v917
          %v919 = vpop.f32.mrb[0].mxu0
          %v920 = vpop.f32.mrb[0].mxu0
          %v921 = vadd.f32 %v799, %v920
          %v922 = vpop.f32.mrb[0].mxu0
          %923 = vmatprep.mubr.bf16.mxu0 0
          %924 = vmatmul.mubr.bf16.gmra.mrb[0].mxu0 %v865
          %v925 = vpop.f32.mrb[0].mxu0
          %v926 = vadd.f32 %v804, %v925
          %v927 = vpop.f32.mrb[0].mxu0
          %v928 = vpop.f32.mrb[0].mxu0
          %v929 = vadd.f32 %v809, %v928
          %v930 = vpop.f32.mrb[0].mxu0
          %931 = vdwg.mxu0
          %v932 = vpack.c.bf16 %v720, %v717
          %v933 = vpack.c.bf16 %v728, %v725
          %v934 = vpack.c.bf16 %v736, %v733
          %v935 = vpack.c.bf16 %v744, %v741
          %936 = vst [vmem:[#allocation2] sm:$0xff] %v932
          %937 = vst [vmem:[#allocation2 + $0x8] sm:$0xff] %v933
          %938 = vst [vmem:[#allocation2 + $0x10] sm:$0xff] %v934
          %939 = vst [vmem:[#allocation2 + $0x18] sm:$0xff] %v935
          %v940 = vpack.c.bf16 %v905, %v902
          %v941 = vpack.c.bf16 %v913, %v910
          %v942 = vpack.c.bf16 %v921, %v918
          %v943 = vpack.c.bf16 %v929, %v926
          %944 = vst [vmem:[#allocation3] sm:$0xff] %v940
          %945 = vst [vmem:[#allocation3 + $0x8] sm:$0xff] %v941
          %946 = vst [vmem:[#allocation3 + $0x10] sm:$0xff] %v942
          %947 = vst [vmem:[#allocation3 + $0x18] sm:$0xff] %v943
        $region80: #{tpu_custom_call.1} parent=71 // pred_fallthru
          _
        %v948 = vld [vmem:[%s486] sm:$0xff]
        %v949 = vld [vmem:[%s486 + $0x8] sm:$0xff]
        %v950 = vld [vmem:[%s486 + $0x10] sm:$0xff]
        %v951 = vld [vmem:[%s486 + $0x18] sm:$0xff]
        %v952 = vld [vmem:[%s486 + $0x20] sm:$0xff]
        %v953 = vld [vmem:[%s486 + $0x28] sm:$0xff]
        %v954 = vld [vmem:[%s486 + $0x30] sm:$0xff]
        %v955 = vld [vmem:[%s486 + $0x38] sm:$0xff]
        %v956 = vld [vmem:[%s3] sm:$0xf]
        %v957 = vld [vmem:[%s3 + $0x4] sm:$0xf]
        %v958 = vld [vmem:[%s3 + $0x8] sm:$0xf]
        %v959 = vld [vmem:[%s3 + $0xc] sm:$0xf]
        %v960 = vld [vmem:[%s3 + $0x10] sm:$0xf]
        %v961 = vld [vmem:[%s3 + $0x14] sm:$0xf]
        %v962 = vld [vmem:[%s3 + $0x18] sm:$0xf]
        %v963 = vld [vmem:[%s3 + $0x1c] sm:$0xf]
        %v964 = vpack.c.bf16 %v949, %v948
        %v965 = vpack.c.bf16 %v951, %v950
        %v966 = vpack.c.bf16 %v953, %v952
        %v967 = vpack.c.bf16 %v955, %v954
        %v968 = vld [vmem:[%s4] sm:$0xff]
        %v969 = vld [vmem:[%s4 + $0x8] sm:$0xff]
        %v970 = vld [vmem:[%s4 + $0x10] sm:$0xff]
        %v971 = vld [vmem:[%s4 + $0x18] sm:$0xff]
        %v972 = vld [vmem:[%s4 + $0x20] sm:$0xff]
        %v973 = vld [vmem:[%s4 + $0x28] sm:$0xff]
        %v974 = vld [vmem:[%s4 + $0x30] sm:$0xff]
        %v975 = vld [vmem:[%s4 + $0x38] sm:$0xff]
        %977 = vset.pattern.permute.xlu0 0
        %978 = vperm.xlu0 %977, %v968
        %v979 = vpop.permute.xlu0 %978
        %982 = vset.pattern.permute.xlu0 0
        %983 = vperm.xlu0 %982, %v969
        %v984 = vpop.permute.xlu0 %983
        %987 = vset.pattern.permute.xlu0 0
        %988 = vperm.xlu0 %987, %v970
        %v989 = vpop.permute.xlu0 %988
        %992 = vset.pattern.permute.xlu0 0
        %993 = vperm.xlu0 %992, %v971
        %v994 = vpop.permute.xlu0 %993
        %997 = vset.pattern.permute.xlu0 0
        %998 = vperm.xlu0 %997, %v972
        %v999 = vpop.permute.xlu0 %998
        %1002 = vset.pattern.permute.xlu0 0
        %1003 = vperm.xlu0 %1002, %v973
        %v1004 = vpop.permute.xlu0 %1003
        %1007 = vset.pattern.permute.xlu0 0
        %1008 = vperm.xlu0 %1007, %v974
        %v1009 = vpop.permute.xlu0 %1008
        %1012 = vset.pattern.permute.xlu0 0
        %1013 = vperm.xlu0 %1012, %v975
        %v1014 = vpop.permute.xlu0 %1013
        %v1024 = vunpack.c.l.b16 %v956
        %v1025 = vunpack.c.l.b16 %v957
        %v1026 = vunpack.c.l.b16 %v958
        %v1027 = vunpack.c.l.b16 %v959
        %v1028 = vunpack.c.l.b16 %v960
        %v1029 = vunpack.c.l.b16 %v961
        %v1030 = vunpack.c.l.b16 %v962
        %v1031 = vunpack.c.l.b16 %v963
        %v1032 = vpack.c.b16 %v1025, %v1024
        %v1033 = vpack.c.b16 %v1027, %v1026
        %v1034 = vpack.c.b16 %v1029, %v1028
        %v1035 = vpack.c.b16 %v1031, %v1030
        %vm1036 = vcmask 523264
        %v1038 = vsel %vm1036, %v1032, 0
        %v1041 = vsel %vm1036, %v1033, 0
        %v1044 = vsel %vm1036, %v1034, 0
        %v1047 = vsel %vm1036, %v1035, 0
        %1049 = vmatprep.subr.bf16.mxu0 0
        %1050 = vmatpush1.bf16.msra.mxu0 %v964
        %1051 = vmatprep.subr.bf16.mxu0 0
        %1052 = vmatpush1.bf16.msra.mxu0 %v965
        %1053 = vmatprep.subr.bf16.mxu0 0
        %1054 = vmatpush1.bf16.msra.mxu0 %v966
        %1055 = vmatprep.subr.bf16.mxu0 0
        %1056 = vmatpush1.bf16.msra.mxu0 %v967
        %1057 = vmatprep.subr.bf16.mxu0 0
        %1058 = vmatpush1.bf16.msra.mxu0 0
        %1059 = vmatprep.subr.bf16.mxu0 0
        %1060 = vmatpush1.bf16.msra.mxu0 0
        %1061 = vmatprep.subr.bf16.mxu0 0
        %1062 = vmatpush1.bf16.msra.mxu0 0
        %1063 = vmatprep.subr.bf16.mxu0 0
        %1064 = vmatpush1.bf16.msra.mxu0 0
        %1065 = vmatprep.subr.bf16.mxu0 0
        %1066 = vmatpush1.bf16.msra.mxu0 0
        %1067 = vmatprep.subr.bf16.mxu0 0
        %1068 = vmatpush1.bf16.msra.mxu0 0
        %1069 = vmatprep.subr.bf16.mxu0 0
        %1070 = vmatpush1.bf16.msra.mxu0 0
        %1071 = vmatprep.subr.bf16.mxu0 0
        %1072 = vmatpush1.bf16.msra.mxu0 0
        %1073 = vmatprep.subr.bf16.mxu0 0
        %1074 = vmatpush1.bf16.msra.mxu0 0
        %1075 = vmatprep.subr.bf16.mxu0 0
        %1076 = vmatpush1.bf16.msra.mxu0 0
        %1077 = vmatprep.subr.bf16.mxu0 0
        %1078 = vmatpush1.bf16.msra.mxu0 0
        %1079 = vmatprep.subr.bf16.mxu0 0
        %1080 = vmatpush1.bf16.msra.mxu0 0
        %1081 = vmatprep.mubr.bf16.mxu0 0
        %1082 = vmatmul.mubr.bf16.gmra.mrb[0].mxu0 %v1038
        %v1083 = vpop.f32.mrb[0].mxu0
        %v1084 = vadd.f32 %v979, %v1083
        %v1085 = vpop.f32.mrb[0].mxu0
        %v1086 = vpop.f32.mrb[0].mxu0
        %v1087 = vadd.f32 %v984, %v1086
        %v1088 = vpop.f32.mrb[0].mxu0
        %1089 = vmatprep.mubr.bf16.mxu0 0
        %1090 = vmatmul.mubr.bf16.gmra.mrb[0].mxu0 %v1041
        %v1091 = vpop.f32.mrb[0].mxu0
        %v1092 = vadd.f32 %v989, %v1091
        %v1093 = vpop.f32.mrb[0].mxu0
        %v1094 = vpop.f32.mrb[0].mxu0
        %v1095 = vadd.f32 %v994, %v1094
        %v1096 = vpop.f32.mrb[0].mxu0
        %1097 = vmatprep.mubr.bf16.mxu0 0
        %1098 = vmatmul.mubr.bf16.gmra.mrb[0].mxu0 %v1044
        %v1099 = vpop.f32.mrb[0].mxu0
        %v1100 = vadd.f32 %v999, %v1099
        %v1101 = vpop.f32.mrb[0].mxu0
        %v1102 = vpop.f32.mrb[0].mxu0
        %v1103 = vadd.f32 %v1004, %v1102
        %v1104 = vpop.f32.mrb[0].mxu0
        %1105 = vmatprep.mubr.bf16.mxu0 0
        %1106 = vmatmul.mubr.bf16.gmra.mrb[0].mxu0 %v1047
        %v1107 = vpop.f32.mrb[0].mxu0
        %v1108 = vadd.f32 %v1009, %v1107
        %v1109 = vpop.f32.mrb[0].mxu0
        %v1110 = vpop.f32.mrb[0].mxu0
        %v1111 = vadd.f32 %v1014, %v1110
        %v1112 = vpop.f32.mrb[0].mxu0
        %1113 = vdwg.mxu0
        %v1114 = vpack.c.bf16 %v1087, %v1084
        %v1115 = vpack.c.bf16 %v1095, %v1092
        %v1116 = vpack.c.bf16 %v1103, %v1100
        %v1117 = vpack.c.bf16 %v1111, %v1108
        %v1118 = vld [vmem:[#allocation2] sm:$0xff]
        %v1119 = vld [vmem:[#allocation2 + $0x8] sm:$0xff]
        %v1120 = vld [vmem:[#allocation2 + $0x10] sm:$0xff]
        %v1121 = vld [vmem:[#allocation2 + $0x18] sm:$0xff]
        %v1122 = vld [vmem:[#allocation3] sm:$0xff]
        %v1123 = vld [vmem:[#allocation3 + $0x8] sm:$0xff]
        %v1124 = vld [vmem:[#allocation3 + $0x10] sm:$0xff]
        %v1125 = vld [vmem:[#allocation3 + $0x18] sm:$0xff]
        %1126 = vxpose.xlu0.c.b16.start [1/8] %v1118, 128
        %1127 = vxpose.xlu0.c.b16.cont [2/8] 0, 128
        %1128 = vxpose.xlu0.c.b16.cont [3/8] 0, 128
        %1129 = vxpose.xlu0.c.b16.cont [4/8] 0, 128
        %1130 = vxpose.xlu0.c.b16.cont [5/8] 0, 128
        %1131 = vxpose.xlu0.c.b16.cont [6/8] 0, 128
        %1132 = vxpose.xlu0.c.b16.cont [7/8] 0, 128
        %1133 = vxpose.xlu0.c.b16.end [8/8] 0, 128
        %v1134 = vpop.trf.xlu0
        %v1135 = vpop.trf.xlu0
        %v1136 = vpop.trf.xlu0
        %v1137 = vpop.trf.xlu0
        %v1138 = vpop.trf.xlu0
        %v1139 = vpop.trf.xlu0
        %v1140 = vpop.trf.xlu0
        %v1141 = vpop.trf.xlu0
        %vm1142 = vcmask 130048
        %v1144 = vsel %vm1142, %v1134, 0
        %v1147 = vsel %vm1142, %v1135, 0
        %v1150 = vsel %vm1142, %v1136, 0
        %v1153 = vsel %vm1142, %v1137, 0
        %v1156 = vsel %vm1142, %v1138, 0
        %v1159 = vsel %vm1142, %v1139, 0
        %v1162 = vsel %vm1142, %v1140, 0
        %v1165 = vsel %vm1142, %v1141, 0
        %1167 = vmatprep.subr.bf16.mxu0 0
        %1168 = vmatpush1.bf16.msra.mxu0 %v1114
        %1169 = vmatprep.subr.bf16.mxu0 0
        %1170 = vmatpush1.bf16.msra.mxu0 0
        %1171 = vmatprep.subr.bf16.mxu0 0
        %1172 = vmatpush1.bf16.msra.mxu0 0
        %1173 = vmatprep.subr.bf16.mxu0 0
        %1174 = vmatpush1.bf16.msra.mxu0 0
        %1175 = vmatprep.subr.bf16.mxu0 0
        %1176 = vmatpush1.bf16.msra.mxu0 0
        %1177 = vmatprep.subr.bf16.mxu0 0
        %1178 = vmatpush1.bf16.msra.mxu0 0
        %1179 = vmatprep.subr.bf16.mxu0 0
        %1180 = vmatpush1.bf16.msra.mxu0 0
        %1181 = vmatprep.subr.bf16.mxu0 0
        %1182 = vmatpush1.bf16.msra.mxu0 0
        %1183 = vmatprep.subr.bf16.mxu0 0
        %1184 = vmatpush1.bf16.msra.mxu0 0
        %1185 = vmatprep.subr.bf16.mxu0 0
        %1186 = vmatpush1.bf16.msra.mxu0 0
        %1187 = vmatprep.subr.bf16.mxu0 0
        %1188 = vmatpush1.bf16.msra.mxu0 0
        %1189 = vmatprep.subr.bf16.mxu0 0
        %1190 = vmatpush1.bf16.msra.mxu0 0
        %1191 = vmatprep.subr.bf16.mxu0 0
        %1192 = vmatpush1.bf16.msra.mxu0 0
        %1193 = vmatprep.subr.bf16.mxu0 0
        %1194 = vmatpush1.bf16.msra.mxu0 0
        %1195 = vmatprep.subr.bf16.mxu0 0
        %1196 = vmatpush1.bf16.msra.mxu0 0
        %1197 = vmatprep.subr.bf16.mxu0 0
        %1198 = vmatpush1.bf16.msra.mxu0 0
        %1199 = vmatprep.mubr.bf16.mxu0 0
        %1200 = vmatmul.mubr.bf16.gmra.mrb[0].mxu0 %v1144
        %v1201 = vpop.f32.mrb[0].mxu0
        %v1202 = vadd.f32 0.0, %v1201
        %v1203 = vpop.f32.mrb[0].mxu0
        %v1204 = vpop.f32.mrb[0].mxu0
        %v1205 = vadd.f32 0.0, %v1204
        %v1206 = vpop.f32.mrb[0].mxu0
        %1207 = vmatprep.mubr.bf16.mxu0 0
        %1208 = vmatmul.mubr.bf16.gmra.mrb[0].mxu0 %v1147
        %v1209 = vpop.f32.mrb[0].mxu0
        %v1210 = vadd.f32 0.0, %v1209
        %v1211 = vpop.f32.mrb[0].mxu0
        %v1212 = vpop.f32.mrb[0].mxu0
        %v1213 = vadd.f32 0.0, %v1212
        %v1214 = vpop.f32.mrb[0].mxu0
        %1215 = vmatprep.mubr.bf16.mxu0 0
        %1216 = vmatmul.mubr.bf16.gmra.mrb[0].mxu0 %v1150
        %v1217 = vpop.f32.mrb[0].mxu0
        %v1218 = vadd.f32 0.0, %v1217
        %v1219 = vpop.f32.mrb[0].mxu0
        %v1220 = vpop.f32.mrb[0].mxu0
        %v1221 = vadd.f32 0.0, %v1220
        %v1222 = vpop.f32.mrb[0].mxu0
        %1223 = vmatprep.mubr.bf16.mxu0 0
        %1224 = vmatmul.mubr.bf16.gmra.mrb[0].mxu0 %v1153
        %v1225 = vpop.f32.mrb[0].mxu0
        %v1226 = vadd.f32 0.0, %v1225
        %v1227 = vpop.f32.mrb[0].mxu0
        %v1228 = vpop.f32.mrb[0].mxu0
        %v1229 = vadd.f32 0.0, %v1228
        %v1230 = vpop.f32.mrb[0].mxu0
        %1231 = vmatprep.mubr.bf16.mxu0 0
        %1232 = vmatmul.mubr.bf16.gmra.mrb[0].mxu0 %v1156
        %v1233 = vpop.f32.mrb[0].mxu0
        %v1234 = vadd.f32 0.0, %v1233
        %v1235 = vpop.f32.mrb[0].mxu0
        %v1236 = vpop.f32.mrb[0].mxu0
        %v1237 = vadd.f32 0.0, %v1236
        %v1238 = vpop.f32.mrb[0].mxu0
        %1239 = vmatprep.mubr.bf16.mxu0 0
        %1240 = vmatmul.mubr.bf16.gmra.mrb[0].mxu0 %v1159
        %v1241 = vpop.f32.mrb[0].mxu0
        %v1242 = vadd.f32 0.0, %v1241
        %v1243 = vpop.f32.mrb[0].mxu0
        %v1244 = vpop.f32.mrb[0].mxu0
        %v1245 = vadd.f32 0.0, %v1244
        %v1246 = vpop.f32.mrb[0].mxu0
        %1247 = vmatprep.mubr.bf16.mxu0 0
        %1248 = vmatmul.mubr.bf16.gmra.mrb[0].mxu0 %v1162
        %v1249 = vpop.f32.mrb[0].mxu0
        %v1250 = vadd.f32 0.0, %v1249
        %v1251 = vpop.f32.mrb[0].mxu0
        %v1252 = vpop.f32.mrb[0].mxu0
        %v1253 = vadd.f32 0.0, %v1252
        %v1254 = vpop.f32.mrb[0].mxu0
        %1255 = vmatprep.mubr.bf16.mxu0 0
        %1256 = vmatmul.mubr.bf16.gmra.mrb[0].mxu0 %v1165
        %v1257 = vpop.f32.mrb[0].mxu0
        %v1258 = vadd.f32 0.0, %v1257
        %v1259 = vpop.f32.mrb[0].mxu0
        %v1260 = vpop.f32.mrb[0].mxu0
        %v1261 = vadd.f32 0.0, %v1260
        %v1262 = vpop.f32.mrb[0].mxu0
        %1263 = vdwg.mxu0
        %1264 = vxpose.xlu0.c.b16.start [1/8] %v1119, 128
        %1265 = vxpose.xlu0.c.b16.cont [2/8] 0, 128
        %1266 = vxpose.xlu0.c.b16.cont [3/8] 0, 128
        %1267 = vxpose.xlu0.c.b16.cont [4/8] 0, 128
        %1268 = vxpose.xlu0.c.b16.cont [5/8] 0, 128
        %1269 = vxpose.xlu0.c.b16.cont [6/8] 0, 128
        %1270 = vxpose.xlu0.c.b16.cont [7/8] 0, 128
        %1271 = vxpose.xlu0.c.b16.end [8/8] 0, 128
        %v1272 = vpop.trf.xlu0
        %v1273 = vpop.trf.xlu0
        %v1274 = vpop.trf.xlu0
        %v1275 = vpop.trf.xlu0
        %v1276 = vpop.trf.xlu0
        %v1277 = vpop.trf.xlu0
        %v1278 = vpop.trf.xlu0
        %v1279 = vpop.trf.xlu0
        %v1281 = vsel %vm1142, %v1272, 0
        %v1284 = vsel %vm1142, %v1273, 0
        %v1287 = vsel %vm1142, %v1274, 0
        %v1290 = vsel %vm1142, %v1275, 0
        %v1293 = vsel %vm1142, %v1276, 0
        %v1296 = vsel %vm1142, %v1277, 0
        %v1299 = vsel %vm1142, %v1278, 0
        %v1302 = vsel %vm1142, %v1279, 0
        %1304 = vmatprep.subr.bf16.mxu0 0
        %1305 = vmatpush1.bf16.msra.mxu0 %v1115
        %1306 = vmatprep.subr.bf16.mxu0 0
        %1307 = vmatpush1.bf16.msra.mxu0 0
        %1308 = vmatprep.subr.bf16.mxu0 0
        %1309 = vmatpush1.bf16.msra.mxu0 0
        %1310 = vmatprep.subr.bf16.mxu0 0
        %1311 = vmatpush1.bf16.msra.mxu0 0
        %1312 = vmatprep.subr.bf16.mxu0 0
        %1313 = vmatpush1.bf16.msra.mxu0 0
        %1314 = vmatprep.subr.bf16.mxu0 0
        %1315 = vmatpush1.bf16.msra.mxu0 0
        %1316 = vmatprep.subr.bf16.mxu0 0
        %1317 = vmatpush1.bf16.msra.mxu0 0
        %1318 = vmatprep.subr.bf16.mxu0 0
        %1319 = vmatpush1.bf16.msra.mxu0 0
        %1320 = vmatprep.subr.bf16.mxu0 0
        %1321 = vmatpush1.bf16.msra.mxu0 0
        %1322 = vmatprep.subr.bf16.mxu0 0
        %1323 = vmatpush1.bf16.msra.mxu0 0
        %1324 = vmatprep.subr.bf16.mxu0 0
        %1325 = vmatpush1.bf16.msra.mxu0 0
        %1326 = vmatprep.subr.bf16.mxu0 0
        %1327 = vmatpush1.bf16.msra.mxu0 0
        %1328 = vmatprep.subr.bf16.mxu0 0
        %1329 = vmatpush1.bf16.msra.mxu0 0
        %1330 = vmatprep.subr.bf16.mxu0 0
        %1331 = vmatpush1.bf16.msra.mxu0 0
        %1332 = vmatprep.subr.bf16.mxu0 0
        %1333 = vmatpush1.bf16.msra.mxu0 0
        %1334 = vmatprep.subr.bf16.mxu0 0
        %1335 = vmatpush1.bf16.msra.mxu0 0
        %1336 = vmatprep.mubr.bf16.mxu0 0
        %1337 = vmatmul.mubr.bf16.gmra.mrb[0].mxu0 %v1281
        %v1338 = vpop.f32.mrb[0].mxu0
        %v1339 = vadd.f32 0.0, %v1338
        %v1340 = vpop.f32.mrb[0].mxu0
        %v1341 = vpop.f32.mrb[0].mxu0
        %v1342 = vadd.f32 0.0, %v1341
        %v1343 = vpop.f32.mrb[0].mxu0
        %1344 = vmatprep.mubr.bf16.mxu0 0
        %1345 = vmatmul.mubr.bf16.gmra.mrb[0].mxu0 %v1284
        %v1346 = vpop.f32.mrb[0].mxu0
        %v1347 = vadd.f32 0.0, %v1346
        %v1348 = vpop.f32.mrb[0].mxu0
        %v1349 = vpop.f32.mrb[0].mxu0
        %v1350 = vadd.f32 0.0, %v1349
        %v1351 = vpop.f32.mrb[0].mxu0
        %1352 = vmatprep.mubr.bf16.mxu0 0
        %1353 = vmatmul.mubr.bf16.gmra.mrb[0].mxu0 %v1287
        %v1354 = vpop.f32.mrb[0].mxu0
        %v1355 = vadd.f32 0.0, %v1354
        %v1356 = vpop.f32.mrb[0].mxu0
        %v1357 = vpop.f32.mrb[0].mxu0
        %v1358 = vadd.f32 0.0, %v1357
        %v1359 = vpop.f32.mrb[0].mxu0
        %1360 = vmatprep.mubr.bf16.mxu0 0
        %1361 = vmatmul.mubr.bf16.gmra.mrb[0].mxu0 %v1290
        %v1362 = vpop.f32.mrb[0].mxu0
        %v1363 = vadd.f32 0.0, %v1362
        %v1364 = vpop.f32.mrb[0].mxu0
        %v1365 = vpop.f32.mrb[0].mxu0
        %v1366 = vadd.f32 0.0, %v1365
        %v1367 = vpop.f32.mrb[0].mxu0
        %1368 = vmatprep.mubr.bf16.mxu0 0
        %1369 = vmatmul.mubr.bf16.gmra.mrb[0].mxu0 %v1293
        %v1370 = vpop.f32.mrb[0].mxu0
        %v1371 = vadd.f32 0.0, %v1370
        %v1372 = vpop.f32.mrb[0].mxu0
        %v1373 = vpop.f32.mrb[0].mxu0
        %v1374 = vadd.f32 0.0, %v1373
        %v1375 = vpop.f32.mrb[0].mxu0
        %1376 = vmatprep.mubr.bf16.mxu0 0
        %1377 = vmatmul.mubr.bf16.gmra.mrb[0].mxu0 %v1296
        %v1378 = vpop.f32.mrb[0].mxu0
        %v1379 = vadd.f32 0.0, %v1378
        %v1380 = vpop.f32.mrb[0].mxu0
        %v1381 = vpop.f32.mrb[0].mxu0
        %v1382 = vadd.f32 0.0, %v1381
        %v1383 = vpop.f32.mrb[0].mxu0
        %1384 = vmatprep.mubr.bf16.mxu0 0
        %1385 = vmatmul.mubr.bf16.gmra.mrb[0].mxu0 %v1299
        %v1386 = vpop.f32.mrb[0].mxu0
        %v1387 = vadd.f32 0.0, %v1386
        %v1388 = vpop.f32.mrb[0].mxu0
        %v1389 = vpop.f32.mrb[0].mxu0
        %v1390 = vadd.f32 0.0, %v1389
        %v1391 = vpop.f32.mrb[0].mxu0
        %1392 = vmatprep.mubr.bf16.mxu0 0
        %1393 = vmatmul.mubr.bf16.gmra.mrb[0].mxu0 %v1302
        %v1394 = vpop.f32.mrb[0].mxu0
        %v1395 = vadd.f32 0.0, %v1394
        %v1396 = vpop.f32.mrb[0].mxu0
        %v1397 = vpop.f32.mrb[0].mxu0
        %v1398 = vadd.f32 0.0, %v1397
        %v1399 = vpop.f32.mrb[0].mxu0
        %1400 = vdwg.mxu0
        %1401 = vxpose.xlu0.c.b16.start [1/8] %v1120, 128
        %1402 = vxpose.xlu0.c.b16.cont [2/8] 0, 128
        %1403 = vxpose.xlu0.c.b16.cont [3/8] 0, 128
        %1404 = vxpose.xlu0.c.b16.cont [4/8] 0, 128
        %1405 = vxpose.xlu0.c.b16.cont [5/8] 0, 128
        %1406 = vxpose.xlu0.c.b16.cont [6/8] 0, 128
        %1407 = vxpose.xlu0.c.b16.cont [7/8] 0, 128
        %1408 = vxpose.xlu0.c.b16.end [8/8] 0, 128
        %v1409 = vpop.trf.xlu0
        %v1410 = vpop.trf.xlu0
        %v1411 = vpop.trf.xlu0
        %v1412 = vpop.trf.xlu0
        %v1413 = vpop.trf.xlu0
        %v1414 = vpop.trf.xlu0
        %v1415 = vpop.trf.xlu0
        %v1416 = vpop.trf.xlu0
        %v1418 = vsel %vm1142, %v1409, 0
        %v1421 = vsel %vm1142, %v1410, 0
        %v1424 = vsel %vm1142, %v1411, 0
        %v1427 = vsel %vm1142, %v1412, 0
        %v1430 = vsel %vm1142, %v1413, 0
        %v1433 = vsel %vm1142, %v1414, 0
        %v1436 = vsel %vm1142, %v1415, 0
        %v1439 = vsel %vm1142, %v1416, 0
        %1441 = vmatprep.subr.bf16.mxu0 0
        %1442 = vmatpush1.bf16.msra.mxu0 %v1116
        %1443 = vmatprep.subr.bf16.mxu0 0
        %1444 = vmatpush1.bf16.msra.mxu0 0
        %1445 = vmatprep.subr.bf16.mxu0 0
        %1446 = vmatpush1.bf16.msra.mxu0 0
        %1447 = vmatprep.subr.bf16.mxu0 0
        %1448 = vmatpush1.bf16.msra.mxu0 0
        %1449 = vmatprep.subr.bf16.mxu0 0
        %1450 = vmatpush1.bf16.msra.mxu0 0
        %1451 = vmatprep.subr.bf16.mxu0 0
        %1452 = vmatpush1.bf16.msra.mxu0 0
        %1453 = vmatprep.subr.bf16.mxu0 0
        %1454 = vmatpush1.bf16.msra.mxu0 0
        %1455 = vmatprep.subr.bf16.mxu0 0
        %1456 = vmatpush1.bf16.msra.mxu0 0
        %1457 = vmatprep.subr.bf16.mxu0 0
        %1458 = vmatpush1.bf16.msra.mxu0 0
        %1459 = vmatprep.subr.bf16.mxu0 0
        %1460 = vmatpush1.bf16.msra.mxu0 0
        %1461 = vmatprep.subr.bf16.mxu0 0
        %1462 = vmatpush1.bf16.msra.mxu0 0
        %1463 = vmatprep.subr.bf16.mxu0 0
        %1464 = vmatpush1.bf16.msra.mxu0 0
        %1465 = vmatprep.subr.bf16.mxu0 0
        %1466 = vmatpush1.bf16.msra.mxu0 0
        %1467 = vmatprep.subr.bf16.mxu0 0
        %1468 = vmatpush1.bf16.msra.mxu0 0
        %1469 = vmatprep.subr.bf16.mxu0 0
        %1470 = vmatpush1.bf16.msra.mxu0 0
        %1471 = vmatprep.subr.bf16.mxu0 0
        %1472 = vmatpush1.bf16.msra.mxu0 0
        %1473 = vmatprep.mubr.bf16.mxu0 0
        %1474 = vmatmul.mubr.bf16.gmra.mrb[0].mxu0 %v1418
        %v1475 = vpop.f32.mrb[0].mxu0
        %v1476 = vadd.f32 0.0, %v1475
        %v1477 = vpop.f32.mrb[0].mxu0
        %v1478 = vpop.f32.mrb[0].mxu0
        %v1479 = vadd.f32 0.0, %v1478
        %v1480 = vpop.f32.mrb[0].mxu0
        %1481 = vmatprep.mubr.bf16.mxu0 0
        %1482 = vmatmul.mubr.bf16.gmra.mrb[0].mxu0 %v1421
        %v1483 = vpop.f32.mrb[0].mxu0
        %v1484 = vadd.f32 0.0, %v1483
        %v1485 = vpop.f32.mrb[0].mxu0
        %v1486 = vpop.f32.mrb[0].mxu0
        %v1487 = vadd.f32 0.0, %v1486
        %v1488 = vpop.f32.mrb[0].mxu0
        %1489 = vmatprep.mubr.bf16.mxu0 0
        %1490 = vmatmul.mubr.bf16.gmra.mrb[0].mxu0 %v1424
        %v1491 = vpop.f32.mrb[0].mxu0
        %v1492 = vadd.f32 0.0, %v1491
        %v1493 = vpop.f32.mrb[0].mxu0
        %v1494 = vpop.f32.mrb[0].mxu0
        %v1495 = vadd.f32 0.0, %v1494
        %v1496 = vpop.f32.mrb[0].mxu0
        %1497 = vmatprep.mubr.bf16.mxu0 0
        %1498 = vmatmul.mubr.bf16.gmra.mrb[0].mxu0 %v1427
        %v1499 = vpop.f32.mrb[0].mxu0
        %v1500 = vadd.f32 0.0, %v1499
        %v1501 = vpop.f32.mrb[0].mxu0
        %v1502 = vpop.f32.mrb[0].mxu0
        %v1503 = vadd.f32 0.0, %v1502
        %v1504 = vpop.f32.mrb[0].mxu0
        %1505 = vmatprep.mubr.bf16.mxu0 0
        %1506 = vmatmul.mubr.bf16.gmra.mrb[0].mxu0 %v1430
        %v1507 = vpop.f32.mrb[0].mxu0
        %v1508 = vadd.f32 0.0, %v1507
        %v1509 = vpop.f32.mrb[0].mxu0
        %v1510 = vpop.f32.mrb[0].mxu0
        %v1511 = vadd.f32 0.0, %v1510
        %v1512 = vpop.f32.mrb[0].mxu0
        %1513 = vmatprep.mubr.bf16.mxu0 0
        %1514 = vmatmul.mubr.bf16.gmra.mrb[0].mxu0 %v1433
        %v1515 = vpop.f32.mrb[0].mxu0
        %v1516 = vadd.f32 0.0, %v1515
        %v1517 = vpop.f32.mrb[0].mxu0
        %v1518 = vpop.f32.mrb[0].mxu0
        %v1519 = vadd.f32 0.0, %v1518
        %v1520 = vpop.f32.mrb[0].mxu0
        %1521 = vmatprep.mubr.bf16.mxu0 0
        %1522 = vmatmul.mubr.bf16.gmra.mrb[0].mxu0 %v1436
        %v1523 = vpop.f32.mrb[0].mxu0
        %v1524 = vadd.f32 0.0, %v1523
        %v1525 = vpop.f32.mrb[0].mxu0
        %v1526 = vpop.f32.mrb[0].mxu0
        %v1527 = vadd.f32 0.0, %v1526
        %v1528 = vpop.f32.mrb[0].mxu0
        %1529 = vmatprep.mubr.bf16.mxu0 0
        %1530 = vmatmul.mubr.bf16.gmra.mrb[0].mxu0 %v1439
        %v1531 = vpop.f32.mrb[0].mxu0
        %v1532 = vadd.f32 0.0, %v1531
        %v1533 = vpop.f32.mrb[0].mxu0
        %v1534 = vpop.f32.mrb[0].mxu0
        %v1535 = vadd.f32 0.0, %v1534
        %v1536 = vpop.f32.mrb[0].mxu0
        %1537 = vdwg.mxu0
        %1538 = vxpose.xlu0.c.b16.start [1/8] %v1121, 128
        %1539 = vxpose.xlu0.c.b16.cont [2/8] 0, 128
        %1540 = vxpose.xlu0.c.b16.cont [3/8] 0, 128
        %1541 = vxpose.xlu0.c.b16.cont [4/8] 0, 128
        %1542 = vxpose.xlu0.c.b16.cont [5/8] 0, 128
        %1543 = vxpose.xlu0.c.b16.cont [6/8] 0, 128
        %1544 = vxpose.xlu0.c.b16.cont [7/8] 0, 128
        %1545 = vxpose.xlu0.c.b16.end [8/8] 0, 128
        %v1546 = vpop.trf.xlu0
        %v1547 = vpop.trf.xlu0
        %v1548 = vpop.trf.xlu0
        %v1549 = vpop.trf.xlu0
        %v1550 = vpop.trf.xlu0
        %v1551 = vpop.trf.xlu0
        %v1552 = vpop.trf.xlu0
        %v1553 = vpop.trf.xlu0
        %v1555 = vsel %vm1142, %v1546, 0
        %v1558 = vsel %vm1142, %v1547, 0
        %v1561 = vsel %vm1142, %v1548, 0
        %v1564 = vsel %vm1142, %v1549, 0
        %v1567 = vsel %vm1142, %v1550, 0
        %v1570 = vsel %vm1142, %v1551, 0
        %v1573 = vsel %vm1142, %v1552, 0
        %v1576 = vsel %vm1142, %v1553, 0
        %1578 = vmatprep.subr.bf16.mxu0 0
        %1579 = vmatpush1.bf16.msra.mxu0 %v1117
        %1580 = vmatprep.subr.bf16.mxu0 0
        %1581 = vmatpush1.bf16.msra.mxu0 0
        %1582 = vmatprep.subr.bf16.mxu0 0
        %1583 = vmatpush1.bf16.msra.mxu0 0
        %1584 = vmatprep.subr.bf16.mxu0 0
        %1585 = vmatpush1.bf16.msra.mxu0 0
        %1586 = vmatprep.subr.bf16.mxu0 0
        %1587 = vmatpush1.bf16.msra.mxu0 0
        %1588 = vmatprep.subr.bf16.mxu0 0
        %1589 = vmatpush1.bf16.msra.mxu0 0
        %1590 = vmatprep.subr.bf16.mxu0 0
        %1591 = vmatpush1.bf16.msra.mxu0 0
        %1592 = vmatprep.subr.bf16.mxu0 0
        %1593 = vmatpush1.bf16.msra.mxu0 0
        %1594 = vmatprep.subr.bf16.mxu0 0
        %1595 = vmatpush1.bf16.msra.mxu0 0
        %1596 = vmatprep.subr.bf16.mxu0 0
        %1597 = vmatpush1.bf16.msra.mxu0 0
        %1598 = vmatprep.subr.bf16.mxu0 0
        %1599 = vmatpush1.bf16.msra.mxu0 0
        %1600 = vmatprep.subr.bf16.mxu0 0
        %1601 = vmatpush1.bf16.msra.mxu0 0
        %1602 = vmatprep.subr.bf16.mxu0 0
        %1603 = vmatpush1.bf16.msra.mxu0 0
        %1604 = vmatprep.subr.bf16.mxu0 0
        %1605 = vmatpush1.bf16.msra.mxu0 0
        %1606 = vmatprep.subr.bf16.mxu0 0
        %1607 = vmatpush1.bf16.msra.mxu0 0
        %1608 = vmatprep.subr.bf16.mxu0 0
        %1609 = vmatpush1.bf16.msra.mxu0 0
        %1610 = vmatprep.mubr.bf16.mxu0 0
        %1611 = vmatmul.mubr.bf16.gmra.mrb[0].mxu0 %v1555
        %v1612 = vpop.f32.mrb[0].mxu0
        %v1613 = vadd.f32 0.0, %v1612
        %v1614 = vpop.f32.mrb[0].mxu0
        %v1615 = vpop.f32.mrb[0].mxu0
        %v1616 = vadd.f32 0.0, %v1615
        %v1617 = vpop.f32.mrb[0].mxu0
        %1618 = vmatprep.mubr.bf16.mxu0 0
        %1619 = vmatmul.mubr.bf16.gmra.mrb[0].mxu0 %v1558
        %v1620 = vpop.f32.mrb[0].mxu0
        %v1621 = vadd.f32 0.0, %v1620
        %v1622 = vpop.f32.mrb[0].mxu0
        %v1623 = vpop.f32.mrb[0].mxu0
        %v1624 = vadd.f32 0.0, %v1623
        %v1625 = vpop.f32.mrb[0].mxu0
        %1626 = vmatprep.mubr.bf16.mxu0 0
        %1627 = vmatmul.mubr.bf16.gmra.mrb[0].mxu0 %v1561
        %v1628 = vpop.f32.mrb[0].mxu0
        %v1629 = vadd.f32 0.0, %v1628
        %v1630 = vpop.f32.mrb[0].mxu0
        %v1631 = vpop.f32.mrb[0].mxu0
        %v1632 = vadd.f32 0.0, %v1631
        %v1633 = vpop.f32.mrb[0].mxu0
        %1634 = vmatprep.mubr.bf16.mxu0 0
        %1635 = vmatmul.mubr.bf16.gmra.mrb[0].mxu0 %v1564
        %v1636 = vpop.f32.mrb[0].mxu0
        %v1637 = vadd.f32 0.0, %v1636
        %v1638 = vpop.f32.mrb[0].mxu0
        %v1639 = vpop.f32.mrb[0].mxu0
        %v1640 = vadd.f32 0.0, %v1639
        %v1641 = vpop.f32.mrb[0].mxu0
        %1642 = vmatprep.mubr.bf16.mxu0 0
        %1643 = vmatmul.mubr.bf16.gmra.mrb[0].mxu0 %v1567
        %v1644 = vpop.f32.mrb[0].mxu0
        %v1645 = vadd.f32 0.0, %v1644
        %v1646 = vpop.f32.mrb[0].mxu0
        %v1647 = vpop.f32.mrb[0].mxu0
        %v1648 = vadd.f32 0.0, %v1647
        %v1649 = vpop.f32.mrb[0].mxu0
        %1650 = vmatprep.mubr.bf16.mxu0 0
        %1651 = vmatmul.mubr.bf16.gmra.mrb[0].mxu0 %v1570
        %v1652 = vpop.f32.mrb[0].mxu0
        %v1653 = vadd.f32 0.0, %v1652
        %v1654 = vpop.f32.mrb[0].mxu0
        %v1655 = vpop.f32.mrb[0].mxu0
        %v1656 = vadd.f32 0.0, %v1655
        %v1657 = vpop.f32.mrb[0].mxu0
        %1658 = vmatprep.mubr.bf16.mxu0 0
        %1659 = vmatmul.mubr.bf16.gmra.mrb[0].mxu0 %v1573
        %v1660 = vpop.f32.mrb[0].mxu0
        %v1661 = vadd.f32 0.0, %v1660
        %v1662 = vpop.f32.mrb[0].mxu0
        %v1663 = vpop.f32.mrb[0].mxu0
        %v1664 = vadd.f32 0.0, %v1663
        %v1665 = vpop.f32.mrb[0].mxu0
        %1666 = vmatprep.mubr.bf16.mxu0 0
        %1667 = vmatmul.mubr.bf16.gmra.mrb[0].mxu0 %v1576
        %v1668 = vpop.f32.mrb[0].mxu0
        %v1669 = vadd.f32 0.0, %v1668
        %v1670 = vpop.f32.mrb[0].mxu0
        %v1671 = vpop.f32.mrb[0].mxu0
        %v1672 = vadd.f32 0.0, %v1671
        %v1673 = vpop.f32.mrb[0].mxu0
        %1674 = vdwg.mxu0
        %v1675 = vmax.f32 %v1202, %v1205
        %v1676 = vmax.f32 %v1675, %v1210
        %v1677 = vmax.f32 %v1676, %v1213
        %v1678 = vmax.f32 %v1677, %v1218
        %v1679 = vmax.f32 %v1678, %v1221
        %v1680 = vmax.f32 %v1679, %v1226
        %v1681 = vmax.f32 %v1680, %v1229
        %v1682 = vmax.f32 %v1681, %v1234
        %v1683 = vmax.f32 %v1682, %v1237
        %v1684 = vmax.f32 %v1683, %v1242
        %v1685 = vmax.f32 %v1684, %v1245
        %v1686 = vmax.f32 %v1685, %v1250
        %v1687 = vmax.f32 %v1686, %v1253
        %v1688 = vmax.f32 %v1687, %v1258
        %v1689 = vmax.f32 %v1688, %v1261
        %v1690 = vrot.slane %v1689, 4
        %v1691 = vmax.f32 %v1689, %v1690
        %v1692 = vrot.slane %v1691, 2
        %v1693 = vmax.f32 %v1691, %v1692
        %v1694 = vrot.slane %v1693, 1
        %v1695 = vmax.f32 %v1693, %v1694
        %v1696 = vmax.f32 %v1339, %v1342
        %v1697 = vmax.f32 %v1696, %v1347
        %v1698 = vmax.f32 %v1697, %v1350
        %v1699 = vmax.f32 %v1698, %v1355
        %v1700 = vmax.f32 %v1699, %v1358
        %v1701 = vmax.f32 %v1700, %v1363
        %v1702 = vmax.f32 %v1701, %v1366
        %v1703 = vmax.f32 %v1702, %v1371
        %v1704 = vmax.f32 %v1703, %v1374
        %v1705 = vmax.f32 %v1704, %v1379
        %v1706 = vmax.f32 %v1705, %v1382
        %v1707 = vmax.f32 %v1706, %v1387
        %v1708 = vmax.f32 %v1707, %v1390
        %v1709 = vmax.f32 %v1708, %v1395
        %v1710 = vmax.f32 %v1709, %v1398
        %v1711 = vrot.slane %v1710, 4
        %v1712 = vmax.f32 %v1710, %v1711
        %v1713 = vrot.slane %v1712, 2
        %v1714 = vmax.f32 %v1712, %v1713
        %v1715 = vrot.slane %v1714, 1
        %v1716 = vmax.f32 %v1714, %v1715
        %v1717 = vmax.f32 %v1476, %v1479
        %v1718 = vmax.f32 %v1717, %v1484
        %v1719 = vmax.f32 %v1718, %v1487
        %v1720 = vmax.f32 %v1719, %v1492
        %v1721 = vmax.f32 %v1720, %v1495
        %v1722 = vmax.f32 %v1721, %v1500
        %v1723 = vmax.f32 %v1722, %v1503
        %v1724 = vmax.f32 %v1723, %v1508
        %v1725 = vmax.f32 %v1724, %v1511
        %v1726 = vmax.f32 %v1725, %v1516
        %v1727 = vmax.f32 %v1726, %v1519
        %v1728 = vmax.f32 %v1727, %v1524
        %v1729 = vmax.f32 %v1728, %v1527
        %v1730 = vmax.f32 %v1729, %v1532
        %v1731 = vmax.f32 %v1730, %v1535
        %v1732 = vrot.slane %v1731, 4
        %v1733 = vmax.f32 %v1731, %v1732
        %v1734 = vrot.slane %v1733, 2
        %v1735 = vmax.f32 %v1733, %v1734
        %v1736 = vrot.slane %v1735, 1
        %v1737 = vmax.f32 %v1735, %v1736
        %v1738 = vmax.f32 %v1613, %v1616
        %v1739 = vmax.f32 %v1738, %v1621
        %v1740 = vmax.f32 %v1739, %v1624
        %v1741 = vmax.f32 %v1740, %v1629
        %v1742 = vmax.f32 %v1741, %v1632
        %v1743 = vmax.f32 %v1742, %v1637
        %v1744 = vmax.f32 %v1743, %v1640
        %v1745 = vmax.f32 %v1744, %v1645
        %v1746 = vmax.f32 %v1745, %v1648
        %v1747 = vmax.f32 %v1746, %v1653
        %v1748 = vmax.f32 %v1747, %v1656
        %v1749 = vmax.f32 %v1748, %v1661
        %v1750 = vmax.f32 %v1749, %v1664
        %v1751 = vmax.f32 %v1750, %v1669
        %v1752 = vmax.f32 %v1751, %v1672
        %v1753 = vrot.slane %v1752, 4
        %v1754 = vmax.f32 %v1752, %v1753
        %v1755 = vrot.slane %v1754, 2
        %v1756 = vmax.f32 %v1754, %v1755
        %v1757 = vrot.slane %v1756, 1
        %v1758 = vmax.f32 %v1756, %v1757
        %v1759 = vsub.f32 %v1202, %v1695
        %v1760 = vsub.f32 %v1205, %v1695
        %v1761 = vsub.f32 %v1210, %v1695
        %v1762 = vsub.f32 %v1213, %v1695
        %v1763 = vsub.f32 %v1218, %v1695
        %v1764 = vsub.f32 %v1221, %v1695
        %v1765 = vsub.f32 %v1226, %v1695
        %v1766 = vsub.f32 %v1229, %v1695
        %v1767 = vsub.f32 %v1234, %v1695
        %v1768 = vsub.f32 %v1237, %v1695
        %v1769 = vsub.f32 %v1242, %v1695
        %v1770 = vsub.f32 %v1245, %v1695
        %v1771 = vsub.f32 %v1250, %v1695
        %v1772 = vsub.f32 %v1253, %v1695
        %v1773 = vsub.f32 %v1258, %v1695
        %v1774 = vsub.f32 %v1261, %v1695
        %v1775 = vsub.f32 %v1339, %v1716
        %v1776 = vsub.f32 %v1342, %v1716
        %v1777 = vsub.f32 %v1347, %v1716
        %v1778 = vsub.f32 %v1350, %v1716
        %v1779 = vsub.f32 %v1355, %v1716
        %v1780 = vsub.f32 %v1358, %v1716
        %v1781 = vsub.f32 %v1363, %v1716
        %v1782 = vsub.f32 %v1366, %v1716
        %v1783 = vsub.f32 %v1371, %v1716
        %v1784 = vsub.f32 %v1374, %v1716
        %v1785 = vsub.f32 %v1379, %v1716
        %v1786 = vsub.f32 %v1382, %v1716
        %v1787 = vsub.f32 %v1387, %v1716
        %v1788 = vsub.f32 %v1390, %v1716
        %v1789 = vsub.f32 %v1395, %v1716
        %v1790 = vsub.f32 %v1398, %v1716
        %v1791 = vsub.f32 %v1476, %v1737
        %v1792 = vsub.f32 %v1479, %v1737
        %v1793 = vsub.f32 %v1484, %v1737
        %v1794 = vsub.f32 %v1487, %v1737
        %v1795 = vsub.f32 %v1492, %v1737
        %v1796 = vsub.f32 %v1495, %v1737
        %v1797 = vsub.f32 %v1500, %v1737
        %v1798 = vsub.f32 %v1503, %v1737
        %v1799 = vsub.f32 %v1508, %v1737
        %v1800 = vsub.f32 %v1511, %v1737
        %v1801 = vsub.f32 %v1516, %v1737
        %v1802 = vsub.f32 %v1519, %v1737
        %v1803 = vsub.f32 %v1524, %v1737
        %v1804 = vsub.f32 %v1527, %v1737
        %v1805 = vsub.f32 %v1532, %v1737
        %v1806 = vsub.f32 %v1535, %v1737
        %v1807 = vsub.f32 %v1613, %v1758
        %v1808 = vsub.f32 %v1616, %v1758
        %v1809 = vsub.f32 %v1621, %v1758
        %v1810 = vsub.f32 %v1624, %v1758
        %v1811 = vsub.f32 %v1629, %v1758
        %v1812 = vsub.f32 %v1632, %v1758
        %v1813 = vsub.f32 %v1637, %v1758
        %v1814 = vsub.f32 %v1640, %v1758
        %v1815 = vsub.f32 %v1645, %v1758
        %v1816 = vsub.f32 %v1648, %v1758
        %v1817 = vsub.f32 %v1653, %v1758
        %v1818 = vsub.f32 %v1656, %v1758
        %v1819 = vsub.f32 %v1661, %v1758
        %v1820 = vsub.f32 %v1664, %v1758
        %v1821 = vsub.f32 %v1669, %v1758
        %v1822 = vsub.f32 %v1672, %v1758
        %v1823 = vmul.f32 %v1759, 1.442695
        %v1824 = vpow.pop %v1823
        %v1825 = vmul.f32 %v1760, 1.442695
        %v1826 = vpow.pop %v1825
        %v1827 = vmul.f32 %v1761, 1.442695
        %v1828 = vpow.pop %v1827
        %v1829 = vmul.f32 %v1762, 1.442695
        %v1830 = vpow.pop %v1829
        %v1831 = vmul.f32 %v1763, 1.442695
        %v1832 = vpow.pop %v1831
        %v1833 = vmul.f32 %v1764, 1.442695
        %v1834 = vpow.pop %v1833
        %v1835 = vmul.f32 %v1765, 1.442695
        %v1836 = vpow.pop %v1835
        %v1837 = vmul.f32 %v1766, 1.442695
        %v1838 = vpow.pop %v1837
        %v1839 = vmul.f32 %v1767, 1.442695
        %v1840 = vpow.pop %v1839
        %v1841 = vmul.f32 %v1768, 1.442695
        %v1842 = vpow.pop %v1841
        %v1843 = vmul.f32 %v1769, 1.442695
        %v1844 = vpow.pop %v1843
        %v1845 = vmul.f32 %v1770, 1.442695
        %v1846 = vpow.pop %v1845
        %v1847 = vmul.f32 %v1771, 1.442695
        %v1848 = vpow.pop %v1847
        %v1849 = vmul.f32 %v1772, 1.442695
        %v1850 = vpow.pop %v1849
        %v1851 = vmul.f32 %v1773, 1.442695
        %v1852 = vpow.pop %v1851
        %v1853 = vmul.f32 %v1774, 1.442695
        %v1854 = vpow.pop %v1853
        %v1855 = vmul.f32 %v1775, 1.442695
        %v1856 = vpow.pop %v1855
        %v1857 = vmul.f32 %v1776, 1.442695
        %v1858 = vpow.pop %v1857
        %v1859 = vmul.f32 %v1777, 1.442695
        %v1860 = vpow.pop %v1859
        %v1861 = vmul.f32 %v1778, 1.442695
        %v1862 = vpow.pop %v1861
        %v1863 = vmul.f32 %v1779, 1.442695
        %v1864 = vpow.pop %v1863
        %v1865 = vmul.f32 %v1780, 1.442695
        %v1866 = vpow.pop %v1865
        %v1867 = vmul.f32 %v1781, 1.442695
        %v1868 = vpow.pop %v1867
        %v1869 = vmul.f32 %v1782, 1.442695
        %v1870 = vpow.pop %v1869
        %v1871 = vmul.f32 %v1783, 1.442695
        %v1872 = vpow.pop %v1871
        %v1873 = vmul.f32 %v1784, 1.442695
        %v1874 = vpow.pop %v1873
        %v1875 = vmul.f32 %v1785, 1.442695
        %v1876 = vpow.pop %v1875
        %v1877 = vmul.f32 %v1786, 1.442695
        %v1878 = vpow.pop %v1877
        %v1879 = vmul.f32 %v1787, 1.442695
        %v1880 = vpow.pop %v1879
        %v1881 = vmul.f32 %v1788, 1.442695
        %v1882 = vpow.pop %v1881
        %v1883 = vmul.f32 %v1789, 1.442695
        %v1884 = vpow.pop %v1883
        %v1885 = vmul.f32 %v1790, 1.442695
        %v1886 = vpow.pop %v1885
        %v1887 = vmul.f32 %v1791, 1.442695
        %v1888 = vpow.pop %v1887
        %v1889 = vmul.f32 %v1792, 1.442695
        %v1890 = vpow.pop %v1889
        %v1891 = vmul.f32 %v1793, 1.442695
        %v1892 = vpow.pop %v1891
        %v1893 = vmul.f32 %v1794, 1.442695
        %v1894 = vpow.pop %v1893
        %v1895 = vmul.f32 %v1795, 1.442695
        %v1896 = vpow.pop %v1895
        %v1897 = vmul.f32 %v1796, 1.442695
        %v1898 = vpow.pop %v1897
        %v1899 = vmul.f32 %v1797, 1.442695
        %v1900 = vpow.pop %v1899
        %v1901 = vmul.f32 %v1798, 1.442695
        %v1902 = vpow.pop %v1901
        %v1903 = vmul.f32 %v1799, 1.442695
        %v1904 = vpow.pop %v1903
        %v1905 = vmul.f32 %v1800, 1.442695
        %v1906 = vpow.pop %v1905
        %v1907 = vmul.f32 %v1801, 1.442695
        %v1908 = vpow.pop %v1907
        %v1909 = vmul.f32 %v1802, 1.442695
        %v1910 = vpow.pop %v1909
        %v1911 = vmul.f32 %v1803, 1.442695
        %v1912 = vpow.pop %v1911
        %v1913 = vmul.f32 %v1804, 1.442695
        %v1914 = vpow.pop %v1913
        %v1915 = vmul.f32 %v1805, 1.442695
        %v1916 = vpow.pop %v1915
        %v1917 = vmul.f32 %v1806, 1.442695
        %v1918 = vpow.pop %v1917
        %v1919 = vmul.f32 %v1807, 1.442695
        %v1920 = vpow.pop %v1919
        %v1921 = vmul.f32 %v1808, 1.442695
        %v1922 = vpow.pop %v1921
        %v1923 = vmul.f32 %v1809, 1.442695
        %v1924 = vpow.pop %v1923
        %v1925 = vmul.f32 %v1810, 1.442695
        %v1926 = vpow.pop %v1925
        %v1927 = vmul.f32 %v1811, 1.442695
        %v1928 = vpow.pop %v1927
        %v1929 = vmul.f32 %v1812, 1.442695
        %v1930 = vpow.pop %v1929
        %v1931 = vmul.f32 %v1813, 1.442695
        %v1932 = vpow.pop %v1931
        %v1933 = vmul.f32 %v1814, 1.442695
        %v1934 = vpow.pop %v1933
        %v1935 = vmul.f32 %v1815, 1.442695
        %v1936 = vpow.pop %v1935
        %v1937 = vmul.f32 %v1816, 1.442695
        %v1938 = vpow.pop %v1937
        %v1939 = vmul.f32 %v1817, 1.442695
        %v1940 = vpow.pop %v1939
        %v1941 = vmul.f32 %v1818, 1.442695
        %v1942 = vpow.pop %v1941
        %v1943 = vmul.f32 %v1819, 1.442695
        %v1944 = vpow.pop %v1943
        %v1945 = vmul.f32 %v1820, 1.442695
        %v1946 = vpow.pop %v1945
        %v1947 = vmul.f32 %v1821, 1.442695
        %v1948 = vpow.pop %v1947
        %v1949 = vmul.f32 %v1822, 1.442695
        %v1950 = vpow.pop %v1949
        %v1951 = vadd.f32 %v1824, %v1826
        %v1952 = vadd.f32 %v1951, %v1828
        %v1953 = vadd.f32 %v1952, %v1830
        %v1954 = vadd.f32 %v1953, %v1832
        %v1955 = vadd.f32 %v1954, %v1834
        %v1956 = vadd.f32 %v1955, %v1836
        %v1957 = vadd.f32 %v1956, %v1838
        %v1958 = vadd.f32 %v1957, %v1840
        %v1959 = vadd.f32 %v1958, %v1842
        %v1960 = vadd.f32 %v1959, %v1844
        %v1961 = vadd.f32 %v1960, %v1846
        %v1962 = vadd.f32 %v1961, %v1848
        %v1963 = vadd.f32 %v1962, %v1850
        %v1964 = vadd.f32 %v1963, %v1852
        %v1965 = vadd.f32 %v1964, %v1854
        %v1966 = vrot.slane %v1965, 4
        %v1967 = vadd.f32 %v1965, %v1966
        %v1968 = vrot.slane %v1967, 2
        %v1969 = vadd.f32 %v1967, %v1968
        %v1970 = vrot.slane %v1969, 1
        %v1971 = vadd.f32 %v1969, %v1970
        %v1972 = vadd.f32 %v1856, %v1858
        %v1973 = vadd.f32 %v1972, %v1860
        %v1974 = vadd.f32 %v1973, %v1862
        %v1975 = vadd.f32 %v1974, %v1864
        %v1976 = vadd.f32 %v1975, %v1866
        %v1977 = vadd.f32 %v1976, %v1868
        %v1978 = vadd.f32 %v1977, %v1870
        %v1979 = vadd.f32 %v1978, %v1872
        %v1980 = vadd.f32 %v1979, %v1874
        %v1981 = vadd.f32 %v1980, %v1876
        %v1982 = vadd.f32 %v1981, %v1878
        %v1983 = vadd.f32 %v1982, %v1880
        %v1984 = vadd.f32 %v1983, %v1882
        %v1985 = vadd.f32 %v1984, %v1884
        %v1986 = vadd.f32 %v1985, %v1886
        %v1987 = vrot.slane %v1986, 4
        %v1988 = vadd.f32 %v1986, %v1987
        %v1989 = vrot.slane %v1988, 2
        %v1990 = vadd.f32 %v1988, %v1989
        %v1991 = vrot.slane %v1990, 1
        %v1992 = vadd.f32 %v1990, %v1991
        %v1993 = vadd.f32 %v1888, %v1890
        %v1994 = vadd.f32 %v1993, %v1892
        %v1995 = vadd.f32 %v1994, %v1894
        %v1996 = vadd.f32 %v1995, %v1896
        %v1997 = vadd.f32 %v1996, %v1898
        %v1998 = vadd.f32 %v1997, %v1900
        %v1999 = vadd.f32 %v1998, %v1902
        %v2000 = vadd.f32 %v1999, %v1904
        %v2001 = vadd.f32 %v2000, %v1906
        %v2002 = vadd.f32 %v2001, %v1908
        %v2003 = vadd.f32 %v2002, %v1910
        %v2004 = vadd.f32 %v2003, %v1912
        %v2005 = vadd.f32 %v2004, %v1914
        %v2006 = vadd.f32 %v2005, %v1916
        %v2007 = vadd.f32 %v2006, %v1918
        %v2008 = vrot.slane %v2007, 4
        %v2009 = vadd.f32 %v2007, %v2008
        %v2010 = vrot.slane %v2009, 2
        %v2011 = vadd.f32 %v2009, %v2010
        %v2012 = vrot.slane %v2011, 1
        %v2013 = vadd.f32 %v2011, %v2012
        %v2014 = vadd.f32 %v1920, %v1922
        %v2015 = vadd.f32 %v2014, %v1924
        %v2016 = vadd.f32 %v2015, %v1926
        %v2017 = vadd.f32 %v2016, %v1928
        %v2018 = vadd.f32 %v2017, %v1930
        %v2019 = vadd.f32 %v2018, %v1932
        %v2020 = vadd.f32 %v2019, %v1934
        %v2021 = vadd.f32 %v2020, %v1936
        %v2022 = vadd.f32 %v2021, %v1938
        %v2023 = vadd.f32 %v2022, %v1940
        %v2024 = vadd.f32 %v2023, %v1942
        %v2025 = vadd.f32 %v2024, %v1944
        %v2026 = vadd.f32 %v2025, %v1946
        %v2027 = vadd.f32 %v2026, %v1948
        %v2028 = vadd.f32 %v2027, %v1950
        %v2029 = vrot.slane %v2028, 4
        %v2030 = vadd.f32 %v2028, %v2029
        %v2031 = vrot.slane %v2030, 2
        %v2032 = vadd.f32 %v2030, %v2031
        %v2033 = vrot.slane %v2032, 1
        %v2034 = vadd.f32 %v2032, %v2033
        %v2035 = vrcp.pop %v1971
        %v2036 = vmul.f32 %v1824, %v2035
        %v2037 = vmul.f32 %v1826, %v2035
        %v2038 = vmul.f32 %v1828, %v2035
        %v2039 = vmul.f32 %v1830, %v2035
        %v2040 = vmul.f32 %v1832, %v2035
        %v2041 = vmul.f32 %v1834, %v2035
        %v2042 = vmul.f32 %v1836, %v2035
        %v2043 = vmul.f32 %v1838, %v2035
        %v2044 = vmul.f32 %v1840, %v2035
        %v2045 = vmul.f32 %v1842, %v2035
        %v2046 = vmul.f32 %v1844, %v2035
        %v2047 = vmul.f32 %v1846, %v2035
        %v2048 = vmul.f32 %v1848, %v2035
        %v2049 = vmul.f32 %v1850, %v2035
        %v2050 = vmul.f32 %v1852, %v2035
        %v2051 = vmul.f32 %v1854, %v2035
        %v2052 = vrcp.pop %v1992
        %v2053 = vmul.f32 %v1856, %v2052
        %v2054 = vmul.f32 %v1858, %v2052
        %v2055 = vmul.f32 %v1860, %v2052
        %v2056 = vmul.f32 %v1862, %v2052
        %v2057 = vmul.f32 %v1864, %v2052
        %v2058 = vmul.f32 %v1866, %v2052
        %v2059 = vmul.f32 %v1868, %v2052
        %v2060 = vmul.f32 %v1870, %v2052
        %v2061 = vmul.f32 %v1872, %v2052
        %v2062 = vmul.f32 %v1874, %v2052
        %v2063 = vmul.f32 %v1876, %v2052
        %v2064 = vmul.f32 %v1878, %v2052
        %v2065 = vmul.f32 %v1880, %v2052
        %v2066 = vmul.f32 %v1882, %v2052
        %v2067 = vmul.f32 %v1884, %v2052
        %v2068 = vmul.f32 %v1886, %v2052
        %v2069 = vrcp.pop %v2013
        %v2070 = vmul.f32 %v1888, %v2069
        %v2071 = vmul.f32 %v1890, %v2069
        %v2072 = vmul.f32 %v1892, %v2069
        %v2073 = vmul.f32 %v1894, %v2069
        %v2074 = vmul.f32 %v1896, %v2069
        %v2075 = vmul.f32 %v1898, %v2069
        %v2076 = vmul.f32 %v1900, %v2069
        %v2077 = vmul.f32 %v1902, %v2069
        %v2078 = vmul.f32 %v1904, %v2069
        %v2079 = vmul.f32 %v1906, %v2069
        %v2080 = vmul.f32 %v1908, %v2069
        %v2081 = vmul.f32 %v1910, %v2069
        %v2082 = vmul.f32 %v1912, %v2069
        %v2083 = vmul.f32 %v1914, %v2069
        %v2084 = vmul.f32 %v1916, %v2069
        %v2085 = vmul.f32 %v1918, %v2069
        %v2086 = vrcp.pop %v2034
        %v2087 = vmul.f32 %v1920, %v2086
        %v2088 = vmul.f32 %v1922, %v2086
        %v2089 = vmul.f32 %v1924, %v2086
        %v2090 = vmul.f32 %v1926, %v2086
        %v2091 = vmul.f32 %v1928, %v2086
        %v2092 = vmul.f32 %v1930, %v2086
        %v2093 = vmul.f32 %v1932, %v2086
        %v2094 = vmul.f32 %v1934, %v2086
        %v2095 = vmul.f32 %v1936, %v2086
        %v2096 = vmul.f32 %v1938, %v2086
        %v2097 = vmul.f32 %v1940, %v2086
        %v2098 = vmul.f32 %v1942, %v2086
        %v2099 = vmul.f32 %v1944, %v2086
        %v2100 = vmul.f32 %v1946, %v2086
        %v2101 = vmul.f32 %v1948, %v2086
        %v2102 = vmul.f32 %v1950, %v2086
        %v2103 = vpack.c.bf16 %v2037, %v2036
        %v2104 = vpack.c.bf16 %v2039, %v2038
        %v2105 = vpack.c.bf16 %v2041, %v2040
        %v2106 = vpack.c.bf16 %v2043, %v2042
        %v2107 = vpack.c.bf16 %v2045, %v2044
        %v2108 = vpack.c.bf16 %v2047, %v2046
        %v2109 = vpack.c.bf16 %v2049, %v2048
        %v2110 = vpack.c.bf16 %v2051, %v2050
        %v2111 = vpack.c.bf16 %v2054, %v2053
        %v2112 = vpack.c.bf16 %v2056, %v2055
        %v2113 = vpack.c.bf16 %v2058, %v2057
        %v2114 = vpack.c.bf16 %v2060, %v2059
        %v2115 = vpack.c.bf16 %v2062, %v2061
        %v2116 = vpack.c.bf16 %v2064, %v2063
        %v2117 = vpack.c.bf16 %v2066, %v2065
        %v2118 = vpack.c.bf16 %v2068, %v2067
        %v2119 = vpack.c.bf16 %v2071, %v2070
        %v2120 = vpack.c.bf16 %v2073, %v2072
        %v2121 = vpack.c.bf16 %v2075, %v2074
        %v2122 = vpack.c.bf16 %v2077, %v2076
        %v2123 = vpack.c.bf16 %v2079, %v2078
        %v2124 = vpack.c.bf16 %v2081, %v2080
        %v2125 = vpack.c.bf16 %v2083, %v2082
        %v2126 = vpack.c.bf16 %v2085, %v2084
        %v2127 = vpack.c.bf16 %v2088, %v2087
        %v2128 = vpack.c.bf16 %v2090, %v2089
        %v2129 = vpack.c.bf16 %v2092, %v2091
        %v2130 = vpack.c.bf16 %v2094, %v2093
        %v2131 = vpack.c.bf16 %v2096, %v2095
        %v2132 = vpack.c.bf16 %v2098, %v2097
        %v2133 = vpack.c.bf16 %v2100, %v2099
        %v2134 = vpack.c.bf16 %v2102, %v2101
        %v2167 = vunpack.c.l.b16 %v2103
        %v2168 = vunpack.c.h.b16 %v2103
        %v2169 = vunpack.c.l.b16 %v2104
        %v2170 = vunpack.c.h.b16 %v2104
        %v2171 = vunpack.c.l.b16 %v2105
        %v2172 = vunpack.c.h.b16 %v2105
        %v2173 = vunpack.c.l.b16 %v2106
        %v2174 = vunpack.c.h.b16 %v2106
        %v2175 = vunpack.c.l.b16 %v2107
        %v2176 = vunpack.c.h.b16 %v2107
        %v2177 = vunpack.c.l.b16 %v2108
        %v2178 = vunpack.c.h.b16 %v2108
        %v2179 = vunpack.c.l.b16 %v2109
        %v2180 = vunpack.c.h.b16 %v2109
        %v2181 = vunpack.c.l.b16 %v2110
        %v2182 = vunpack.c.h.b16 %v2110
        %v2183 = vunpack.c.l.b16 %v2111
        %v2184 = vunpack.c.h.b16 %v2111
        %v2185 = vunpack.c.l.b16 %v2112
        %v2186 = vunpack.c.h.b16 %v2112
        %v2187 = vunpack.c.l.b16 %v2113
        %v2188 = vunpack.c.h.b16 %v2113
        %v2189 = vunpack.c.l.b16 %v2114
        %v2190 = vunpack.c.h.b16 %v2114
        %v2191 = vunpack.c.l.b16 %v2115
        %v2192 = vunpack.c.h.b16 %v2115
        %v2193 = vunpack.c.l.b16 %v2116
        %v2194 = vunpack.c.h.b16 %v2116
        %v2195 = vunpack.c.l.b16 %v2117
        %v2196 = vunpack.c.h.b16 %v2117
        %v2197 = vunpack.c.l.b16 %v2118
        %v2198 = vunpack.c.h.b16 %v2118
        %v2199 = vunpack.c.l.b16 %v2119
        %v2200 = vunpack.c.h.b16 %v2119
        %v2201 = vunpack.c.l.b16 %v2120
        %v2202 = vunpack.c.h.b16 %v2120
        %v2203 = vunpack.c.l.b16 %v2121
        %v2204 = vunpack.c.h.b16 %v2121
        %v2205 = vunpack.c.l.b16 %v2122
        %v2206 = vunpack.c.h.b16 %v2122
        %v2207 = vunpack.c.l.b16 %v2123
        %v2208 = vunpack.c.h.b16 %v2123
        %v2209 = vunpack.c.l.b16 %v2124
        %v2210 = vunpack.c.h.b16 %v2124
        %v2211 = vunpack.c.l.b16 %v2125
        %v2212 = vunpack.c.h.b16 %v2125
        %v2213 = vunpack.c.l.b16 %v2126
        %v2214 = vunpack.c.h.b16 %v2126
        %v2215 = vunpack.c.l.b16 %v2127
        %v2216 = vunpack.c.h.b16 %v2127
        %v2217 = vunpack.c.l.b16 %v2128
        %v2218 = vunpack.c.h.b16 %v2128
        %v2219 = vunpack.c.l.b16 %v2129
        %v2220 = vunpack.c.h.b16 %v2129
        %v2221 = vunpack.c.l.b16 %v2130
        %v2222 = vunpack.c.h.b16 %v2130
        %v2223 = vunpack.c.l.b16 %v2131
        %v2224 = vunpack.c.h.b16 %v2131
        %v2225 = vunpack.c.l.b16 %v2132
        %v2226 = vunpack.c.h.b16 %v2132
        %v2227 = vunpack.c.l.b16 %v2133
        %v2228 = vunpack.c.h.b16 %v2133
        %v2229 = vunpack.c.l.b16 %v2134
        %v2230 = vunpack.c.h.b16 %v2134
        %v2231 = vpack.c.b16 %v2167, %v2167
        %v2232 = vpack.c.b16 %v2168, %v2168
        %v2233 = vpack.c.b16 %v2169, %v2169
        %v2234 = vpack.c.b16 %v2170, %v2170
        %v2235 = vpack.c.b16 %v2171, %v2171
        %v2236 = vpack.c.b16 %v2172, %v2172
        %v2237 = vpack.c.b16 %v2173, %v2173
        %v2238 = vpack.c.b16 %v2174, %v2174
        %v2239 = vpack.c.b16 %v2175, %v2175
        %v2240 = vpack.c.b16 %v2176, %v2176
        %v2241 = vpack.c.b16 %v2177, %v2177
        %v2242 = vpack.c.b16 %v2178, %v2178
        %v2243 = vpack.c.b16 %v2179, %v2179
        %v2244 = vpack.c.b16 %v2180, %v2180
        %v2245 = vpack.c.b16 %v2181, %v2181
        %v2246 = vpack.c.b16 %v2182, %v2182
        %v2247 = vpack.c.b16 %v2183, %v2183
        %v2248 = vpack.c.b16 %v2184, %v2184
        %v2249 = vpack.c.b16 %v2185, %v2185
        %v2250 = vpack.c.b16 %v2186, %v2186
        %v2251 = vpack.c.b16 %v2187, %v2187
        %v2252 = vpack.c.b16 %v2188, %v2188
        %v2253 = vpack.c.b16 %v2189, %v2189
        %v2254 = vpack.c.b16 %v2190, %v2190
        %v2255 = vpack.c.b16 %v2191, %v2191
        %v2256 = vpack.c.b16 %v2192, %v2192
        %v2257 = vpack.c.b16 %v2193, %v2193
        %v2258 = vpack.c.b16 %v2194, %v2194
        %v2259 = vpack.c.b16 %v2195, %v2195
        %v2260 = vpack.c.b16 %v2196, %v2196
        %v2261 = vpack.c.b16 %v2197, %v2197
        %v2262 = vpack.c.b16 %v2198, %v2198
        %v2263 = vpack.c.b16 %v2199, %v2199
        %v2264 = vpack.c.b16 %v2200, %v2200
        %v2265 = vpack.c.b16 %v2201, %v2201
        %v2266 = vpack.c.b16 %v2202, %v2202
        %v2267 = vpack.c.b16 %v2203, %v2203
        %v2268 = vpack.c.b16 %v2204, %v2204
        %v2269 = vpack.c.b16 %v2205, %v2205
        %v2270 = vpack.c.b16 %v2206, %v2206
        %v2271 = vpack.c.b16 %v2207, %v2207
        %v2272 = vpack.c.b16 %v2208, %v2208
        %v2273 = vpack.c.b16 %v2209, %v2209
        %v2274 = vpack.c.b16 %v2210, %v2210
        %v2275 = vpack.c.b16 %v2211, %v2211
        %v2276 = vpack.c.b16 %v2212, %v2212
        %v2277 = vpack.c.b16 %v2213, %v2213
        %v2278 = vpack.c.b16 %v2214, %v2214
        %v2279 = vpack.c.b16 %v2215, %v2215
        %v2280 = vpack.c.b16 %v2216, %v2216
        %v2281 = vpack.c.b16 %v2217, %v2217
        %v2282 = vpack.c.b16 %v2218, %v2218
        %v2283 = vpack.c.b16 %v2219, %v2219
        %v2284 = vpack.c.b16 %v2220, %v2220
        %v2285 = vpack.c.b16 %v2221, %v2221
        %v2286 = vpack.c.b16 %v2222, %v2222
        %v2287 = vpack.c.b16 %v2223, %v2223
        %v2288 = vpack.c.b16 %v2224, %v2224
        %v2289 = vpack.c.b16 %v2225, %v2225
        %v2290 = vpack.c.b16 %v2226, %v2226
        %v2291 = vpack.c.b16 %v2227, %v2227
        %v2292 = vpack.c.b16 %v2228, %v2228
        %v2293 = vpack.c.b16 %v2229, %v2229
        %v2294 = vpack.c.b16 %v2230, %v2230
        %2359 = vst [vmem:[%s545] sm:$0xf] %v2231
        %2360 = vst [vmem:[%s545 + $0x4] sm:$0xf] %v2232
        %2361 = vst [vmem:[%s545 + $0x8] sm:$0xf] %v2233
        %2362 = vst [vmem:[%s545 + $0xc] sm:$0xf] %v2234
        %2363 = vst [vmem:[%s545 + $0x10] sm:$0xf] %v2235
        %2364 = vst [vmem:[%s545 + $0x14] sm:$0xf] %v2236
        %2365 = vst [vmem:[%s545 + $0x18] sm:$0xf] %v2237
        %2366 = vst [vmem:[%s545 + $0x1c] sm:$0xf] %v2238
        %2367 = vst [vmem:[%s545 + $0x20] sm:$0xf] %v2239
        %2368 = vst [vmem:[%s545 + $0x24] sm:$0xf] %v2240
        %2369 = vst [vmem:[%s545 + $0x28] sm:$0xf] %v2241
        %2370 = vst [vmem:[%s545 + $0x2c] sm:$0xf] %v2242
        %2371 = vst [vmem:[%s545 + $0x30] sm:$0xf] %v2243
        %2372 = vst [vmem:[%s545 + $0x34] sm:$0xf] %v2244
        %2373 = vst [vmem:[%s545 + $0x38] sm:$0xf] %v2245
        %2374 = vst [vmem:[%s545 + $0x3c] sm:$0xf] %v2246
        %2375 = vst [vmem:[%s545 + $0x40] sm:$0xf] %v2247
        %2376 = vst [vmem:[%s545 + $0x44] sm:$0xf] %v2248
        %2377 = vst [vmem:[%s545 + $0x48] sm:$0xf] %v2249
        %2378 = vst [vmem:[%s545 + $0x4c] sm:$0xf] %v2250
        %2379 = vst [vmem:[%s545 + $0x50] sm:$0xf] %v2251
        %2380 = vst [vmem:[%s545 + $0x54] sm:$0xf] %v2252
        %2381 = vst [vmem:[%s545 + $0x58] sm:$0xf] %v2253
        %2382 = vst [vmem:[%s545 + $0x5c] sm:$0xf] %v2254
        %2383 = vst [vmem:[%s545 + $0x60] sm:$0xf] %v2255
        %2384 = vst [vmem:[%s545 + $0x64] sm:$0xf] %v2256
        %2385 = vst [vmem:[%s545 + $0x68] sm:$0xf] %v2257
        %2386 = vst [vmem:[%s545 + $0x6c] sm:$0xf] %v2258
        %2387 = vst [vmem:[%s545 + $0x70] sm:$0xf] %v2259
        %2388 = vst [vmem:[%s545 + $0x74] sm:$0xf] %v2260
        %2389 = vst [vmem:[%s545 + $0x78] sm:$0xf] %v2261
        %2390 = vst [vmem:[%s545 + $0x7c] sm:$0xf] %v2262
        %2391 = vst [vmem:[%s545 + $0x80] sm:$0xf] %v2263
        %2392 = vst [vmem:[%s545 + $0x84] sm:$0xf] %v2264
        %2393 = vst [vmem:[%s545 + $0x88] sm:$0xf] %v2265
        %2394 = vst [vmem:[%s545 + $0x8c] sm:$0xf] %v2266
        %2395 = vst [vmem:[%s545 + $0x90] sm:$0xf] %v2267
        %2396 = vst [vmem:[%s545 + $0x94] sm:$0xf] %v2268
        %2397 = vst [vmem:[%s545 + $0x98] sm:$0xf] %v2269
        %2398 = vst [vmem:[%s545 + $0x9c] sm:$0xf] %v2270
        %2399 = vst [vmem:[%s545 + $0xa0] sm:$0xf] %v2271
        %2400 = vst [vmem:[%s545 + $0xa4] sm:$0xf] %v2272
        %2401 = vst [vmem:[%s545 + $0xa8] sm:$0xf] %v2273
        %2402 = vst [vmem:[%s545 + $0xac] sm:$0xf] %v2274
        %2403 = vst [vmem:[%s545 + $0xb0] sm:$0xf] %v2275
        %2404 = vst [vmem:[%s545 + $0xb4] sm:$0xf] %v2276
        %2405 = vst [vmem:[%s545 + $0xb8] sm:$0xf] %v2277
        %2406 = vst [vmem:[%s545 + $0xbc] sm:$0xf] %v2278
        %2407 = vst [vmem:[%s545 + $0xc0] sm:$0xf] %v2279
        %2408 = vst [vmem:[%s545 + $0xc4] sm:$0xf] %v2280
        %2409 = vst [vmem:[%s545 + $0xc8] sm:$0xf] %v2281
        %2410 = vst [vmem:[%s545 + $0xcc] sm:$0xf] %v2282
        %2411 = vst [vmem:[%s545 + $0xd0] sm:$0xf] %v2283
        %2412 = vst [vmem:[%s545 + $0xd4] sm:$0xf] %v2284
        %2413 = vst [vmem:[%s545 + $0xd8] sm:$0xf] %v2285
        %2414 = vst [vmem:[%s545 + $0xdc] sm:$0xf] %v2286
        %2415 = vst [vmem:[%s545 + $0xe0] sm:$0xf] %v2287
        %2416 = vst [vmem:[%s545 + $0xe4] sm:$0xf] %v2288
        %2417 = vst [vmem:[%s545 + $0xe8] sm:$0xf] %v2289
        %2418 = vst [vmem:[%s545 + $0xec] sm:$0xf] %v2290
        %2419 = vst [vmem:[%s545 + $0xf0] sm:$0xf] %v2291
        %2420 = vst [vmem:[%s545 + $0xf4] sm:$0xf] %v2292
        %2421 = vst [vmem:[%s545 + $0xf8] sm:$0xf] %v2293
        %2422 = vst [vmem:[%s545 + $0xfc] sm:$0xf] %v2294
        %2423 = vmatprep.subr.bf16.mxu0 0
        %2424 = vmatpush1.bf16.msra.mxu0 %v2103
        %2425 = vmatprep.subr.bf16.mxu0 0
        %2426 = vmatpush1.bf16.msra.mxu0 %v2104
        %2427 = vmatprep.subr.bf16.mxu0 0
        %2428 = vmatpush1.bf16.msra.mxu0 %v2105
        %2429 = vmatprep.subr.bf16.mxu0 0
        %2430 = vmatpush1.bf16.msra.mxu0 %v2106
        %2431 = vmatprep.subr.bf16.mxu0 0
        %2432 = vmatpush1.bf16.msra.mxu0 %v2107
        %2433 = vmatprep.subr.bf16.mxu0 0
        %2434 = vmatpush1.bf16.msra.mxu0 %v2108
        %2435 = vmatprep.subr.bf16.mxu0 0
        %2436 = vmatpush1.bf16.msra.mxu0 %v2109
        %2437 = vmatprep.subr.bf16.mxu0 0
        %2438 = vmatpush1.bf16.msra.mxu0 %v2110
        %2439 = vmatprep.subr.bf16.mxu0 0
        %2440 = vmatpush1.bf16.msra.mxu0 0
        %2441 = vmatprep.subr.bf16.mxu0 0
        %2442 = vmatpush1.bf16.msra.mxu0 0
        %2443 = vmatprep.subr.bf16.mxu0 0
        %2444 = vmatpush1.bf16.msra.mxu0 0
        %2445 = vmatprep.subr.bf16.mxu0 0
        %2446 = vmatpush1.bf16.msra.mxu0 0
        %2447 = vmatprep.subr.bf16.mxu0 0
        %2448 = vmatpush1.bf16.msra.mxu0 0
        %2449 = vmatprep.subr.bf16.mxu0 0
        %2450 = vmatpush1.bf16.msra.mxu0 0
        %2451 = vmatprep.subr.bf16.mxu0 0
        %2452 = vmatpush1.bf16.msra.mxu0 0
        %2453 = vmatprep.subr.bf16.mxu0 0
        %2454 = vmatpush1.bf16.msra.mxu0 0
        %2455 = vmatprep.mubr.bf16.mxu0 0
        %2456 = vmatmul.mubr.bf16.gmra.mrb[0].mxu0 %v1122
        %v2457 = vpop.f32.mrb[0].mxu0
        %v2458 = vadd.f32 0.0, %v2457
        %v2459 = vpop.f32.mrb[0].mxu0
        %v2460 = vpop.f32.mrb[0].mxu0
        %v2461 = vadd.f32 0.0, %v2460
        %v2462 = vpop.f32.mrb[0].mxu0
        %2463 = vdwg.mxu0
        %2464 = vmatprep.subr.bf16.mxu0 0
        %2465 = vmatpush1.bf16.msra.mxu0 %v2111
        %2466 = vmatprep.subr.bf16.mxu0 0
        %2467 = vmatpush1.bf16.msra.mxu0 %v2112
        %2468 = vmatprep.subr.bf16.mxu0 0
        %2469 = vmatpush1.bf16.msra.mxu0 %v2113
        %2470 = vmatprep.subr.bf16.mxu0 0
        %2471 = vmatpush1.bf16.msra.mxu0 %v2114
        %2472 = vmatprep.subr.bf16.mxu0 0
        %2473 = vmatpush1.bf16.msra.mxu0 %v2115
        %2474 = vmatprep.subr.bf16.mxu0 0
        %2475 = vmatpush1.bf16.msra.mxu0 %v2116
        %2476 = vmatprep.subr.bf16.mxu0 0
        %2477 = vmatpush1.bf16.msra.mxu0 %v2117
        %2478 = vmatprep.subr.bf16.mxu0 0
        %2479 = vmatpush1.bf16.msra.mxu0 %v2118
        %2480 = vmatprep.subr.bf16.mxu0 0
        %2481 = vmatpush1.bf16.msra.mxu0 0
        %2482 = vmatprep.subr.bf16.mxu0 0
        %2483 = vmatpush1.bf16.msra.mxu0 0
        %2484 = vmatprep.subr.bf16.mxu0 0
        %2485 = vmatpush1.bf16.msra.mxu0 0
        %2486 = vmatprep.subr.bf16.mxu0 0
        %2487 = vmatpush1.bf16.msra.mxu0 0
        %2488 = vmatprep.subr.bf16.mxu0 0
        %2489 = vmatpush1.bf16.msra.mxu0 0
        %2490 = vmatprep.subr.bf16.mxu0 0
        %2491 = vmatpush1.bf16.msra.mxu0 0
        %2492 = vmatprep.subr.bf16.mxu0 0
        %2493 = vmatpush1.bf16.msra.mxu0 0
        %2494 = vmatprep.subr.bf16.mxu0 0
        %2495 = vmatpush1.bf16.msra.mxu0 0
        %2496 = vmatprep.mubr.bf16.mxu0 0
        %2497 = vmatmul.mubr.bf16.gmra.mrb[0].mxu0 %v1123
        %v2498 = vpop.f32.mrb[0].mxu0
        %v2499 = vadd.f32 0.0, %v2498
        %v2500 = vpop.f32.mrb[0].mxu0
        %v2501 = vpop.f32.mrb[0].mxu0
        %v2502 = vadd.f32 0.0, %v2501
        %v2503 = vpop.f32.mrb[0].mxu0
        %2504 = vdwg.mxu0
        %2505 = vmatprep.subr.bf16.mxu0 0
        %2506 = vmatpush1.bf16.msra.mxu0 %v2119
        %2507 = vmatprep.subr.bf16.mxu0 0
        %2508 = vmatpush1.bf16.msra.mxu0 %v2120
        %2509 = vmatprep.subr.bf16.mxu0 0
        %2510 = vmatpush1.bf16.msra.mxu0 %v2121
        %2511 = vmatprep.subr.bf16.mxu0 0
        %2512 = vmatpush1.bf16.msra.mxu0 %v2122
        %2513 = vmatprep.subr.bf16.mxu0 0
        %2514 = vmatpush1.bf16.msra.mxu0 %v2123
        %2515 = vmatprep.subr.bf16.mxu0 0
        %2516 = vmatpush1.bf16.msra.mxu0 %v2124
        %2517 = vmatprep.subr.bf16.mxu0 0
        %2518 = vmatpush1.bf16.msra.mxu0 %v2125
        %2519 = vmatprep.subr.bf16.mxu0 0
        %2520 = vmatpush1.bf16.msra.mxu0 %v2126
        %2521 = vmatprep.subr.bf16.mxu0 0
        %2522 = vmatpush1.bf16.msra.mxu0 0
        %2523 = vmatprep.subr.bf16.mxu0 0
        %2524 = vmatpush1.bf16.msra.mxu0 0
        %2525 = vmatprep.subr.bf16.mxu0 0
        %2526 = vmatpush1.bf16.msra.mxu0 0
        %2527 = vmatprep.subr.bf16.mxu0 0
        %2528 = vmatpush1.bf16.msra.mxu0 0
        %2529 = vmatprep.subr.bf16.mxu0 0
        %2530 = vmatpush1.bf16.msra.mxu0 0
        %2531 = vmatprep.subr.bf16.mxu0 0
        %2532 = vmatpush1.bf16.msra.mxu0 0
        %2533 = vmatprep.subr.bf16.mxu0 0
        %2534 = vmatpush1.bf16.msra.mxu0 0
        %2535 = vmatprep.subr.bf16.mxu0 0
        %2536 = vmatpush1.bf16.msra.mxu0 0
        %2537 = vmatprep.mubr.bf16.mxu0 0
        %2538 = vmatmul.mubr.bf16.gmra.mrb[0].mxu0 %v1124
        %v2539 = vpop.f32.mrb[0].mxu0
        %v2540 = vadd.f32 0.0, %v2539
        %v2541 = vpop.f32.mrb[0].mxu0
        %v2542 = vpop.f32.mrb[0].mxu0
        %v2543 = vadd.f32 0.0, %v2542
        %v2544 = vpop.f32.mrb[0].mxu0
        %2545 = vdwg.mxu0
        %2546 = vmatprep.subr.bf16.mxu0 0
        %2547 = vmatpush1.bf16.msra.mxu0 %v2127
        %2548 = vmatprep.subr.bf16.mxu0 0
        %2549 = vmatpush1.bf16.msra.mxu0 %v2128
        %2550 = vmatprep.subr.bf16.mxu0 0
        %2551 = vmatpush1.bf16.msra.mxu0 %v2129
        %2552 = vmatprep.subr.bf16.mxu0 0
        %2553 = vmatpush1.bf16.msra.mxu0 %v2130
        %2554 = vmatprep.subr.bf16.mxu0 0
        %2555 = vmatpush1.bf16.msra.mxu0 %v2131
        %2556 = vmatprep.subr.bf16.mxu0 0
        %2557 = vmatpush1.bf16.msra.mxu0 %v2132
        %2558 = vmatprep.subr.bf16.mxu0 0
        %2559 = vmatpush1.bf16.msra.mxu0 %v2133
        %2560 = vmatprep.subr.bf16.mxu0 0
        %2561 = vmatpush1.bf16.msra.mxu0 %v2134
        %2562 = vmatprep.subr.bf16.mxu0 0
        %2563 = vmatpush1.bf16.msra.mxu0 0
        %2564 = vmatprep.subr.bf16.mxu0 0
        %2565 = vmatpush1.bf16.msra.mxu0 0
        %2566 = vmatprep.subr.bf16.mxu0 0
        %2567 = vmatpush1.bf16.msra.mxu0 0
        %2568 = vmatprep.subr.bf16.mxu0 0
        %2569 = vmatpush1.bf16.msra.mxu0 0
        %2570 = vmatprep.subr.bf16.mxu0 0
        %2571 = vmatpush1.bf16.msra.mxu0 0
        %2572 = vmatprep.subr.bf16.mxu0 0
        %2573 = vmatpush1.bf16.msra.mxu0 0
        %2574 = vmatprep.subr.bf16.mxu0 0
        %2575 = vmatpush1.bf16.msra.mxu0 0
        %2576 = vmatprep.subr.bf16.mxu0 0
        %2577 = vmatpush1.bf16.msra.mxu0 0
        %2578 = vmatprep.mubr.bf16.mxu0 0
        %2579 = vmatmul.mubr.bf16.gmra.mrb[0].mxu0 %v1125
        %v2580 = vpop.f32.mrb[0].mxu0
        %v2581 = vadd.f32 0.0, %v2580
        %v2582 = vpop.f32.mrb[0].mxu0
        %v2583 = vpop.f32.mrb[0].mxu0
        %v2584 = vadd.f32 0.0, %v2583
        %v2585 = vpop.f32.mrb[0].mxu0
        %2586 = vdwg.mxu0
        %v2587 = vld [vmem:[%s9] sm:$0xf]
        %v2588 = vld [vmem:[%s9 + $0x4] sm:$0xf]
        %v2589 = vld [vmem:[%s9 + $0x8] sm:$0xf]
        %v2590 = vld [vmem:[%s9 + $0xc] sm:$0xf]
        %v2591 = vld [vmem:[%s9 + $0x10] sm:$0xf]
        %v2592 = vld [vmem:[%s9 + $0x14] sm:$0xf]
        %v2593 = vld [vmem:[%s9 + $0x18] sm:$0xf]
        %v2594 = vld [vmem:[%s9 + $0x1c] sm:$0xf]
        %v2595 = vpack.c.bf16 %v2461, %v2458
        %v2596 = vpack.c.bf16 %v2502, %v2499
        %v2597 = vpack.c.bf16 %v2543, %v2540
        %v2598 = vpack.c.bf16 %v2584, %v2581
        %v2599 = vld [vmem:[%s10] sm:$0xff]
        %v2600 = vld [vmem:[%s10 + $0x8] sm:$0xff]
        %v2601 = vld [vmem:[%s10 + $0x10] sm:$0xff]
        %v2602 = vld [vmem:[%s10 + $0x18] sm:$0xff]
        %v2603 = vld [vmem:[%s10 + $0x20] sm:$0xff]
        %v2604 = vld [vmem:[%s10 + $0x28] sm:$0xff]
        %v2605 = vld [vmem:[%s10 + $0x30] sm:$0xff]
        %v2606 = vld [vmem:[%s10 + $0x38] sm:$0xff]
        %2608 = vset.pattern.permute.xlu0 0
        %2609 = vperm.xlu0 %2608, %v2599
        %v2610 = vpop.permute.xlu0 %2609
        %2613 = vset.pattern.permute.xlu0 0
        %2614 = vperm.xlu0 %2613, %v2600
        %v2615 = vpop.permute.xlu0 %2614
        %2618 = vset.pattern.permute.xlu0 0
        %2619 = vperm.xlu0 %2618, %v2601
        %v2620 = vpop.permute.xlu0 %2619
        %2623 = vset.pattern.permute.xlu0 0
        %2624 = vperm.xlu0 %2623, %v2602
        %v2625 = vpop.permute.xlu0 %2624
        %2628 = vset.pattern.permute.xlu0 0
        %2629 = vperm.xlu0 %2628, %v2603
        %v2630 = vpop.permute.xlu0 %2629
        %2633 = vset.pattern.permute.xlu0 0
        %2634 = vperm.xlu0 %2633, %v2604
        %v2635 = vpop.permute.xlu0 %2634
        %2638 = vset.pattern.permute.xlu0 0
        %2639 = vperm.xlu0 %2638, %v2605
        %v2640 = vpop.permute.xlu0 %2639
        %2643 = vset.pattern.permute.xlu0 0
        %2644 = vperm.xlu0 %2643, %v2606
        %v2645 = vpop.permute.xlu0 %2644
        %v2655 = vunpack.c.l.b16 %v2587
        %v2656 = vunpack.c.l.b16 %v2588
        %v2657 = vunpack.c.l.b16 %v2589
        %v2658 = vunpack.c.l.b16 %v2590
        %v2659 = vunpack.c.l.b16 %v2591
        %v2660 = vunpack.c.l.b16 %v2592
        %v2661 = vunpack.c.l.b16 %v2593
        %v2662 = vunpack.c.l.b16 %v2594
        %v2663 = vpack.c.b16 %v2656, %v2655
        %v2664 = vpack.c.b16 %v2658, %v2657
        %v2665 = vpack.c.b16 %v2660, %v2659
        %v2666 = vpack.c.b16 %v2662, %v2661
        %v2668 = vsel %vm1036, %v2663, 0
        %v2671 = vsel %vm1036, %v2664, 0
        %v2674 = vsel %vm1036, %v2665, 0
        %v2677 = vsel %vm1036, %v2666, 0
        %2679 = vmatprep.subr.bf16.mxu0 0
        %2680 = vmatpush1.bf16.msra.mxu0 %v2595
        %2681 = vmatprep.subr.bf16.mxu0 0
        %2682 = vmatpush1.bf16.msra.mxu0 %v2596
        %2683 = vmatprep.subr.bf16.mxu0 0
        %2684 = vmatpush1.bf16.msra.mxu0 %v2597
        %2685 = vmatprep.subr.bf16.mxu0 0
        %2686 = vmatpush1.bf16.msra.mxu0 %v2598
        %2687 = vmatprep.subr.bf16.mxu0 0
        %2688 = vmatpush1.bf16.msra.mxu0 0
        %2689 = vmatprep.subr.bf16.mxu0 0
        %2690 = vmatpush1.bf16.msra.mxu0 0
        %2691 = vmatprep.subr.bf16.mxu0 0
        %2692 = vmatpush1.bf16.msra.mxu0 0
        %2693 = vmatprep.subr.bf16.mxu0 0
        %2694 = vmatpush1.bf16.msra.mxu0 0
        %2695 = vmatprep.subr.bf16.mxu0 0
        %2696 = vmatpush1.bf16.msra.mxu0 0
        %2697 = vmatprep.subr.bf16.mxu0 0
        %2698 = vmatpush1.bf16.msra.mxu0 0
        %2699 = vmatprep.subr.bf16.mxu0 0
        %2700 = vmatpush1.bf16.msra.mxu0 0
        %2701 = vmatprep.subr.bf16.mxu0 0
        %2702 = vmatpush1.bf16.msra.mxu0 0
        %2703 = vmatprep.subr.bf16.mxu0 0
        %2704 = vmatpush1.bf16.msra.mxu0 0
        %2705 = vmatprep.subr.bf16.mxu0 0
        %2706 = vmatpush1.bf16.msra.mxu0 0
        %2707 = vmatprep.subr.bf16.mxu0 0
        %2708 = vmatpush1.bf16.msra.mxu0 0
        %2709 = vmatprep.subr.bf16.mxu0 0
        %2710 = vmatpush1.bf16.msra.mxu0 0
        %2711 = vmatprep.mubr.bf16.mxu0 0
        %2712 = vmatmul.mubr.bf16.gmra.mrb[0].mxu0 %v2668
        %v2713 = vpop.f32.mrb[0].mxu0
        %v2714 = vadd.f32 %v2610, %v2713
        %v2715 = vpop.f32.mrb[0].mxu0
        %v2716 = vpop.f32.mrb[0].mxu0
        %v2717 = vadd.f32 %v2615, %v2716
        %v2718 = vpop.f32.mrb[0].mxu0
        %2719 = vmatprep.mubr.bf16.mxu0 0
        %2720 = vmatmul.mubr.bf16.gmra.mrb[0].mxu0 %v2671
        %v2721 = vpop.f32.mrb[0].mxu0
        %v2722 = vadd.f32 %v2620, %v2721
        %v2723 = vpop.f32.mrb[0].mxu0
        %v2724 = vpop.f32.mrb[0].mxu0
        %v2725 = vadd.f32 %v2625, %v2724
        %v2726 = vpop.f32.mrb[0].mxu0
        %2727 = vmatprep.mubr.bf16.mxu0 0
        %2728 = vmatmul.mubr.bf16.gmra.mrb[0].mxu0 %v2674
        %v2729 = vpop.f32.mrb[0].mxu0
        %v2730 = vadd.f32 %v2630, %v2729
        %v2731 = vpop.f32.mrb[0].mxu0
        %v2732 = vpop.f32.mrb[0].mxu0
        %v2733 = vadd.f32 %v2635, %v2732
        %v2734 = vpop.f32.mrb[0].mxu0
        %2735 = vmatprep.mubr.bf16.mxu0 0
        %2736 = vmatmul.mubr.bf16.gmra.mrb[0].mxu0 %v2677
        %v2737 = vpop.f32.mrb[0].mxu0
        %v2738 = vadd.f32 %v2640, %v2737
        %v2739 = vpop.f32.mrb[0].mxu0
        %v2740 = vpop.f32.mrb[0].mxu0
        %v2741 = vadd.f32 %v2645, %v2740
        %v2742 = vpop.f32.mrb[0].mxu0
        %2743 = vdwg.mxu0
        %v2744 = vadd.f32 %v2714, %v948
        %v2745 = vadd.f32 %v2717, %v949
        %v2746 = vadd.f32 %v2722, %v950
        %v2747 = vadd.f32 %v2725, %v951
        %v2748 = vadd.f32 %v2730, %v952
        %v2749 = vadd.f32 %v2733, %v953
        %v2750 = vadd.f32 %v2738, %v954
        %v2751 = vadd.f32 %v2741, %v955
        %v2752 = vadd.f32 %v2744, %v2745
        %v2753 = vadd.f32 %v2752, %v2746
        %v2754 = vadd.f32 %v2753, %v2747
        %v2755 = vadd.f32 %v2754, %v2748
        %v2756 = vadd.f32 %v2755, %v2749
        %v2757 = vadd.f32 %v2756, %v2750
        %v2758 = vadd.f32 %v2757, %v2751
        %v2759 = vrot.slane %v2758, 4
        %v2760 = vadd.f32 %v2758, %v2759
        %v2761 = vrot.slane %v2760, 2
        %v2762 = vadd.f32 %v2760, %v2761
        %v2763 = vrot.slane %v2762, 1
        %v2764 = vadd.f32 %v2762, %v2763
        %v2765 = vrcp.pop 64.0
        %v2766 = vmul.f32 %v2764, %v2765
        %v2767 = vsub.f32 %v2744, %v2766
        %v2768 = vsub.f32 %v2745, %v2766
        %v2769 = vsub.f32 %v2746, %v2766
        %v2770 = vsub.f32 %v2747, %v2766
        %v2771 = vsub.f32 %v2748, %v2766
        %v2772 = vsub.f32 %v2749, %v2766
        %v2773 = vsub.f32 %v2750, %v2766
        %v2774 = vsub.f32 %v2751, %v2766
        %v2775 = vmul.f32 %v2767, %v2767
        %v2776 = vmul.f32 %v2768, %v2768
        %v2777 = vmul.f32 %v2769, %v2769
        %v2778 = vmul.f32 %v2770, %v2770
        %v2779 = vmul.f32 %v2771, %v2771
        %v2780 = vmul.f32 %v2772, %v2772
        %v2781 = vmul.f32 %v2773, %v2773
        %v2782 = vmul.f32 %v2774, %v2774
        %v2783 = vadd.f32 %v2775, %v2776
        %v2784 = vadd.f32 %v2783, %v2777
        %v2785 = vadd.f32 %v2784, %v2778
        %v2786 = vadd.f32 %v2785, %v2779
        %v2787 = vadd.f32 %v2786, %v2780
        %v2788 = vadd.f32 %v2787, %v2781
        %v2789 = vadd.f32 %v2788, %v2782
        %v2790 = vrot.slane %v2789, 4
        %v2791 = vadd.f32 %v2789, %v2790
        %v2792 = vrot.slane %v2791, 2
        %v2793 = vadd.f32 %v2791, %v2792
        %v2794 = vrot.slane %v2793, 1
        %v2795 = vadd.f32 %v2793, %v2794
        %v2796 = vmul.f32 %v2795, %v2765
        %v2797 = vadd.f32 %v2796, 1e-05
        %v2798 = vrsqrt.pop %v2797
        %v2799 = vmul.f32 %v2767, %v2798
        %v2800 = vmul.f32 %v2768, %v2798
        %v2801 = vmul.f32 %v2769, %v2798
        %v2802 = vmul.f32 %v2770, %v2798
        %v2803 = vmul.f32 %v2771, %v2798
        %v2804 = vmul.f32 %v2772, %v2798
        %v2805 = vmul.f32 %v2773, %v2798
        %v2806 = vmul.f32 %v2774, %v2798
        %v2807 = vld [vmem:[%s12] sm:$0xff]
        %v2808 = vld [vmem:[%s12 + $0x8] sm:$0xff]
        %v2809 = vld [vmem:[%s12 + $0x10] sm:$0xff]
        %v2810 = vld [vmem:[%s12 + $0x18] sm:$0xff]
        %v2811 = vld [vmem:[%s12 + $0x20] sm:$0xff]
        %v2812 = vld [vmem:[%s12 + $0x28] sm:$0xff]
        %v2813 = vld [vmem:[%s12 + $0x30] sm:$0xff]
        %v2814 = vld [vmem:[%s12 + $0x38] sm:$0xff]
        %2816 = vset.pattern.permute.xlu0 0
        %2817 = vperm.xlu0 %2816, %v2807
        %v2818 = vpop.permute.xlu0 %2817
        %2821 = vset.pattern.permute.xlu0 0
        %2822 = vperm.xlu0 %2821, %v2808
        %v2823 = vpop.permute.xlu0 %2822
        %2826 = vset.pattern.permute.xlu0 0
        %2827 = vperm.xlu0 %2826, %v2809
        %v2828 = vpop.permute.xlu0 %2827
        %2831 = vset.pattern.permute.xlu0 0
        %2832 = vperm.xlu0 %2831, %v2810
        %v2833 = vpop.permute.xlu0 %2832
        %2836 = vset.pattern.permute.xlu0 0
        %2837 = vperm.xlu0 %2836, %v2811
        %v2838 = vpop.permute.xlu0 %2837
        %2841 = vset.pattern.permute.xlu0 0
        %2842 = vperm.xlu0 %2841, %v2812
        %v2843 = vpop.permute.xlu0 %2842
        %2846 = vset.pattern.permute.xlu0 0
        %2847 = vperm.xlu0 %2846, %v2813
        %v2848 = vpop.permute.xlu0 %2847
        %2851 = vset.pattern.permute.xlu0 0
        %2852 = vperm.xlu0 %2851, %v2814
        %v2853 = vpop.permute.xlu0 %2852
        %v2855 = vadd.f32 %v2799, %v2818
        %v2856 = vadd.f32 %v2800, %v2823
        %v2857 = vadd.f32 %v2801, %v2828
        %v2858 = vadd.f32 %v2802, %v2833
        %v2859 = vadd.f32 %v2803, %v2838
        %v2860 = vadd.f32 %v2804, %v2843
        %v2861 = vadd.f32 %v2805, %v2848
        %v2862 = vadd.f32 %v2806, %v2853
        %v2863 = vld [vmem:[%s11] sm:$0xff]
        %v2864 = vld [vmem:[%s11 + $0x8] sm:$0xff]
        %v2865 = vld [vmem:[%s11 + $0x10] sm:$0xff]
        %v2866 = vld [vmem:[%s11 + $0x18] sm:$0xff]
        %v2867 = vld [vmem:[%s11 + $0x20] sm:$0xff]
        %v2868 = vld [vmem:[%s11 + $0x28] sm:$0xff]
        %v2869 = vld [vmem:[%s11 + $0x30] sm:$0xff]
        %v2870 = vld [vmem:[%s11 + $0x38] sm:$0xff]
        %2872 = vset.pattern.permute.xlu0 0
        %2873 = vperm.xlu0 %2872, %v2863
        %v2874 = vpop.permute.xlu0 %2873
        %2877 = vset.pattern.permute.xlu0 0
        %2878 = vperm.xlu0 %2877, %v2864
        %v2879 = vpop.permute.xlu0 %2878
        %2882 = vset.pattern.permute.xlu0 0
        %2883 = vperm.xlu0 %2882, %v2865
        %v2884 = vpop.permute.xlu0 %2883
        %2887 = vset.pattern.permute.xlu0 0
        %2888 = vperm.xlu0 %2887, %v2866
        %v2889 = vpop.permute.xlu0 %2888
        %2892 = vset.pattern.permute.xlu0 0
        %2893 = vperm.xlu0 %2892, %v2867
        %v2894 = vpop.permute.xlu0 %2893
        %2897 = vset.pattern.permute.xlu0 0
        %2898 = vperm.xlu0 %2897, %v2868
        %v2899 = vpop.permute.xlu0 %2898
        %2902 = vset.pattern.permute.xlu0 0
        %2903 = vperm.xlu0 %2902, %v2869
        %v2904 = vpop.permute.xlu0 %2903
        %2907 = vset.pattern.permute.xlu0 0
        %2908 = vperm.xlu0 %2907, %v2870
        %v2909 = vpop.permute.xlu0 %2908
        %v2911 = vmul.f32 %v2855, %v2874
        %v2912 = vmul.f32 %v2856, %v2879
        %v2913 = vmul.f32 %v2857, %v2884
        %v2914 = vmul.f32 %v2858, %v2889
        %v2915 = vmul.f32 %v2859, %v2894
        %v2916 = vmul.f32 %v2860, %v2899
        %v2917 = vmul.f32 %v2861, %v2904
        %v2918 = vmul.f32 %v2862, %v2909
        %2919 = vst [vmem:[%s538] sm:$0xff] %v2911
        %2920 = vst [vmem:[%s538 + $0x8] sm:$0xff] %v2912
        %2921 = vst [vmem:[%s538 + $0x10] sm:$0xff] %v2913
        %2922 = vst [vmem:[%s538 + $0x18] sm:$0xff] %v2914
        %2923 = vst [vmem:[%s538 + $0x20] sm:$0xff] %v2915
        %2924 = vst [vmem:[%s538 + $0x28] sm:$0xff] %v2916
        %2925 = vst [vmem:[%s538 + $0x30] sm:$0xff] %v2917
        %2926 = vst [vmem:[%s538 + $0x38] sm:$0xff] %v2918
        %s2927 = sand.u32 %s347, 1
        %s2928 = scalar_lea.sflag [#allocation6], %s2927
        %s2929 = sand.u32 %s347, 1
        %s2930 = smul.addr %s2929, 64
        %s2931 = scalar_lea.vmem [#allocation7], %s2930
        %s2932 = sand.u32 %s375, 1
        %s2933 = scalar_lea.sflag [#allocation9], %s2932
        %s2934 = sand.u32 %s375, 1
        %s2935 = smul.addr %s2934, 256
        %s2936 = scalar_lea.vmem [#allocation8], %s2935
        // Predicated region
        $region81: #{tpu_custom_call.1} parent=71 // pred_check
          %p2937 = pneg %p357
        $region82: #{tpu_custom_call.1} parent=71 // pred_check_branch
          %2939 = sbr.rel (%p2937) target = $region84
        $region83: #{tpu_custom_call.1} parent=71 // pred_region
          %s2941 = ssub.s32 1024, 1024
          %2942 = vsyncadd %s2928, %s2941
          %s2943 = smul.addr %s39, 16
          %s2944 = sadd.s32 %s40, %s2943
          %s2945 = smul.addr %s2944, 128
          %s2946 = scalar_lea.hbm %s13, %s2945
          %s2947 = sshll.u32 %s2931, 4
          %s2948 = int_to_ptr.vmem [resolvable:$true] %s2947
          %2953 = dma.vmem_to_hbm [thread:$0]  %s2948, 1024, %s2946, %s2928, 128, 256, 8
        $region84: #{tpu_custom_call.1} parent=71 // pred_fallthru
          _
        // Predicated region
        $region85: #{tpu_custom_call.1} parent=71 // pred_check
          %p2954 = pneg %p385
        $region86: #{tpu_custom_call.1} parent=71 // pred_check_branch
          %2956 = sbr.rel (%p2954) target = $region88
        $region87: #{tpu_custom_call.1} parent=71 // pred_region
          #allocation11 [shape = 'u32[6]{0}', space=smem, size = 0x18, scoped, tag = 'DMA stride descriptor']
          %s2958 = ssub.s32 4096, 4096
          %2959 = vsyncadd %s2933, %s2958
          %s2960 = smul.addr %s39, 32
          %s2961 = sadd.s32 %s40, %s2960
          %s2962 = smul.addr %s2961, 64
          %s2963 = scalar_lea.hbm %s14, %s2962
          %s2965 = sshll.u32 1, 14
          %s2966 = sxor.u32 4294967295, %s2965
          %s2969 = sshll.u32 7, 18
          %s2970 = sxor.u32 4294967295, %s2969
          %s2971 = sand.u32 0, %s2970
          %s2973 = sor.u32 %s2971, 0
          %s2975 = sshll.u32 3, 24
          %s2976 = sxor.u32 4294967295, %s2975
          %s2977 = sand.u32 %s2973, %s2976
          %s2979 = sor.u32 %s2977, 0
          %s2980 = sshll.u32 %s2936, 4
          %s2981 = int_to_ptr.vmem [resolvable:$true] %s2980
          %2987 = sst [smem:[#allocation11]] 1024
          %s2988 = scalar_lea.smem [#allocation11], 1
          %2989 = sst [smem:[%s2988]] 4096
          %s2990 = scalar_lea.smem [#allocation11], 2
          %2991 = sst [smem:[%s2990]] 16
          %s2992 = scalar_lea.smem [#allocation11], 3
          %2993 = sst [smem:[%s2992]] 64
          %s2994 = scalar_lea.smem [#allocation11], 4
          %2995 = sst [smem:[%s2994]] 128
          %s2996 = scalar_lea.smem [#allocation11], 5
          %2997 = sst [smem:[%s2996]] 4
          %2999 = dma.general %s2981, 4096, %s2963, %s2933, [#allocation10], [#allocation11], %s2979, 0
        $region88: #{tpu_custom_call.1} parent=71 // pred_fallthru
          _
      $region72: #{tpu_custom_call.1} parent=5 // pred_fallthru
        _
      %p3000 = scmp.le.s32.totalorder 2, %s30
      // Predicated region
      $region89: #{tpu_custom_call.1} parent=5 // pred_check
        %p3001 = pneg %p3000
      $region90: #{tpu_custom_call.1} parent=5 // pred_check_branch
        %3003 = sbr.rel (%p3001) target = $region92
      $region91: #{tpu_custom_call.1} parent=5 // pred_region
        %s3004 = ssub.s32 %s30, 2
        // Predicated region
        $region93: #{tpu_custom_call.1} parent=91 // pred_check
          %p3005 = pneg %p363
        $region94: #{tpu_custom_call.1} parent=91 // pred_check_branch
          %3007 = sbr.rel (%p3005) target = $region96
        $region95: #{tpu_custom_call.1} parent=91 // pred_region
          %s3008 = sand.u32 %s348, 1
          %s3009 = scalar_lea.sflag [#allocation6], %s3008
          %s3010 = sand.u32 %s348, 1
          %s3011 = smul.addr %s3010, 64
          %s3012 = scalar_lea.vmem [#allocation7], %s3011
          %3013 = dma.done %s3009, 1024
        $region96: #{tpu_custom_call.1} parent=91 // pred_fallthru
          _
        // Predicated region
        $region97: #{tpu_custom_call.1} parent=91 // pred_check
          %p3014 = pneg %p391
        $region98: #{tpu_custom_call.1} parent=91 // pred_check_branch
          %3016 = sbr.rel (%p3014) target = $region100
        $region99: #{tpu_custom_call.1} parent=91 // pred_region
          %s3017 = sand.u32 %s376, 1
          %s3018 = scalar_lea.sflag [#allocation9], %s3017
          %s3019 = sand.u32 %s376, 1
          %s3020 = smul.addr %s3019, 256
          %s3021 = scalar_lea.vmem [#allocation8], %s3020
          %3022 = dma.done %s3018, 4096
        $region100: #{tpu_custom_call.1} parent=91 // pred_fallthru
          _
      $region92: #{tpu_custom_call.1} parent=5 // pred_fallthru
        _
    $region6: #{tpu_custom_call.1} parent=1 // loop_footer
      %s34 = sadd.s32 1, %s30
    $region7: #{tpu_custom_call.1} parent=1 // loop_footer_branch
      %29 = sbr.rel target = $region3
    $region8: #{tpu_custom_call.1} parent=1 // loop_exit
      _
    %3023 = vsyncpa [#allocation5], 1
    %s3024 = scalar_lea.sflag [#allocation5], 1
    %3025 = vsyncpa %s3024, 1
    %3026 = vsyncpa [#allocation6], 1
    %s3027 = scalar_lea.sflag [#allocation6], 1
    %3028 = vsyncpa %s3027, 1
    %3029 = vsyncpa [#allocation9], 1
    %s3030 = scalar_lea.sflag [#allocation9], 1
    %3031 = vsyncpa %s3030, 1

</llo_original>
